<compile_context>
chip_gen: v6e
topology: v6e:2x2x1
jax: 0.10.0
libtpu: 0.0.40
codegen_flags: <defaults>
</compile_context>

<pallas_src>
import functools

import jax
import jax.numpy as jnp
from jax.experimental import pallas as pl
from jax.experimental.pallas import tpu as pltpu


# ----------------------------- Pallas kernel -------------------------------- #

def _fused_disc_kernel(*refs, num_bn, inv_counts, eps, slope):
    """refs = [x, (T, R, Rt, gamma, beta) * num_bn, T_last, out]."""
    x_ref = refs[0]
    o_ref = refs[-1]

    act = x_ref[...]                                        # bf16 [N, H*W*Cin]
    idx = 1
    for l in range(num_bn):
        t_ref, r_ref, rt_ref, g_ref, b_ref = refs[idx:idx + 5]
        idx += 5

        # Conv2d (bias=False) as a single dense matmul; f32 accumulation.
        y = jnp.dot(act, t_ref[...],
                    preferred_element_type=jnp.float32)     # [N, D_l] f32

        # ---- BatchNorm2d, training-mode batch statistics (biased var) ----
        r = r_ref[...]                                       # [D_l, OC_l] 0/1
        rt = rt_ref[...]                                     # [OC_l, D_l] 0/1
        inv_n = inv_counts[l]

        csum = jnp.dot(jnp.sum(y, axis=0, keepdims=True), r,
                       preferred_element_type=jnp.float32)   # [1, OC] per-channel sum
        mean_b = jnp.dot(csum * inv_n, rt,
                         preferred_element_type=jnp.float32) # [1, D] broadcast mean
        yc = y - mean_b                                      # centered, reused below
        cvar = jnp.dot(jnp.sum(yc * yc, axis=0, keepdims=True), r,
                       preferred_element_type=jnp.float32) * inv_n        # [1, OC]
        scale = g_ref[...] * jax.lax.rsqrt(cvar + eps)       # gamma / sqrt(var+eps)
        scale_b = jnp.dot(scale, rt, preferred_element_type=jnp.float32)  # [1, D]
        beta_b = jnp.dot(b_ref[...], rt, preferred_element_type=jnp.float32)
        z = yc * scale_b + beta_b

        # LeakyReLU(0.2)
        z = jnp.where(z > 0, z, slope * z)

        act = z.astype(jnp.bfloat16)                         # bf16 feed to next MXU op

    # Final conv + Sigmoid.
    t_ref = refs[idx]
    y = jnp.dot(act, t_ref[...], preferred_element_type=jnp.float32)
    o_ref[...] = jax.nn.sigmoid(y)


_VMEM = pl.BlockSpec(memory_space=pltpu.MemorySpace.VMEM)


# ------------------------- pack-time (hoisted) glue -------------------------- #

def _cfg_item(v, i):
    return v[i] if isinstance(v, (list, tuple)) else v


def _conv_as_dense_matrix(w, H, W, stride, pad):
    """Lower Conv2d(bias=False) to a dense matrix T so that for NHWC-flattened
    inputs/outputs:  out_flat[n] = in_flat[n] @ T.

    w: [OC, Cin, KH, KW].  Returns (T [H*W*Cin, OH*OW*OC], OH, OW)."""
    OC, Cin, KH, KW = w.shape
    OH = (H + 2 * pad - KH) // stride + 1
    OW = (W + 2 * pad - KW) // stride + 1
    oh, ow, oc, i, j, c = jnp.meshgrid(
        jnp.arange(OH), jnp.arange(OW), jnp.arange(OC),
        jnp.arange(KH), jnp.arange(KW), jnp.arange(Cin), indexing='ij')
    h = stride * oh - pad + i
    wpos = stride * ow - pad + j
    valid = (h >= 0) & (h < H) & (wpos >= 0) & (wpos < W)
    rows = jnp.where(valid, h * (W * Cin) + wpos * Cin + c, 0)
    cols = oh * (OW * OC) + ow * OC + oc
    vals = jnp.where(valid, w[oc, c, i, j], 0.0)
    T = jnp.zeros((H * W * Cin, OH * OW * OC), jnp.float32)
    T = T.at[rows.ravel(), cols.ravel()].add(vals.ravel())
    return T, OH, OW


def _channel_reduce_matrix(ohw, oc):
    """R [ohw*oc, oc], R[k, c] = 1 iff k % oc == c (flat layout is (oh, ow, c))."""
    k = jnp.arange(ohw * oc)
    return (k[:, None] % oc == jnp.arange(oc)[None, :]).astype(jnp.float32)


def init_discriminator_params(config, key):
    """Deterministic parameter init matching nn.Conv2d / nn.BatchNorm2d shapes."""
    layer_depth = config['layer_depth']
    ks_list = config['layer_kernel_size']
    num_layers = len(layer_depth)
    params = []
    in_ch = config['in_channels']
    for i in range(num_layers - 1):
        out_ch = layer_depth[i]
        ks = _cfg_item(ks_list, i)
        key, sub = jax.random.split(key)
        w = 0.02 * jax.random.normal(sub, (out_ch, in_ch, ks, ks), jnp.float32)
        params.append({'w': w,
                       'gamma': jnp.ones((out_ch,), jnp.float32),   # BN defaults
                       'beta': jnp.zeros((out_ch,), jnp.float32)})
        in_ch = out_ch
    ks = _cfg_item(ks_list, num_layers - 1)
    key, sub = jax.random.split(key)
    w_last = 0.02 * jax.random.normal(
        sub, (config['out_channels'], in_ch, ks, ks), jnp.float32)
    params.append({'w': w_last})
    return params


def pack_discriminator_params(params, config, input_hw):
    """Hoisted weight preprocessing: conv weights -> dense bf16 Toeplitz matrices,
    plus the 0/1 BN channel gather/broadcast matrices. Done once, not per call."""
    H, W = input_hw
    layer_depth = config['layer_depth']
    st_list = config['layer_stride']
    pd_list = config['layer_padding']
    num_layers = len(layer_depth)
    num_bn = num_layers - 1

    operands = []
    spatial = []
    h, w = H, W
    for i in range(num_layers):
        p = params[i]
        wgt = p['w']
        T, oh, ow = _conv_as_dense_matrix(wgt, h, w,
                                          _cfg_item(st_list, i), _cfg_item(pd_list, i))
        oc = wgt.shape[0]
        if i < num_bn:
            R = _channel_reduce_matrix(oh * ow, oc)
            operands += [T.astype(jnp.bfloat16), R, R.T,
                         p['gamma'].reshape(1, oc).astype(jnp.float32),
                         p['beta'].reshape(1, oc).astype(jnp.float32)]
        else:
            operands += [T.astype(jnp.bfloat16)]
        spatial.append((oh, ow, oc))
        h, w = oh, ow

    return {'operands': operands, 'spatial': spatial, 'num_bn': num_bn,
            'input_hw': (H, W), 'in_channels': config['in_channels'],
            'eps': 1e-5, 'slope': 0.2}


# ------------------------------- forward ------------------------------------- #

def discriminator_forward(packed, x):
    """x: [N, C, H, W] float32 (NCHW, PyTorch layout) -> [N, OC, OH, OW]."""
    N, C, H, W = x.shape
    assert (H, W) == packed['input_hw'] and C == packed['in_channels']

    # NCHW -> flattened NHWC rows, bf16 for the MXU.
    x_flat = jnp.transpose(x, (0, 2, 3, 1)).reshape(N, H * W * C).astype(jnp.bfloat16)

    operands = packed['operands']
    num_bn = packed['num_bn']
    spatial = packed['spatial']
    inv_counts = tuple(1.0 / float(N * oh * ow) for (oh, ow, _) in spatial[:num_bn])
    OHf, OWf, OCf = spatial[-1]

    kernel = functools.partial(_fused_disc_kernel, num_bn=num_bn,
                               inv_counts=inv_counts,
                               eps=packed['eps'], slope=packed['slope'])

    out_flat = pl.pallas_call(
        kernel,
        out_shape=jax.ShapeDtypeStruct((N, OHf * OWf * OCf), jnp.float32),
        in_specs=[_VMEM] * (1 + len(operands)),
        out_specs=_VMEM,
    )(x_flat, *operands)

    # flattened NHWC -> NCHW (matches the PyTorch output layout).
    return out_flat.reshape(N, OHf, OWf, OCf).transpose(0, 3, 1, 2)


# --------------------------------- main --------------------------------------- #

if __name__ == "__main__":
    config = {
        'in_channels': 4,
        'out_channels': 1,
        'layer_depth': [8, 16, 16],        # last entry unused (as in the module)
        'layer_kernel_size': [4, 4, 4],
        'layer_stride': [2, 2, 1],
        'layer_padding': [1, 1, 0],
    }
    key = jax.random.PRNGKey(0)
    key, xkey = jax.random.split(key)
    x = jax.random.normal(xkey, (2, 4, 16, 16), jnp.float32)   # NCHW, like PyTorch

    params = init_discriminator_params(config, key)
    packed = pack_discriminator_params(params, config, input_hw=(16, 16))

    out = discriminator_forward(packed, x)
    out = jax.block_until_ready(out)

    assert out.shape == (2, 1, 1, 1), out.shape
    assert bool(jnp.all((out >= 0.0) & (out <= 1.0)))  # sigmoid range
    print("KERNEL_OK")
</pallas_src>

<mosaic_0001>
module attributes {stable_mosaic.version = 11 : i64} {
  func.func @_fused_disc_kernel(%arg0: memref<2x1024xbf16, #tpu.memory_space<vmem>>, %arg1: memref<1024x512xbf16, #tpu.memory_space<vmem>>, %arg2: memref<512x8xf32, #tpu.memory_space<vmem>>, %arg3: memref<8x512xf32, #tpu.memory_space<vmem>>, %arg4: memref<1x8xf32, #tpu.memory_space<vmem>>, %arg5: memref<1x8xf32, #tpu.memory_space<vmem>>, %arg6: memref<512x256xbf16, #tpu.memory_space<vmem>>, %arg7: memref<256x16xf32, #tpu.memory_space<vmem>>, %arg8: memref<16x256xf32, #tpu.memory_space<vmem>>, %arg9: memref<1x16xf32, #tpu.memory_space<vmem>>, %arg10: memref<1x16xf32, #tpu.memory_space<vmem>>, %arg11: memref<256x1xbf16, #tpu.memory_space<vmem>>, %arg12: memref<2x1xf32, #tpu.memory_space<vmem>>) attributes {dimension_semantics = [], scalar_prefetch = 0 : i64, scratch_operands = 0 : i64, tpu.core_type = #tpu.core_type<tc>} {
    %c0 = arith.constant 0 : index
    %c0_0 = arith.constant 0 : index
    %0 = vector.load %arg0[%c0, %c0_0] : memref<2x1024xbf16, #tpu.memory_space<vmem>>, vector<2x1024xbf16>
    %c0_1 = arith.constant 0 : index
    %c0_2 = arith.constant 0 : index
    %1 = vector.load %arg1[%c0_1, %c0_2] : memref<1024x512xbf16, #tpu.memory_space<vmem>>, vector<1024x512xbf16>
    %cst = arith.constant dense<0.000000e+00> : vector<2x512xf32>
    %2 = tpu.matmul %0, %1, %cst {dimension_numbers = #tpu.dot_dimension_numbers<[1], [0], [0], [1], [0, 0, 1, 1], [], []>} : vector<2x1024xbf16>, vector<1024x512xbf16>, vector<2x512xf32> -> vector<2x512xf32>
    %c0_3 = arith.constant 0 : index
    %c0_4 = arith.constant 0 : index
    %3 = vector.load %arg2[%c0_3, %c0_4] : memref<512x8xf32, #tpu.memory_space<vmem>>, vector<512x8xf32>
    %c0_5 = arith.constant 0 : index
    %c0_6 = arith.constant 0 : index
    %4 = vector.load %arg3[%c0_5, %c0_6] : memref<8x512xf32, #tpu.memory_space<vmem>>, vector<8x512xf32>
    %cst_7 = arith.constant dense<0.000000e+00> : vector<512xf32>
    %5 = vector.multi_reduction <add>, %2, %cst_7 [0] : vector<2x512xf32> to vector<512xf32>
    %6 = vector.shape_cast %5 : vector<512xf32> to vector<1x512xf32>
    %cst_8 = arith.constant dense<0.000000e+00> : vector<1x8xf32>
    %7 = tpu.matmul %6, %3, %cst_8 {dimension_numbers = #tpu.dot_dimension_numbers<[1], [0], [0], [1], [0, 0, 1, 1], [], []>} : vector<1x512xf32>, vector<512x8xf32>, vector<1x8xf32> -> vector<1x8xf32>
    %cst_9 = arith.constant 7.812500e-03 : f32
    %8 = vector.broadcast %cst_9 : f32 to vector<1x8xf32>
    %9 = arith.mulf %7, %8 : vector<1x8xf32>
    %cst_10 = arith.constant dense<0.000000e+00> : vector<1x512xf32>
    %10 = tpu.matmul %9, %4, %cst_10 {dimension_numbers = #tpu.dot_dimension_numbers<[1], [0], [0], [1], [0, 0, 1, 1], [], []>} : vector<1x8xf32>, vector<8x512xf32>, vector<1x512xf32> -> vector<1x512xf32>
    %11 = vector.broadcast %10 : vector<1x512xf32> to vector<2x512xf32>
    %12 = arith.subf %2, %11 : vector<2x512xf32>
    %13 = arith.mulf %12, %12 : vector<2x512xf32>
    %cst_11 = arith.constant dense<0.000000e+00> : vector<512xf32>
    %14 = vector.multi_reduction <add>, %13, %cst_11 [0] : vector<2x512xf32> to vector<512xf32>
    %15 = vector.shape_cast %14 : vector<512xf32> to vector<1x512xf32>
    %cst_12 = arith.constant dense<0.000000e+00> : vector<1x8xf32>
    %16 = tpu.matmul %15, %3, %cst_12 {dimension_numbers = #tpu.dot_dimension_numbers<[1], [0], [0], [1], [0, 0, 1, 1], [], []>} : vector<1x512xf32>, vector<512x8xf32>, vector<1x8xf32> -> vector<1x8xf32>
    %cst_13 = arith.constant 7.812500e-03 : f32
    %17 = vector.broadcast %cst_13 : f32 to vector<1x8xf32>
    %18 = arith.mulf %16, %17 : vector<1x8xf32>
    %c0_14 = arith.constant 0 : index
    %c0_15 = arith.constant 0 : index
    %19 = vector.load %arg4[%c0_14, %c0_15] : memref<1x8xf32, #tpu.memory_space<vmem>>, vector<1x8xf32>
    %cst_16 = arith.constant 9.99999974E-6 : f32
    %20 = vector.broadcast %cst_16 : f32 to vector<1x8xf32>
    %21 = arith.addf %18, %20 : vector<1x8xf32>
    %22 = math.rsqrt %21 : vector<1x8xf32>
    %23 = arith.mulf %19, %22 : vector<1x8xf32>
    %cst_17 = arith.constant dense<0.000000e+00> : vector<1x512xf32>
    %24 = tpu.matmul %23, %4, %cst_17 {dimension_numbers = #tpu.dot_dimension_numbers<[1], [0], [0], [1], [0, 0, 1, 1], [], []>} : vector<1x8xf32>, vector<8x512xf32>, vector<1x512xf32> -> vector<1x512xf32>
    %c0_18 = arith.constant 0 : index
    %c0_19 = arith.constant 0 : index
    %25 = vector.load %arg5[%c0_18, %c0_19] : memref<1x8xf32, #tpu.memory_space<vmem>>, vector<1x8xf32>
    %cst_20 = arith.constant dense<0.000000e+00> : vector<1x512xf32>
    %26 = tpu.matmul %25, %4, %cst_20 {dimension_numbers = #tpu.dot_dimension_numbers<[1], [0], [0], [1], [0, 0, 1, 1], [], []>} : vector<1x8xf32>, vector<8x512xf32>, vector<1x512xf32> -> vector<1x512xf32>
    %27 = vector.broadcast %24 : vector<1x512xf32> to vector<2x512xf32>
    %28 = arith.mulf %12, %27 : vector<2x512xf32>
    %29 = vector.broadcast %26 : vector<1x512xf32> to vector<2x512xf32>
    %30 = arith.addf %28, %29 : vector<2x512xf32>
    %cst_21 = arith.constant 0.000000e+00 : f32
    %31 = vector.broadcast %cst_21 : f32 to vector<2x512xf32>
    %32 = arith.cmpf ogt, %30, %31 : vector<2x512xf32>
    %cst_22 = arith.constant 2.000000e-01 : f32
    %33 = vector.broadcast %cst_22 : f32 to vector<2x512xf32>
    %34 = arith.mulf %33, %30 : vector<2x512xf32>
    %35 = arith.select %32, %30, %34 : vector<2x512xi1>, vector<2x512xf32>
    %36 = arith.truncf %35 : vector<2x512xf32> to vector<2x512xbf16>
    %c0_23 = arith.constant 0 : index
    %c0_24 = arith.constant 0 : index
    %37 = vector.load %arg6[%c0_23, %c0_24] : memref<512x256xbf16, #tpu.memory_space<vmem>>, vector<512x256xbf16>
    %cst_25 = arith.constant dense<0.000000e+00> : vector<2x256xf32>
    %38 = tpu.matmul %36, %37, %cst_25 {dimension_numbers = #tpu.dot_dimension_numbers<[1], [0], [0], [1], [0, 0, 1, 1], [], []>} : vector<2x512xbf16>, vector<512x256xbf16>, vector<2x256xf32> -> vector<2x256xf32>
    %c0_26 = arith.constant 0 : index
    %c0_27 = arith.constant 0 : index
    %39 = vector.load %arg7[%c0_26, %c0_27] : memref<256x16xf32, #tpu.memory_space<vmem>>, vector<256x16xf32>
    %c0_28 = arith.constant 0 : index
    %c0_29 = arith.constant 0 : index
    %40 = vector.load %arg8[%c0_28, %c0_29] : memref<16x256xf32, #tpu.memory_space<vmem>>, vector<16x256xf32>
    %cst_30 = arith.constant dense<0.000000e+00> : vector<256xf32>
    %41 = vector.multi_reduction <add>, %38, %cst_30 [0] : vector<2x256xf32> to vector<256xf32>
    %42 = vector.shape_cast %41 : vector<256xf32> to vector<1x256xf32>
    %cst_31 = arith.constant dense<0.000000e+00> : vector<1x16xf32>
    %43 = tpu.matmul %42, %39, %cst_31 {dimension_numbers = #tpu.dot_dimension_numbers<[1], [0], [0], [1], [0, 0, 1, 1], [], []>} : vector<1x256xf32>, vector<256x16xf32>, vector<1x16xf32> -> vector<1x16xf32>
    %cst_32 = arith.constant 3.125000e-02 : f32
    %44 = vector.broadcast %cst_32 : f32 to vector<1x16xf32>
    %45 = arith.mulf %43, %44 : vector<1x16xf32>
    %cst_33 = arith.constant dense<0.000000e+00> : vector<1x256xf32>
    %46 = tpu.matmul %45, %40, %cst_33 {dimension_numbers = #tpu.dot_dimension_numbers<[1], [0], [0], [1], [0, 0, 1, 1], [], []>} : vector<1x16xf32>, vector<16x256xf32>, vector<1x256xf32> -> vector<1x256xf32>
    %47 = vector.broadcast %46 : vector<1x256xf32> to vector<2x256xf32>
    %48 = arith.subf %38, %47 : vector<2x256xf32>
    %49 = arith.mulf %48, %48 : vector<2x256xf32>
    %cst_34 = arith.constant dense<0.000000e+00> : vector<256xf32>
    %50 = vector.multi_reduction <add>, %49, %cst_34 [0] : vector<2x256xf32> to vector<256xf32>
    %51 = vector.shape_cast %50 : vector<256xf32> to vector<1x256xf32>
    %cst_35 = arith.constant dense<0.000000e+00> : vector<1x16xf32>
    %52 = tpu.matmul %51, %39, %cst_35 {dimension_numbers = #tpu.dot_dimension_numbers<[1], [0], [0], [1], [0, 0, 1, 1], [], []>} : vector<1x256xf32>, vector<256x16xf32>, vector<1x16xf32> -> vector<1x16xf32>
    %cst_36 = arith.constant 3.125000e-02 : f32
    %53 = vector.broadcast %cst_36 : f32 to vector<1x16xf32>
    %54 = arith.mulf %52, %53 : vector<1x16xf32>
    %c0_37 = arith.constant 0 : index
    %c0_38 = arith.constant 0 : index
    %55 = vector.load %arg9[%c0_37, %c0_38] : memref<1x16xf32, #tpu.memory_space<vmem>>, vector<1x16xf32>
    %cst_39 = arith.constant 9.99999974E-6 : f32
    %56 = vector.broadcast %cst_39 : f32 to vector<1x16xf32>
    %57 = arith.addf %54, %56 : vector<1x16xf32>
    %58 = math.rsqrt %57 : vector<1x16xf32>
    %59 = arith.mulf %55, %58 : vector<1x16xf32>
    %cst_40 = arith.constant dense<0.000000e+00> : vector<1x256xf32>
    %60 = tpu.matmul %59, %40, %cst_40 {dimension_numbers = #tpu.dot_dimension_numbers<[1], [0], [0], [1], [0, 0, 1, 1], [], []>} : vector<1x16xf32>, vector<16x256xf32>, vector<1x256xf32> -> vector<1x256xf32>
    %c0_41 = arith.constant 0 : index
    %c0_42 = arith.constant 0 : index
    %61 = vector.load %arg10[%c0_41, %c0_42] : memref<1x16xf32, #tpu.memory_space<vmem>>, vector<1x16xf32>
    %cst_43 = arith.constant dense<0.000000e+00> : vector<1x256xf32>
    %62 = tpu.matmul %61, %40, %cst_43 {dimension_numbers = #tpu.dot_dimension_numbers<[1], [0], [0], [1], [0, 0, 1, 1], [], []>} : vector<1x16xf32>, vector<16x256xf32>, vector<1x256xf32> -> vector<1x256xf32>
    %63 = vector.broadcast %60 : vector<1x256xf32> to vector<2x256xf32>
    %64 = arith.mulf %48, %63 : vector<2x256xf32>
    %65 = vector.broadcast %62 : vector<1x256xf32> to vector<2x256xf32>
    %66 = arith.addf %64, %65 : vector<2x256xf32>
    %cst_44 = arith.constant 0.000000e+00 : f32
    %67 = vector.broadcast %cst_44 : f32 to vector<2x256xf32>
    %68 = arith.cmpf ogt, %66, %67 : vector<2x256xf32>
    %cst_45 = arith.constant 2.000000e-01 : f32
    %69 = vector.broadcast %cst_45 : f32 to vector<2x256xf32>
    %70 = arith.mulf %69, %66 : vector<2x256xf32>
    %71 = arith.select %68, %66, %70 : vector<2x256xi1>, vector<2x256xf32>
    %72 = arith.truncf %71 : vector<2x256xf32> to vector<2x256xbf16>
    %c0_46 = arith.constant 0 : index
    %c0_47 = arith.constant 0 : index
    %73 = vector.load %arg11[%c0_46, %c0_47] : memref<256x1xbf16, #tpu.memory_space<vmem>>, vector<256x1xbf16>
    %cst_48 = arith.constant dense<0.000000e+00> : vector<2x1xf32>
    %74 = tpu.matmul %72, %73, %cst_48 {dimension_numbers = #tpu.dot_dimension_numbers<[1], [0], [0], [1], [0, 0, 1, 1], [], []>} : vector<2x256xbf16>, vector<256x1xbf16>, vector<2x1xf32> -> vector<2x1xf32>
    %75 = arith.negf %74 : vector<2x1xf32>
    %76 = math.exp %75 : vector<2x1xf32>
    %cst_49 = arith.constant 1.000000e+00 : f32
    %77 = vector.broadcast %cst_49 : f32 to vector<2x1xf32>
    %78 = arith.addf %77, %76 : vector<2x1xf32>
    %79 = arith.divf %77, %78 : vector<2x1xf32>
    %c0_50 = arith.constant 0 : index
    %c0_51 = arith.constant 0 : index
    %80 = vector.load %arg12[%c0_50, %c0_51] : memref<2x1xf32, #tpu.memory_space<vmem>>, vector<2x1xf32>
    tpu.vector_store %arg12[%c0_50, %c0_51], %79 {strides = array<i32>} : memref<2x1xf32, #tpu.memory_space<vmem>>, vector<2x1xf32>,
    return
  }
}

</mosaic_0001>

<llo_original>
// kernel: tpu_custom_call.1
$region0: #{tpu_custom_call.1}
  #allocation0 [shape = 'u32[]', space=smem, size = 0x4, offset = 0x4, fixed_abs, tag = 'smem constant byte address 0x4 - core index']
  #allocation1 [shape = 'u32[144,128]{1,0:T(1,128)}', space=vmem, size = 0x12000, scoped, tag = 'internal scratch']
  %s0 = inlined_call_operand.vmem [shape: bf16[2,1024], index: 0, kind: input, shape index: {}]
  %s1 = inlined_call_operand.hbm [shape: bf16[1024,512], index: 1, kind: input, shape index: {}]
  %s2 = inlined_call_operand.vmem [shape: f32[512,8], index: 2, kind: input, shape index: {}]
  %s3 = inlined_call_operand.vmem [shape: f32[8,512], index: 3, kind: input, shape index: {}]
  %s4 = inlined_call_operand.vmem [shape: f32[1,8], index: 4, kind: input, shape index: {}]
  %s5 = inlined_call_operand.vmem [shape: f32[1,8], index: 5, kind: input, shape index: {}]
  %s6 = inlined_call_operand.vmem [shape: bf16[512,256], index: 6, kind: input, shape index: {}]
  %s7 = inlined_call_operand.vmem [shape: f32[256,16], index: 7, kind: input, shape index: {}]
  %s8 = inlined_call_operand.vmem [shape: f32[16,256], index: 8, kind: input, shape index: {}]
  %s9 = inlined_call_operand.vmem [shape: f32[1,16], index: 9, kind: input, shape index: {}]
  %s10 = inlined_call_operand.vmem [shape: f32[1,16], index: 10, kind: input, shape index: {}]
  %s11 = inlined_call_operand.vmem [shape: bf16[256,1], index: 11, kind: input, shape index: {}]
  %s12 = inlined_call_operand.vmem [shape: f32[2,1], index: 12, kind: output, shape index: {}]
  %s13 = sld [smem:[#allocation0]]
  $region62: #{tpu_custom_call.1} parent=0
    _
  %s15 = ssub.s32 1, %s13
  %s16 = scalar_select 0, %s15, %s13
  $region1: #{tpu_custom_call.1} parent=0
    #allocation2 [shape = 'u8[1048576]{0}', space=vmem, size = 0x100000, scoped, tag = 'input window, operand 1, single buffered']
    #allocation3 [shape = 's32[1]{0}', space=sflag, size = 0x4, scoped, tag = 'scoped memory for tpu_custom_call.1']
    %17 = vsyncpa [#allocation3], 0
    // Predicated region
    $region2: #{tpu_custom_call.1} parent=1 // pred_check
      _
    $region3: #{tpu_custom_call.1} parent=1 // pred_check_branch
      %19 = sbr.rel (0) target = $region5
    $region4: #{tpu_custom_call.1} parent=1 // pred_region
      _
    $region5: #{tpu_custom_call.1} parent=1 // pred_fallthru
      _
    // Predicated region
    $region6: #{tpu_custom_call.1} parent=1 // pred_check
      _
    $region7: #{tpu_custom_call.1} parent=1 // pred_check_branch
      %21 = sbr.rel (0) target = $region9
    $region8: #{tpu_custom_call.1} parent=1 // pred_region
      %s23 = ssub.s32 32768, 32768
      %24 = vsyncadd [#allocation3], %s23
      %s25 = sshll.u32 [#allocation2], 4
      %s26 = int_to_ptr.vmem [resolvable:$true] %s25
      %31 = dma.hbm_to_vmem [thread:$0]  %s1, 32768, %s26, [#allocation3], 256, 256, 16
    $region9: #{tpu_custom_call.1} parent=1 // pred_fallthru
      _
    // Predicated region
    $region10: #{tpu_custom_call.1} parent=1 // pred_check
      _
    $region11: #{tpu_custom_call.1} parent=1 // pred_check_branch
      %33 = sbr.rel (0) target = $region13
    $region12: #{tpu_custom_call.1} parent=1 // pred_region
      _
    $region13: #{tpu_custom_call.1} parent=1 // pred_fallthru
      _
    // Predicated region
    $region14: #{tpu_custom_call.1} parent=1 // pred_check
      _
    $region15: #{tpu_custom_call.1} parent=1 // pred_check_branch
      %35 = sbr.rel (0) target = $region17
    $region16: #{tpu_custom_call.1} parent=1 // pred_region
      _
    $region17: #{tpu_custom_call.1} parent=1 // pred_fallthru
      _
    // Predicated region
    $region18: #{tpu_custom_call.1} parent=1 // pred_check
      _
    $region19: #{tpu_custom_call.1} parent=1 // pred_check_branch
      %37 = sbr.rel (0) target = $region21
    $region20: #{tpu_custom_call.1} parent=1 // pred_region
      _
    $region21: #{tpu_custom_call.1} parent=1 // pred_fallthru
      _
    // Predicated region
    $region22: #{tpu_custom_call.1} parent=1 // pred_check
      _
    $region23: #{tpu_custom_call.1} parent=1 // pred_check_branch
      %39 = sbr.rel (0) target = $region25
    $region24: #{tpu_custom_call.1} parent=1 // pred_region
      _
    $region25: #{tpu_custom_call.1} parent=1 // pred_fallthru
      _
    // Predicated region
    $region26: #{tpu_custom_call.1} parent=1 // pred_check
      _
    $region27: #{tpu_custom_call.1} parent=1 // pred_check_branch
      %41 = sbr.rel (0) target = $region29
    $region28: #{tpu_custom_call.1} parent=1 // pred_region
      _
    $region29: #{tpu_custom_call.1} parent=1 // pred_fallthru
      _
    // Predicated region
    $region30: #{tpu_custom_call.1} parent=1 // pred_check
      _
    $region31: #{tpu_custom_call.1} parent=1 // pred_check_branch
      %43 = sbr.rel (0) target = $region33
    $region32: #{tpu_custom_call.1} parent=1 // pred_region
      _
    $region33: #{tpu_custom_call.1} parent=1 // pred_fallthru
      _
    // Predicated region
    $region34: #{tpu_custom_call.1} parent=1 // pred_check
      _
    $region35: #{tpu_custom_call.1} parent=1 // pred_check_branch
      %45 = sbr.rel (0) target = $region37
    $region36: #{tpu_custom_call.1} parent=1 // pred_region
      _
    $region37: #{tpu_custom_call.1} parent=1 // pred_fallthru
      _
    // Predicated region
    $region38: #{tpu_custom_call.1} parent=1 // pred_check
      _
    $region39: #{tpu_custom_call.1} parent=1 // pred_check_branch
      %47 = sbr.rel (0) target = $region41
    $region40: #{tpu_custom_call.1} parent=1 // pred_region
      _
    $region41: #{tpu_custom_call.1} parent=1 // pred_fallthru
      _
    // Predicated region
    $region42: #{tpu_custom_call.1} parent=1 // pred_check
      _
    $region43: #{tpu_custom_call.1} parent=1 // pred_check_branch
      %49 = sbr.rel (0) target = $region45
    $region44: #{tpu_custom_call.1} parent=1 // pred_region
      _
    $region45: #{tpu_custom_call.1} parent=1 // pred_fallthru
      _
    // Predicated region
    $region46: #{tpu_custom_call.1} parent=1 // pred_check
      _
    $region47: #{tpu_custom_call.1} parent=1 // pred_check_branch
      %51 = sbr.rel (0) target = $region49
    $region48: #{tpu_custom_call.1} parent=1 // pred_region
      _
    $region49: #{tpu_custom_call.1} parent=1 // pred_fallthru
      _
    // Predicated region
    $region50: #{tpu_custom_call.1} parent=1 // pred_check
      _
    $region51: #{tpu_custom_call.1} parent=1 // pred_check_branch
      %53 = sbr.rel (0) target = $region53
    $region52: #{tpu_custom_call.1} parent=1 // pred_region
      %54 = dma.done [#allocation3], 32768
    $region53: #{tpu_custom_call.1} parent=1 // pred_fallthru
      _
    %v56 = vld [vmem:[%s0] sm:$0xff]
    %v57 = vld [vmem:[#allocation2] sm:$0xff]
    %v58 = vld [vmem:[#allocation2 + $0x8] sm:$0xff]
    %v59 = vld [vmem:[#allocation2 + $0x10] sm:$0xff]
    %v60 = vld [vmem:[#allocation2 + $0x18] sm:$0xff]
    %v61 = vld [vmem:[#allocation2 + $0x20] sm:$0xff]
    %v62 = vld [vmem:[#allocation2 + $0x28] sm:$0xff]
    %v63 = vld [vmem:[#allocation2 + $0x30] sm:$0xff]
    %v64 = vld [vmem:[#allocation2 + $0x38] sm:$0xff]
    %v65 = vld [vmem:[#allocation2 + $0x40] sm:$0xff]
    %v66 = vld [vmem:[#allocation2 + $0x48] sm:$0xff]
    %v67 = vld [vmem:[#allocation2 + $0x50] sm:$0xff]
    %v68 = vld [vmem:[#allocation2 + $0x58] sm:$0xff]
    %v69 = vld [vmem:[#allocation2 + $0x60] sm:$0xff]
    %v70 = vld [vmem:[#allocation2 + $0x68] sm:$0xff]
    %v71 = vld [vmem:[#allocation2 + $0x70] sm:$0xff]
    %v72 = vld [vmem:[#allocation2 + $0x78] sm:$0xff]
    %v73 = vld [vmem:[#allocation2 + $0x80] sm:$0xff]
    %v74 = vld [vmem:[#allocation2 + $0x88] sm:$0xff]
    %v75 = vld [vmem:[#allocation2 + $0x90] sm:$0xff]
    %v76 = vld [vmem:[#allocation2 + $0x98] sm:$0xff]
    %v77 = vld [vmem:[#allocation2 + $0xa0] sm:$0xff]
    %v78 = vld [vmem:[#allocation2 + $0xa8] sm:$0xff]
    %v79 = vld [vmem:[#allocation2 + $0xb0] sm:$0xff]
    %v80 = vld [vmem:[#allocation2 + $0xb8] sm:$0xff]
    %v81 = vld [vmem:[#allocation2 + $0xc0] sm:$0xff]
    %v82 = vld [vmem:[#allocation2 + $0xc8] sm:$0xff]
    %v83 = vld [vmem:[#allocation2 + $0xd0] sm:$0xff]
    %v84 = vld [vmem:[#allocation2 + $0xd8] sm:$0xff]
    %v85 = vld [vmem:[#allocation2 + $0xe0] sm:$0xff]
    %v86 = vld [vmem:[#allocation2 + $0xe8] sm:$0xff]
    %v87 = vld [vmem:[#allocation2 + $0xf0] sm:$0xff]
    %v88 = vld [vmem:[#allocation2 + $0xf8] sm:$0xff]
    %v89 = vld [vmem:[#allocation2 + $0x100] sm:$0xff]
    %v90 = vld [vmem:[#allocation2 + $0x108] sm:$0xff]
    %v91 = vld [vmem:[#allocation2 + $0x110] sm:$0xff]
    %v92 = vld [vmem:[#allocation2 + $0x118] sm:$0xff]
    %v93 = vld [vmem:[#allocation2 + $0x120] sm:$0xff]
    %v94 = vld [vmem:[#allocation2 + $0x128] sm:$0xff]
    %v95 = vld [vmem:[#allocation2 + $0x130] sm:$0xff]
    %v96 = vld [vmem:[#allocation2 + $0x138] sm:$0xff]
    %v97 = vld [vmem:[#allocation2 + $0x140] sm:$0xff]
    %v98 = vld [vmem:[#allocation2 + $0x148] sm:$0xff]
    %v99 = vld [vmem:[#allocation2 + $0x150] sm:$0xff]
    %v100 = vld [vmem:[#allocation2 + $0x158] sm:$0xff]
    %v101 = vld [vmem:[#allocation2 + $0x160] sm:$0xff]
    %v102 = vld [vmem:[#allocation2 + $0x168] sm:$0xff]
    %v103 = vld [vmem:[#allocation2 + $0x170] sm:$0xff]
    %v104 = vld [vmem:[#allocation2 + $0x178] sm:$0xff]
    %v105 = vld [vmem:[#allocation2 + $0x180] sm:$0xff]
    %v106 = vld [vmem:[#allocation2 + $0x188] sm:$0xff]
    %v107 = vld [vmem:[#allocation2 + $0x190] sm:$0xff]
    %v108 = vld [vmem:[#allocation2 + $0x198] sm:$0xff]
    %v109 = vld [vmem:[#allocation2 + $0x1a0] sm:$0xff]
    %v110 = vld [vmem:[#allocation2 + $0x1a8] sm:$0xff]
    %v111 = vld [vmem:[#allocation2 + $0x1b0] sm:$0xff]
    %v112 = vld [vmem:[#allocation2 + $0x1b8] sm:$0xff]
    %v113 = vld [vmem:[#allocation2 + $0x1c0] sm:$0xff]
    %v114 = vld [vmem:[#allocation2 + $0x1c8] sm:$0xff]
    %v115 = vld [vmem:[#allocation2 + $0x1d0] sm:$0xff]
    %v116 = vld [vmem:[#allocation2 + $0x1d8] sm:$0xff]
    %v117 = vld [vmem:[#allocation2 + $0x1e0] sm:$0xff]
    %v118 = vld [vmem:[#allocation2 + $0x1e8] sm:$0xff]
    %v119 = vld [vmem:[#allocation2 + $0x1f0] sm:$0xff]
    %v120 = vld [vmem:[#allocation2 + $0x1f8] sm:$0xff]
    %v121 = vld [vmem:[#allocation2 + $0x200] sm:$0xff]
    %v122 = vld [vmem:[#allocation2 + $0x208] sm:$0xff]
    %v123 = vld [vmem:[#allocation2 + $0x210] sm:$0xff]
    %v124 = vld [vmem:[#allocation2 + $0x218] sm:$0xff]
    %v125 = vld [vmem:[#allocation2 + $0x220] sm:$0xff]
    %v126 = vld [vmem:[#allocation2 + $0x228] sm:$0xff]
    %v127 = vld [vmem:[#allocation2 + $0x230] sm:$0xff]
    %v128 = vld [vmem:[#allocation2 + $0x238] sm:$0xff]
    %v129 = vld [vmem:[#allocation2 + $0x240] sm:$0xff]
    %v130 = vld [vmem:[#allocation2 + $0x248] sm:$0xff]
    %v131 = vld [vmem:[#allocation2 + $0x250] sm:$0xff]
    %v132 = vld [vmem:[#allocation2 + $0x258] sm:$0xff]
    %v133 = vld [vmem:[#allocation2 + $0x260] sm:$0xff]
    %v134 = vld [vmem:[#allocation2 + $0x268] sm:$0xff]
    %v135 = vld [vmem:[#allocation2 + $0x270] sm:$0xff]
    %v136 = vld [vmem:[#allocation2 + $0x278] sm:$0xff]
    %v137 = vld [vmem:[#allocation2 + $0x280] sm:$0xff]
    %v138 = vld [vmem:[#allocation2 + $0x288] sm:$0xff]
    %v139 = vld [vmem:[#allocation2 + $0x290] sm:$0xff]
    %v140 = vld [vmem:[#allocation2 + $0x298] sm:$0xff]
    %v141 = vld [vmem:[#allocation2 + $0x2a0] sm:$0xff]
    %v142 = vld [vmem:[#allocation2 + $0x2a8] sm:$0xff]
    %v143 = vld [vmem:[#allocation2 + $0x2b0] sm:$0xff]
    %v144 = vld [vmem:[#allocation2 + $0x2b8] sm:$0xff]
    %v145 = vld [vmem:[#allocation2 + $0x2c0] sm:$0xff]
    %v146 = vld [vmem:[#allocation2 + $0x2c8] sm:$0xff]
    %v147 = vld [vmem:[#allocation2 + $0x2d0] sm:$0xff]
    %v148 = vld [vmem:[#allocation2 + $0x2d8] sm:$0xff]
    %v149 = vld [vmem:[#allocation2 + $0x2e0] sm:$0xff]
    %v150 = vld [vmem:[#allocation2 + $0x2e8] sm:$0xff]
    %v151 = vld [vmem:[#allocation2 + $0x2f0] sm:$0xff]
    %v152 = vld [vmem:[#allocation2 + $0x2f8] sm:$0xff]
    %v153 = vld [vmem:[#allocation2 + $0x300] sm:$0xff]
    %v154 = vld [vmem:[#allocation2 + $0x308] sm:$0xff]
    %v155 = vld [vmem:[#allocation2 + $0x310] sm:$0xff]
    %v156 = vld [vmem:[#allocation2 + $0x318] sm:$0xff]
    %v157 = vld [vmem:[#allocation2 + $0x320] sm:$0xff]
    %v158 = vld [vmem:[#allocation2 + $0x328] sm:$0xff]
    %v159 = vld [vmem:[#allocation2 + $0x330] sm:$0xff]
    %v160 = vld [vmem:[#allocation2 + $0x338] sm:$0xff]
    %v161 = vld [vmem:[#allocation2 + $0x340] sm:$0xff]
    %v162 = vld [vmem:[#allocation2 + $0x348] sm:$0xff]
    %v163 = vld [vmem:[#allocation2 + $0x350] sm:$0xff]
    %v164 = vld [vmem:[#allocation2 + $0x358] sm:$0xff]
    %v165 = vld [vmem:[#allocation2 + $0x360] sm:$0xff]
    %v166 = vld [vmem:[#allocation2 + $0x368] sm:$0xff]
    %v167 = vld [vmem:[#allocation2 + $0x370] sm:$0xff]
    %v168 = vld [vmem:[#allocation2 + $0x378] sm:$0xff]
    %v169 = vld [vmem:[#allocation2 + $0x380] sm:$0xff]
    %v170 = vld [vmem:[#allocation2 + $0x388] sm:$0xff]
    %v171 = vld [vmem:[#allocation2 + $0x390] sm:$0xff]
    %v172 = vld [vmem:[#allocation2 + $0x398] sm:$0xff]
    %v173 = vld [vmem:[#allocation2 + $0x3a0] sm:$0xff]
    %v174 = vld [vmem:[#allocation2 + $0x3a8] sm:$0xff]
    %v175 = vld [vmem:[#allocation2 + $0x3b0] sm:$0xff]
    %v176 = vld [vmem:[#allocation2 + $0x3b8] sm:$0xff]
    %v177 = vld [vmem:[#allocation2 + $0x3c0] sm:$0xff]
    %v178 = vld [vmem:[#allocation2 + $0x3c8] sm:$0xff]
    %v179 = vld [vmem:[#allocation2 + $0x3d0] sm:$0xff]
    %v180 = vld [vmem:[#allocation2 + $0x3d8] sm:$0xff]
    %v181 = vld [vmem:[#allocation2 + $0x3e0] sm:$0xff]
    %v182 = vld [vmem:[#allocation2 + $0x3e8] sm:$0xff]
    %v183 = vld [vmem:[#allocation2 + $0x3f0] sm:$0xff]
    %v184 = vld [vmem:[#allocation2 + $0x3f8] sm:$0xff]
    %v185 = vld [vmem:[#allocation2 + $0x400] sm:$0xff]
    %v186 = vld [vmem:[#allocation2 + $0x408] sm:$0xff]
    %v187 = vld [vmem:[#allocation2 + $0x410] sm:$0xff]
    %v188 = vld [vmem:[#allocation2 + $0x418] sm:$0xff]
    %v189 = vld [vmem:[#allocation2 + $0x420] sm:$0xff]
    %v190 = vld [vmem:[#allocation2 + $0x428] sm:$0xff]
    %v191 = vld [vmem:[#allocation2 + $0x430] sm:$0xff]
    %v192 = vld [vmem:[#allocation2 + $0x438] sm:$0xff]
    %v193 = vld [vmem:[#allocation2 + $0x440] sm:$0xff]
    %v194 = vld [vmem:[#allocation2 + $0x448] sm:$0xff]
    %v195 = vld [vmem:[#allocation2 + $0x450] sm:$0xff]
    %v196 = vld [vmem:[#allocation2 + $0x458] sm:$0xff]
    %v197 = vld [vmem:[#allocation2 + $0x460] sm:$0xff]
    %v198 = vld [vmem:[#allocation2 + $0x468] sm:$0xff]
    %v199 = vld [vmem:[#allocation2 + $0x470] sm:$0xff]
    %v200 = vld [vmem:[#allocation2 + $0x478] sm:$0xff]
    %v201 = vld [vmem:[#allocation2 + $0x480] sm:$0xff]
    %v202 = vld [vmem:[#allocation2 + $0x488] sm:$0xff]
    %v203 = vld [vmem:[#allocation2 + $0x490] sm:$0xff]
    %v204 = vld [vmem:[#allocation2 + $0x498] sm:$0xff]
    %v205 = vld [vmem:[#allocation2 + $0x4a0] sm:$0xff]
    %v206 = vld [vmem:[#allocation2 + $0x4a8] sm:$0xff]
    %v207 = vld [vmem:[#allocation2 + $0x4b0] sm:$0xff]
    %v208 = vld [vmem:[#allocation2 + $0x4b8] sm:$0xff]
    %v209 = vld [vmem:[#allocation2 + $0x4c0] sm:$0xff]
    %v210 = vld [vmem:[#allocation2 + $0x4c8] sm:$0xff]
    %v211 = vld [vmem:[#allocation2 + $0x4d0] sm:$0xff]
    %v212 = vld [vmem:[#allocation2 + $0x4d8] sm:$0xff]
    %v213 = vld [vmem:[#allocation2 + $0x4e0] sm:$0xff]
    %v214 = vld [vmem:[#allocation2 + $0x4e8] sm:$0xff]
    %v215 = vld [vmem:[#allocation2 + $0x4f0] sm:$0xff]
    %v216 = vld [vmem:[#allocation2 + $0x4f8] sm:$0xff]
    %v217 = vld [vmem:[#allocation2 + $0x500] sm:$0xff]
    %v218 = vld [vmem:[#allocation2 + $0x508] sm:$0xff]
    %v219 = vld [vmem:[#allocation2 + $0x510] sm:$0xff]
    %v220 = vld [vmem:[#allocation2 + $0x518] sm:$0xff]
    %v221 = vld [vmem:[#allocation2 + $0x520] sm:$0xff]
    %v222 = vld [vmem:[#allocation2 + $0x528] sm:$0xff]
    %v223 = vld [vmem:[#allocation2 + $0x530] sm:$0xff]
    %v224 = vld [vmem:[#allocation2 + $0x538] sm:$0xff]
    %v225 = vld [vmem:[#allocation2 + $0x540] sm:$0xff]
    %v226 = vld [vmem:[#allocation2 + $0x548] sm:$0xff]
    %v227 = vld [vmem:[#allocation2 + $0x550] sm:$0xff]
    %v228 = vld [vmem:[#allocation2 + $0x558] sm:$0xff]
    %v229 = vld [vmem:[#allocation2 + $0x560] sm:$0xff]
    %v230 = vld [vmem:[#allocation2 + $0x568] sm:$0xff]
    %v231 = vld [vmem:[#allocation2 + $0x570] sm:$0xff]
    %v232 = vld [vmem:[#allocation2 + $0x578] sm:$0xff]
    %v233 = vld [vmem:[#allocation2 + $0x580] sm:$0xff]
    %v234 = vld [vmem:[#allocation2 + $0x588] sm:$0xff]
    %v235 = vld [vmem:[#allocation2 + $0x590] sm:$0xff]
    %v236 = vld [vmem:[#allocation2 + $0x598] sm:$0xff]
    %v237 = vld [vmem:[#allocation2 + $0x5a0] sm:$0xff]
    %v238 = vld [vmem:[#allocation2 + $0x5a8] sm:$0xff]
    %v239 = vld [vmem:[#allocation2 + $0x5b0] sm:$0xff]
    %v240 = vld [vmem:[#allocation2 + $0x5b8] sm:$0xff]
    %v241 = vld [vmem:[#allocation2 + $0x5c0] sm:$0xff]
    %v242 = vld [vmem:[#allocation2 + $0x5c8] sm:$0xff]
    %v243 = vld [vmem:[#allocation2 + $0x5d0] sm:$0xff]
    %v244 = vld [vmem:[#allocation2 + $0x5d8] sm:$0xff]
    %v245 = vld [vmem:[#allocation2 + $0x5e0] sm:$0xff]
    %v246 = vld [vmem:[#allocation2 + $0x5e8] sm:$0xff]
    %v247 = vld [vmem:[#allocation2 + $0x5f0] sm:$0xff]
    %v248 = vld [vmem:[#allocation2 + $0x5f8] sm:$0xff]
    %v249 = vld [vmem:[#allocation2 + $0x600] sm:$0xff]
    %v250 = vld [vmem:[#allocation2 + $0x608] sm:$0xff]
    %v251 = vld [vmem:[#allocation2 + $0x610] sm:$0xff]
    %v252 = vld [vmem:[#allocation2 + $0x618] sm:$0xff]
    %v253 = vld [vmem:[#allocation2 + $0x620] sm:$0xff]
    %v254 = vld [vmem:[#allocation2 + $0x628] sm:$0xff]
    %v255 = vld [vmem:[#allocation2 + $0x630] sm:$0xff]
    %v256 = vld [vmem:[#allocation2 + $0x638] sm:$0xff]
    %v257 = vld [vmem:[#allocation2 + $0x640] sm:$0xff]
    %v258 = vld [vmem:[#allocation2 + $0x648] sm:$0xff]
    %v259 = vld [vmem:[#allocation2 + $0x650] sm:$0xff]
    %v260 = vld [vmem:[#allocation2 + $0x658] sm:$0xff]
    %v261 = vld [vmem:[#allocation2 + $0x660] sm:$0xff]
    %v262 = vld [vmem:[#allocation2 + $0x668] sm:$0xff]
    %v263 = vld [vmem:[#allocation2 + $0x670] sm:$0xff]
    %v264 = vld [vmem:[#allocation2 + $0x678] sm:$0xff]
    %v265 = vld [vmem:[#allocation2 + $0x680] sm:$0xff]
    %v266 = vld [vmem:[#allocation2 + $0x688] sm:$0xff]
    %v267 = vld [vmem:[#allocation2 + $0x690] sm:$0xff]
    %v268 = vld [vmem:[#allocation2 + $0x698] sm:$0xff]
    %v269 = vld [vmem:[#allocation2 + $0x6a0] sm:$0xff]
    %v270 = vld [vmem:[#allocation2 + $0x6a8] sm:$0xff]
    %v271 = vld [vmem:[#allocation2 + $0x6b0] sm:$0xff]
    %v272 = vld [vmem:[#allocation2 + $0x6b8] sm:$0xff]
    %v273 = vld [vmem:[#allocation2 + $0x6c0] sm:$0xff]
    %v274 = vld [vmem:[#allocation2 + $0x6c8] sm:$0xff]
    %v275 = vld [vmem:[#allocation2 + $0x6d0] sm:$0xff]
    %v276 = vld [vmem:[#allocation2 + $0x6d8] sm:$0xff]
    %v277 = vld [vmem:[#allocation2 + $0x6e0] sm:$0xff]
    %v278 = vld [vmem:[#allocation2 + $0x6e8] sm:$0xff]
    %v279 = vld [vmem:[#allocation2 + $0x6f0] sm:$0xff]
    %v280 = vld [vmem:[#allocation2 + $0x6f8] sm:$0xff]
    %v281 = vld [vmem:[#allocation2 + $0x700] sm:$0xff]
    %v282 = vld [vmem:[#allocation2 + $0x708] sm:$0xff]
    %v283 = vld [vmem:[#allocation2 + $0x710] sm:$0xff]
    %v284 = vld [vmem:[#allocation2 + $0x718] sm:$0xff]
    %v285 = vld [vmem:[#allocation2 + $0x720] sm:$0xff]
    %v286 = vld [vmem:[#allocation2 + $0x728] sm:$0xff]
    %v287 = vld [vmem:[#allocation2 + $0x730] sm:$0xff]
    %v288 = vld [vmem:[#allocation2 + $0x738] sm:$0xff]
    %v289 = vld [vmem:[#allocation2 + $0x740] sm:$0xff]
    %v290 = vld [vmem:[#allocation2 + $0x748] sm:$0xff]
    %v291 = vld [vmem:[#allocation2 + $0x750] sm:$0xff]
    %v292 = vld [vmem:[#allocation2 + $0x758] sm:$0xff]
    %v293 = vld [vmem:[#allocation2 + $0x760] sm:$0xff]
    %v294 = vld [vmem:[#allocation2 + $0x768] sm:$0xff]
    %v295 = vld [vmem:[#allocation2 + $0x770] sm:$0xff]
    %v296 = vld [vmem:[#allocation2 + $0x778] sm:$0xff]
    %v297 = vld [vmem:[#allocation2 + $0x780] sm:$0xff]
    %v298 = vld [vmem:[#allocation2 + $0x788] sm:$0xff]
    %v299 = vld [vmem:[#allocation2 + $0x790] sm:$0xff]
    %v300 = vld [vmem:[#allocation2 + $0x798] sm:$0xff]
    %v301 = vld [vmem:[#allocation2 + $0x7a0] sm:$0xff]
    %v302 = vld [vmem:[#allocation2 + $0x7a8] sm:$0xff]
    %v303 = vld [vmem:[#allocation2 + $0x7b0] sm:$0xff]
    %v304 = vld [vmem:[#allocation2 + $0x7b8] sm:$0xff]
    %v305 = vld [vmem:[#allocation2 + $0x7c0] sm:$0xff]
    %v306 = vld [vmem:[#allocation2 + $0x7c8] sm:$0xff]
    %v307 = vld [vmem:[#allocation2 + $0x7d0] sm:$0xff]
    %v308 = vld [vmem:[#allocation2 + $0x7d8] sm:$0xff]
    %v309 = vld [vmem:[#allocation2 + $0x7e0] sm:$0xff]
    %v310 = vld [vmem:[#allocation2 + $0x7e8] sm:$0xff]
    %v311 = vld [vmem:[#allocation2 + $0x7f0] sm:$0xff]
    %v312 = vld [vmem:[#allocation2 + $0x7f8] sm:$0xff]
    %v314 = vcombine.high %v56, %v56
    %v316 = vunpack.c.l.s4 1966171168
    %v317 = vunpack.c.0.s8 %v316
    %v318 = vlaneseq
    %v319 = vshrl.u32 %v318, 7
    %v320 = vsub.s32 %v317, %v319
    %v321 = vrot.slane %v56, %v320
    %v323 = vunpack.c.l.s4 1966171168
    %v324 = vunpack.c.0.s8 %v323
    %v325 = vlaneseq
    %v326 = vshrl.u32 %v325, 7
    %v327 = vsub.s32 %v324, %v326
    %v328 = vrot.slane %v314, %v327
    %v329 = vcombine.high %v321, %v321
    %v330 = vcombine.high %v328, %v328
    %v332 = vunpack.c.l.s4 1966171168
    %v333 = vunpack.c.0.s8 %v332
    %v334 = vlaneseq
    %v335 = vshrl.u32 %v334, 7
    %v336 = vsub.s32 %v333, %v335
    %v337 = vrot.slane %v321, %v336
    %v339 = vunpack.c.l.s4 1966171168
    %v340 = vunpack.c.0.s8 %v339
    %v341 = vlaneseq
    %v342 = vshrl.u32 %v341, 7
    %v343 = vsub.s32 %v340, %v342
    %v344 = vrot.slane %v328, %v343
    %v346 = vunpack.c.l.s4 1966171168
    %v347 = vunpack.c.0.s8 %v346
    %v348 = vlaneseq
    %v349 = vshrl.u32 %v348, 7
    %v350 = vsub.s32 %v347, %v349
    %v351 = vrot.slane %v329, %v350
    %v353 = vunpack.c.l.s4 1966171168
    %v354 = vunpack.c.0.s8 %v353
    %v355 = vlaneseq
    %v356 = vshrl.u32 %v355, 7
    %v357 = vsub.s32 %v354, %v356
    %v358 = vrot.slane %v330, %v357
    %v359 = vcombine.high %v337, %v337
    %v360 = vcombine.high %v344, %v344
    %v361 = vcombine.high %v351, %v351
    %v362 = vcombine.high %v358, %v358
    %v627 = vunpack.c.l.b16 %v57
    %v628 = vunpack.c.h.b16 %v57
    %v629 = vunpack.c.l.b16 %v58
    %v630 = vunpack.c.h.b16 %v58
    %v631 = vunpack.c.l.b16 %v59
    %v632 = vunpack.c.h.b16 %v59
    %v633 = vunpack.c.l.b16 %v60
    %v634 = vunpack.c.h.b16 %v60
    %v635 = vunpack.c.l.b16 %v61
    %v636 = vunpack.c.h.b16 %v61
    %v637 = vunpack.c.l.b16 %v62
    %v638 = vunpack.c.h.b16 %v62
    %v639 = vunpack.c.l.b16 %v63
    %v640 = vunpack.c.h.b16 %v63
    %v641 = vunpack.c.l.b16 %v64
    %v642 = vunpack.c.h.b16 %v64
    %v643 = vunpack.c.l.b16 %v65
    %v644 = vunpack.c.h.b16 %v65
    %v645 = vunpack.c.l.b16 %v66
    %v646 = vunpack.c.h.b16 %v66
    %v647 = vunpack.c.l.b16 %v67
    %v648 = vunpack.c.h.b16 %v67
    %v649 = vunpack.c.l.b16 %v68
    %v650 = vunpack.c.h.b16 %v68
    %v651 = vunpack.c.l.b16 %v69
    %v652 = vunpack.c.h.b16 %v69
    %v653 = vunpack.c.l.b16 %v70
    %v654 = vunpack.c.h.b16 %v70
    %v655 = vunpack.c.l.b16 %v71
    %v656 = vunpack.c.h.b16 %v71
    %v657 = vunpack.c.l.b16 %v72
    %v658 = vunpack.c.h.b16 %v72
    %v659 = vunpack.c.l.b16 %v73
    %v660 = vunpack.c.h.b16 %v73
    %v661 = vunpack.c.l.b16 %v74
    %v662 = vunpack.c.h.b16 %v74
    %v663 = vunpack.c.l.b16 %v75
    %v664 = vunpack.c.h.b16 %v75
    %v665 = vunpack.c.l.b16 %v76
    %v666 = vunpack.c.h.b16 %v76
    %v667 = vunpack.c.l.b16 %v77
    %v668 = vunpack.c.h.b16 %v77
    %v669 = vunpack.c.l.b16 %v78
    %v670 = vunpack.c.h.b16 %v78
    %v671 = vunpack.c.l.b16 %v79
    %v672 = vunpack.c.h.b16 %v79
    %v673 = vunpack.c.l.b16 %v80
    %v674 = vunpack.c.h.b16 %v80
    %v675 = vunpack.c.l.b16 %v81
    %v676 = vunpack.c.h.b16 %v81
    %v677 = vunpack.c.l.b16 %v82
    %v678 = vunpack.c.h.b16 %v82
    %v679 = vunpack.c.l.b16 %v83
    %v680 = vunpack.c.h.b16 %v83
    %v681 = vunpack.c.l.b16 %v84
    %v682 = vunpack.c.h.b16 %v84
    %v683 = vunpack.c.l.b16 %v85
    %v684 = vunpack.c.h.b16 %v85
    %v685 = vunpack.c.l.b16 %v86
    %v686 = vunpack.c.h.b16 %v86
    %v687 = vunpack.c.l.b16 %v87
    %v688 = vunpack.c.h.b16 %v87
    %v689 = vunpack.c.l.b16 %v88
    %v690 = vunpack.c.h.b16 %v88
    %v691 = vunpack.c.l.b16 %v89
    %v692 = vunpack.c.h.b16 %v89
    %v693 = vunpack.c.l.b16 %v90
    %v694 = vunpack.c.h.b16 %v90
    %v695 = vunpack.c.l.b16 %v91
    %v696 = vunpack.c.h.b16 %v91
    %v697 = vunpack.c.l.b16 %v92
    %v698 = vunpack.c.h.b16 %v92
    %v699 = vunpack.c.l.b16 %v93
    %v700 = vunpack.c.h.b16 %v93
    %v701 = vunpack.c.l.b16 %v94
    %v702 = vunpack.c.h.b16 %v94
    %v703 = vunpack.c.l.b16 %v95
    %v704 = vunpack.c.h.b16 %v95
    %v705 = vunpack.c.l.b16 %v96
    %v706 = vunpack.c.h.b16 %v96
    %v707 = vunpack.c.l.b16 %v97
    %v708 = vunpack.c.h.b16 %v97
    %v709 = vunpack.c.l.b16 %v98
    %v710 = vunpack.c.h.b16 %v98
    %v711 = vunpack.c.l.b16 %v99
    %v712 = vunpack.c.h.b16 %v99
    %v713 = vunpack.c.l.b16 %v100
    %v714 = vunpack.c.h.b16 %v100
    %v715 = vunpack.c.l.b16 %v101
    %v716 = vunpack.c.h.b16 %v101
    %v717 = vunpack.c.l.b16 %v102
    %v718 = vunpack.c.h.b16 %v102
    %v719 = vunpack.c.l.b16 %v103
    %v720 = vunpack.c.h.b16 %v103
    %v721 = vunpack.c.l.b16 %v104
    %v722 = vunpack.c.h.b16 %v104
    %v723 = vunpack.c.l.b16 %v105
    %v724 = vunpack.c.h.b16 %v105
    %v725 = vunpack.c.l.b16 %v106
    %v726 = vunpack.c.h.b16 %v106
    %v727 = vunpack.c.l.b16 %v107
    %v728 = vunpack.c.h.b16 %v107
    %v729 = vunpack.c.l.b16 %v108
    %v730 = vunpack.c.h.b16 %v108
    %v731 = vunpack.c.l.b16 %v109
    %v732 = vunpack.c.h.b16 %v109
    %v733 = vunpack.c.l.b16 %v110
    %v734 = vunpack.c.h.b16 %v110
    %v735 = vunpack.c.l.b16 %v111
    %v736 = vunpack.c.h.b16 %v111
    %v737 = vunpack.c.l.b16 %v112
    %v738 = vunpack.c.h.b16 %v112
    %v739 = vunpack.c.l.b16 %v113
    %v740 = vunpack.c.h.b16 %v113
    %v741 = vunpack.c.l.b16 %v114
    %v742 = vunpack.c.h.b16 %v114
    %v743 = vunpack.c.l.b16 %v115
    %v744 = vunpack.c.h.b16 %v115
    %v745 = vunpack.c.l.b16 %v116
    %v746 = vunpack.c.h.b16 %v116
    %v747 = vunpack.c.l.b16 %v117
    %v748 = vunpack.c.h.b16 %v117
    %v749 = vunpack.c.l.b16 %v118
    %v750 = vunpack.c.h.b16 %v118
    %v751 = vunpack.c.l.b16 %v119
    %v752 = vunpack.c.h.b16 %v119
    %v753 = vunpack.c.l.b16 %v120
    %v754 = vunpack.c.h.b16 %v120
    %v755 = vunpack.c.l.b16 %v121
    %v756 = vunpack.c.h.b16 %v121
    %v757 = vunpack.c.l.b16 %v122
    %v758 = vunpack.c.h.b16 %v122
    %v759 = vunpack.c.l.b16 %v123
    %v760 = vunpack.c.h.b16 %v123
    %v761 = vunpack.c.l.b16 %v124
    %v762 = vunpack.c.h.b16 %v124
    %v763 = vunpack.c.l.b16 %v125
    %v764 = vunpack.c.h.b16 %v125
    %v765 = vunpack.c.l.b16 %v126
    %v766 = vunpack.c.h.b16 %v126
    %v767 = vunpack.c.l.b16 %v127
    %v768 = vunpack.c.h.b16 %v127
    %v769 = vunpack.c.l.b16 %v128
    %v770 = vunpack.c.h.b16 %v128
    %v771 = vunpack.c.l.b16 %v129
    %v772 = vunpack.c.h.b16 %v129
    %v773 = vunpack.c.l.b16 %v130
    %v774 = vunpack.c.h.b16 %v130
    %v775 = vunpack.c.l.b16 %v131
    %v776 = vunpack.c.h.b16 %v131
    %v777 = vunpack.c.l.b16 %v132
    %v778 = vunpack.c.h.b16 %v132
    %v779 = vunpack.c.l.b16 %v133
    %v780 = vunpack.c.h.b16 %v133
    %v781 = vunpack.c.l.b16 %v134
    %v782 = vunpack.c.h.b16 %v134
    %v783 = vunpack.c.l.b16 %v135
    %v784 = vunpack.c.h.b16 %v135
    %v785 = vunpack.c.l.b16 %v136
    %v786 = vunpack.c.h.b16 %v136
    %v787 = vunpack.c.l.b16 %v137
    %v788 = vunpack.c.h.b16 %v137
    %v789 = vunpack.c.l.b16 %v138
    %v790 = vunpack.c.h.b16 %v138
    %v791 = vunpack.c.l.b16 %v139
    %v792 = vunpack.c.h.b16 %v139
    %v793 = vunpack.c.l.b16 %v140
    %v794 = vunpack.c.h.b16 %v140
    %v795 = vunpack.c.l.b16 %v141
    %v796 = vunpack.c.h.b16 %v141
    %v797 = vunpack.c.l.b16 %v142
    %v798 = vunpack.c.h.b16 %v142
    %v799 = vunpack.c.l.b16 %v143
    %v800 = vunpack.c.h.b16 %v143
    %v801 = vunpack.c.l.b16 %v144
    %v802 = vunpack.c.h.b16 %v144
    %v803 = vunpack.c.l.b16 %v145
    %v804 = vunpack.c.h.b16 %v145
    %v805 = vunpack.c.l.b16 %v146
    %v806 = vunpack.c.h.b16 %v146
    %v807 = vunpack.c.l.b16 %v147
    %v808 = vunpack.c.h.b16 %v147
    %v809 = vunpack.c.l.b16 %v148
    %v810 = vunpack.c.h.b16 %v148
    %v811 = vunpack.c.l.b16 %v149
    %v812 = vunpack.c.h.b16 %v149
    %v813 = vunpack.c.l.b16 %v150
    %v814 = vunpack.c.h.b16 %v150
    %v815 = vunpack.c.l.b16 %v151
    %v816 = vunpack.c.h.b16 %v151
    %v817 = vunpack.c.l.b16 %v152
    %v818 = vunpack.c.h.b16 %v152
    %v819 = vunpack.c.l.b16 %v153
    %v820 = vunpack.c.h.b16 %v153
    %v821 = vunpack.c.l.b16 %v154
    %v822 = vunpack.c.h.b16 %v154
    %v823 = vunpack.c.l.b16 %v155
    %v824 = vunpack.c.h.b16 %v155
    %v825 = vunpack.c.l.b16 %v156
    %v826 = vunpack.c.h.b16 %v156
    %v827 = vunpack.c.l.b16 %v157
    %v828 = vunpack.c.h.b16 %v157
    %v829 = vunpack.c.l.b16 %v158
    %v830 = vunpack.c.h.b16 %v158
    %v831 = vunpack.c.l.b16 %v159
    %v832 = vunpack.c.h.b16 %v159
    %v833 = vunpack.c.l.b16 %v160
    %v834 = vunpack.c.h.b16 %v160
    %v835 = vunpack.c.l.b16 %v161
    %v836 = vunpack.c.h.b16 %v161
    %v837 = vunpack.c.l.b16 %v162
    %v838 = vunpack.c.h.b16 %v162
    %v839 = vunpack.c.l.b16 %v163
    %v840 = vunpack.c.h.b16 %v163
    %v841 = vunpack.c.l.b16 %v164
    %v842 = vunpack.c.h.b16 %v164
    %v843 = vunpack.c.l.b16 %v165
    %v844 = vunpack.c.h.b16 %v165
    %v845 = vunpack.c.l.b16 %v166
    %v846 = vunpack.c.h.b16 %v166
    %v847 = vunpack.c.l.b16 %v167
    %v848 = vunpack.c.h.b16 %v167
    %v849 = vunpack.c.l.b16 %v168
    %v850 = vunpack.c.h.b16 %v168
    %v851 = vunpack.c.l.b16 %v169
    %v852 = vunpack.c.h.b16 %v169
    %v853 = vunpack.c.l.b16 %v170
    %v854 = vunpack.c.h.b16 %v170
    %v855 = vunpack.c.l.b16 %v171
    %v856 = vunpack.c.h.b16 %v171
    %v857 = vunpack.c.l.b16 %v172
    %v858 = vunpack.c.h.b16 %v172
    %v859 = vunpack.c.l.b16 %v173
    %v860 = vunpack.c.h.b16 %v173
    %v861 = vunpack.c.l.b16 %v174
    %v862 = vunpack.c.h.b16 %v174
    %v863 = vunpack.c.l.b16 %v175
    %v864 = vunpack.c.h.b16 %v175
    %v865 = vunpack.c.l.b16 %v176
    %v866 = vunpack.c.h.b16 %v176
    %v867 = vunpack.c.l.b16 %v177
    %v868 = vunpack.c.h.b16 %v177
    %v869 = vunpack.c.l.b16 %v178
    %v870 = vunpack.c.h.b16 %v178
    %v871 = vunpack.c.l.b16 %v179
    %v872 = vunpack.c.h.b16 %v179
    %v873 = vunpack.c.l.b16 %v180
    %v874 = vunpack.c.h.b16 %v180
    %v875 = vunpack.c.l.b16 %v181
    %v876 = vunpack.c.h.b16 %v181
    %v877 = vunpack.c.l.b16 %v182
    %v878 = vunpack.c.h.b16 %v182
    %v879 = vunpack.c.l.b16 %v183
    %v880 = vunpack.c.h.b16 %v183
    %v881 = vunpack.c.l.b16 %v184
    %v882 = vunpack.c.h.b16 %v184
    %v883 = vunpack.c.l.b16 %v185
    %v884 = vunpack.c.h.b16 %v185
    %v885 = vunpack.c.l.b16 %v186
    %v886 = vunpack.c.h.b16 %v186
    %v887 = vunpack.c.l.b16 %v187
    %v888 = vunpack.c.h.b16 %v187
    %v889 = vunpack.c.l.b16 %v188
    %v890 = vunpack.c.h.b16 %v188
    %v891 = vunpack.c.l.b16 %v189
    %v892 = vunpack.c.h.b16 %v189
    %v893 = vunpack.c.l.b16 %v190
    %v894 = vunpack.c.h.b16 %v190
    %v895 = vunpack.c.l.b16 %v191
    %v896 = vunpack.c.h.b16 %v191
    %v897 = vunpack.c.l.b16 %v192
    %v898 = vunpack.c.h.b16 %v192
    %v899 = vunpack.c.l.b16 %v193
    %v900 = vunpack.c.h.b16 %v193
    %v901 = vunpack.c.l.b16 %v194
    %v902 = vunpack.c.h.b16 %v194
    %v903 = vunpack.c.l.b16 %v195
    %v904 = vunpack.c.h.b16 %v195
    %v905 = vunpack.c.l.b16 %v196
    %v906 = vunpack.c.h.b16 %v196
    %v907 = vunpack.c.l.b16 %v197
    %v908 = vunpack.c.h.b16 %v197
    %v909 = vunpack.c.l.b16 %v198
    %v910 = vunpack.c.h.b16 %v198
    %v911 = vunpack.c.l.b16 %v199
    %v912 = vunpack.c.h.b16 %v199
    %v913 = vunpack.c.l.b16 %v200
    %v914 = vunpack.c.h.b16 %v200
    %v915 = vunpack.c.l.b16 %v201
    %v916 = vunpack.c.h.b16 %v201
    %v917 = vunpack.c.l.b16 %v202
    %v918 = vunpack.c.h.b16 %v202
    %v919 = vunpack.c.l.b16 %v203
    %v920 = vunpack.c.h.b16 %v203
    %v921 = vunpack.c.l.b16 %v204
    %v922 = vunpack.c.h.b16 %v204
    %v923 = vunpack.c.l.b16 %v205
    %v924 = vunpack.c.h.b16 %v205
    %v925 = vunpack.c.l.b16 %v206
    %v926 = vunpack.c.h.b16 %v206
    %v927 = vunpack.c.l.b16 %v207
    %v928 = vunpack.c.h.b16 %v207
    %v929 = vunpack.c.l.b16 %v208
    %v930 = vunpack.c.h.b16 %v208
    %v931 = vunpack.c.l.b16 %v209
    %v932 = vunpack.c.h.b16 %v209
    %v933 = vunpack.c.l.b16 %v210
    %v934 = vunpack.c.h.b16 %v210
    %v935 = vunpack.c.l.b16 %v211
    %v936 = vunpack.c.h.b16 %v211
    %v937 = vunpack.c.l.b16 %v212
    %v938 = vunpack.c.h.b16 %v212
    %v939 = vunpack.c.l.b16 %v213
    %v940 = vunpack.c.h.b16 %v213
    %v941 = vunpack.c.l.b16 %v214
    %v942 = vunpack.c.h.b16 %v214
    %v943 = vunpack.c.l.b16 %v215
    %v944 = vunpack.c.h.b16 %v215
    %v945 = vunpack.c.l.b16 %v216
    %v946 = vunpack.c.h.b16 %v216
    %v947 = vunpack.c.l.b16 %v217
    %v948 = vunpack.c.h.b16 %v217
    %v949 = vunpack.c.l.b16 %v218
    %v950 = vunpack.c.h.b16 %v218
    %v951 = vunpack.c.l.b16 %v219
    %v952 = vunpack.c.h.b16 %v219
    %v953 = vunpack.c.l.b16 %v220
    %v954 = vunpack.c.h.b16 %v220
    %v955 = vunpack.c.l.b16 %v221
    %v956 = vunpack.c.h.b16 %v221
    %v957 = vunpack.c.l.b16 %v222
    %v958 = vunpack.c.h.b16 %v222
    %v959 = vunpack.c.l.b16 %v223
    %v960 = vunpack.c.h.b16 %v223
    %v961 = vunpack.c.l.b16 %v224
    %v962 = vunpack.c.h.b16 %v224
    %v963 = vunpack.c.l.b16 %v225
    %v964 = vunpack.c.h.b16 %v225
    %v965 = vunpack.c.l.b16 %v226
    %v966 = vunpack.c.h.b16 %v226
    %v967 = vunpack.c.l.b16 %v227
    %v968 = vunpack.c.h.b16 %v227
    %v969 = vunpack.c.l.b16 %v228
    %v970 = vunpack.c.h.b16 %v228
    %v971 = vunpack.c.l.b16 %v229
    %v972 = vunpack.c.h.b16 %v229
    %v973 = vunpack.c.l.b16 %v230
    %v974 = vunpack.c.h.b16 %v230
    %v975 = vunpack.c.l.b16 %v231
    %v976 = vunpack.c.h.b16 %v231
    %v977 = vunpack.c.l.b16 %v232
    %v978 = vunpack.c.h.b16 %v232
    %v979 = vunpack.c.l.b16 %v233
    %v980 = vunpack.c.h.b16 %v233
    %v981 = vunpack.c.l.b16 %v234
    %v982 = vunpack.c.h.b16 %v234
    %v983 = vunpack.c.l.b16 %v235
    %v984 = vunpack.c.h.b16 %v235
    %v985 = vunpack.c.l.b16 %v236
    %v986 = vunpack.c.h.b16 %v236
    %v987 = vunpack.c.l.b16 %v237
    %v988 = vunpack.c.h.b16 %v237
    %v989 = vunpack.c.l.b16 %v238
    %v990 = vunpack.c.h.b16 %v238
    %v991 = vunpack.c.l.b16 %v239
    %v992 = vunpack.c.h.b16 %v239
    %v993 = vunpack.c.l.b16 %v240
    %v994 = vunpack.c.h.b16 %v240
    %v995 = vunpack.c.l.b16 %v241
    %v996 = vunpack.c.h.b16 %v241
    %v997 = vunpack.c.l.b16 %v242
    %v998 = vunpack.c.h.b16 %v242
    %v999 = vunpack.c.l.b16 %v243
    %v1000 = vunpack.c.h.b16 %v243
    %v1001 = vunpack.c.l.b16 %v244
    %v1002 = vunpack.c.h.b16 %v244
    %v1003 = vunpack.c.l.b16 %v245
    %v1004 = vunpack.c.h.b16 %v245
    %v1005 = vunpack.c.l.b16 %v246
    %v1006 = vunpack.c.h.b16 %v246
    %v1007 = vunpack.c.l.b16 %v247
    %v1008 = vunpack.c.h.b16 %v247
    %v1009 = vunpack.c.l.b16 %v248
    %v1010 = vunpack.c.h.b16 %v248
    %v1011 = vunpack.c.l.b16 %v249
    %v1012 = vunpack.c.h.b16 %v249
    %v1013 = vunpack.c.l.b16 %v250
    %v1014 = vunpack.c.h.b16 %v250
    %v1015 = vunpack.c.l.b16 %v251
    %v1016 = vunpack.c.h.b16 %v251
    %v1017 = vunpack.c.l.b16 %v252
    %v1018 = vunpack.c.h.b16 %v252
    %v1019 = vunpack.c.l.b16 %v253
    %v1020 = vunpack.c.h.b16 %v253
    %v1021 = vunpack.c.l.b16 %v254
    %v1022 = vunpack.c.h.b16 %v254
    %v1023 = vunpack.c.l.b16 %v255
    %v1024 = vunpack.c.h.b16 %v255
    %v1025 = vunpack.c.l.b16 %v256
    %v1026 = vunpack.c.h.b16 %v256
    %v1027 = vunpack.c.l.b16 %v257
    %v1028 = vunpack.c.h.b16 %v257
    %v1029 = vunpack.c.l.b16 %v258
    %v1030 = vunpack.c.h.b16 %v258
    %v1031 = vunpack.c.l.b16 %v259
    %v1032 = vunpack.c.h.b16 %v259
    %v1033 = vunpack.c.l.b16 %v260
    %v1034 = vunpack.c.h.b16 %v260
    %v1035 = vunpack.c.l.b16 %v261
    %v1036 = vunpack.c.h.b16 %v261
    %v1037 = vunpack.c.l.b16 %v262
    %v1038 = vunpack.c.h.b16 %v262
    %v1039 = vunpack.c.l.b16 %v263
    %v1040 = vunpack.c.h.b16 %v263
    %v1041 = vunpack.c.l.b16 %v264
    %v1042 = vunpack.c.h.b16 %v264
    %v1043 = vunpack.c.l.b16 %v265
    %v1044 = vunpack.c.h.b16 %v265
    %v1045 = vunpack.c.l.b16 %v266
    %v1046 = vunpack.c.h.b16 %v266
    %v1047 = vunpack.c.l.b16 %v267
    %v1048 = vunpack.c.h.b16 %v267
    %v1049 = vunpack.c.l.b16 %v268
    %v1050 = vunpack.c.h.b16 %v268
    %v1051 = vunpack.c.l.b16 %v269
    %v1052 = vunpack.c.h.b16 %v269
    %v1053 = vunpack.c.l.b16 %v270
    %v1054 = vunpack.c.h.b16 %v270
    %v1055 = vunpack.c.l.b16 %v271
    %v1056 = vunpack.c.h.b16 %v271
    %v1057 = vunpack.c.l.b16 %v272
    %v1058 = vunpack.c.h.b16 %v272
    %v1059 = vunpack.c.l.b16 %v273
    %v1060 = vunpack.c.h.b16 %v273
    %v1061 = vunpack.c.l.b16 %v274
    %v1062 = vunpack.c.h.b16 %v274
    %v1063 = vunpack.c.l.b16 %v275
    %v1064 = vunpack.c.h.b16 %v275
    %v1065 = vunpack.c.l.b16 %v276
    %v1066 = vunpack.c.h.b16 %v276
    %v1067 = vunpack.c.l.b16 %v277
    %v1068 = vunpack.c.h.b16 %v277
    %v1069 = vunpack.c.l.b16 %v278
    %v1070 = vunpack.c.h.b16 %v278
    %v1071 = vunpack.c.l.b16 %v279
    %v1072 = vunpack.c.h.b16 %v279
    %v1073 = vunpack.c.l.b16 %v280
    %v1074 = vunpack.c.h.b16 %v280
    %v1075 = vunpack.c.l.b16 %v281
    %v1076 = vunpack.c.h.b16 %v281
    %v1077 = vunpack.c.l.b16 %v282
    %v1078 = vunpack.c.h.b16 %v282
    %v1079 = vunpack.c.l.b16 %v283
    %v1080 = vunpack.c.h.b16 %v283
    %v1081 = vunpack.c.l.b16 %v284
    %v1082 = vunpack.c.h.b16 %v284
    %v1083 = vunpack.c.l.b16 %v285
    %v1084 = vunpack.c.h.b16 %v285
    %v1085 = vunpack.c.l.b16 %v286
    %v1086 = vunpack.c.h.b16 %v286
    %v1087 = vunpack.c.l.b16 %v287
    %v1088 = vunpack.c.h.b16 %v287
    %v1089 = vunpack.c.l.b16 %v288
    %v1090 = vunpack.c.h.b16 %v288
    %v1091 = vunpack.c.l.b16 %v289
    %v1092 = vunpack.c.h.b16 %v289
    %v1093 = vunpack.c.l.b16 %v290
    %v1094 = vunpack.c.h.b16 %v290
    %v1095 = vunpack.c.l.b16 %v291
    %v1096 = vunpack.c.h.b16 %v291
    %v1097 = vunpack.c.l.b16 %v292
    %v1098 = vunpack.c.h.b16 %v292
    %v1099 = vunpack.c.l.b16 %v293
    %v1100 = vunpack.c.h.b16 %v293
    %v1101 = vunpack.c.l.b16 %v294
    %v1102 = vunpack.c.h.b16 %v294
    %v1103 = vunpack.c.l.b16 %v295
    %v1104 = vunpack.c.h.b16 %v295
    %v1105 = vunpack.c.l.b16 %v296
    %v1106 = vunpack.c.h.b16 %v296
    %v1107 = vunpack.c.l.b16 %v297
    %v1108 = vunpack.c.h.b16 %v297
    %v1109 = vunpack.c.l.b16 %v298
    %v1110 = vunpack.c.h.b16 %v298
    %v1111 = vunpack.c.l.b16 %v299
    %v1112 = vunpack.c.h.b16 %v299
    %v1113 = vunpack.c.l.b16 %v300
    %v1114 = vunpack.c.h.b16 %v300
    %v1115 = vunpack.c.l.b16 %v301
    %v1116 = vunpack.c.h.b16 %v301
    %v1117 = vunpack.c.l.b16 %v302
    %v1118 = vunpack.c.h.b16 %v302
    %v1119 = vunpack.c.l.b16 %v303
    %v1120 = vunpack.c.h.b16 %v303
    %v1121 = vunpack.c.l.b16 %v304
    %v1122 = vunpack.c.h.b16 %v304
    %v1123 = vunpack.c.l.b16 %v305
    %v1124 = vunpack.c.h.b16 %v305
    %v1125 = vunpack.c.l.b16 %v306
    %v1126 = vunpack.c.h.b16 %v306
    %v1127 = vunpack.c.l.b16 %v307
    %v1128 = vunpack.c.h.b16 %v307
    %v1129 = vunpack.c.l.b16 %v308
    %v1130 = vunpack.c.h.b16 %v308
    %v1131 = vunpack.c.l.b16 %v309
    %v1132 = vunpack.c.h.b16 %v309
    %v1133 = vunpack.c.l.b16 %v310
    %v1134 = vunpack.c.h.b16 %v310
    %v1135 = vunpack.c.l.b16 %v311
    %v1136 = vunpack.c.h.b16 %v311
    %v1137 = vunpack.c.l.b16 %v312
    %v1138 = vunpack.c.h.b16 %v312
    %v1139 = vpack.c.b16 %v631, %v627
    %v1140 = vpack.c.b16 %v632, %v628
    %v1141 = vpack.c.b16 %v633, %v629
    %v1142 = vpack.c.b16 %v634, %v630
    %v1143 = vpack.c.b16 %v639, %v635
    %v1144 = vpack.c.b16 %v640, %v636
    %v1145 = vpack.c.b16 %v641, %v637
    %v1146 = vpack.c.b16 %v642, %v638
    %v1147 = vpack.c.b16 %v647, %v643
    %v1148 = vpack.c.b16 %v648, %v644
    %v1149 = vpack.c.b16 %v649, %v645
    %v1150 = vpack.c.b16 %v650, %v646
    %v1151 = vpack.c.b16 %v655, %v651
    %v1152 = vpack.c.b16 %v656, %v652
    %v1153 = vpack.c.b16 %v657, %v653
    %v1154 = vpack.c.b16 %v658, %v654
    %v1155 = vpack.c.b16 %v663, %v659
    %v1156 = vpack.c.b16 %v664, %v660
    %v1157 = vpack.c.b16 %v665, %v661
    %v1158 = vpack.c.b16 %v666, %v662
    %v1159 = vpack.c.b16 %v671, %v667
    %v1160 = vpack.c.b16 %v672, %v668
    %v1161 = vpack.c.b16 %v673, %v669
    %v1162 = vpack.c.b16 %v674, %v670
    %v1163 = vpack.c.b16 %v679, %v675
    %v1164 = vpack.c.b16 %v680, %v676
    %v1165 = vpack.c.b16 %v681, %v677
    %v1166 = vpack.c.b16 %v682, %v678
    %v1167 = vpack.c.b16 %v687, %v683
    %v1168 = vpack.c.b16 %v688, %v684
    %v1169 = vpack.c.b16 %v689, %v685
    %v1170 = vpack.c.b16 %v690, %v686
    %v1171 = vpack.c.b16 %v695, %v691
    %v1172 = vpack.c.b16 %v696, %v692
    %v1173 = vpack.c.b16 %v697, %v693
    %v1174 = vpack.c.b16 %v698, %v694
    %v1175 = vpack.c.b16 %v703, %v699
    %v1176 = vpack.c.b16 %v704, %v700
    %v1177 = vpack.c.b16 %v705, %v701
    %v1178 = vpack.c.b16 %v706, %v702
    %v1179 = vpack.c.b16 %v711, %v707
    %v1180 = vpack.c.b16 %v712, %v708
    %v1181 = vpack.c.b16 %v713, %v709
    %v1182 = vpack.c.b16 %v714, %v710
    %v1183 = vpack.c.b16 %v719, %v715
    %v1184 = vpack.c.b16 %v720, %v716
    %v1185 = vpack.c.b16 %v721, %v717
    %v1186 = vpack.c.b16 %v722, %v718
    %v1187 = vpack.c.b16 %v727, %v723
    %v1188 = vpack.c.b16 %v728, %v724
    %v1189 = vpack.c.b16 %v729, %v725
    %v1190 = vpack.c.b16 %v730, %v726
    %v1191 = vpack.c.b16 %v735, %v731
    %v1192 = vpack.c.b16 %v736, %v732
    %v1193 = vpack.c.b16 %v737, %v733
    %v1194 = vpack.c.b16 %v738, %v734
    %v1195 = vpack.c.b16 %v743, %v739
    %v1196 = vpack.c.b16 %v744, %v740
    %v1197 = vpack.c.b16 %v745, %v741
    %v1198 = vpack.c.b16 %v746, %v742
    %v1199 = vpack.c.b16 %v751, %v747
    %v1200 = vpack.c.b16 %v752, %v748
    %v1201 = vpack.c.b16 %v753, %v749
    %v1202 = vpack.c.b16 %v754, %v750
    %v1203 = vpack.c.b16 %v759, %v755
    %v1204 = vpack.c.b16 %v760, %v756
    %v1205 = vpack.c.b16 %v761, %v757
    %v1206 = vpack.c.b16 %v762, %v758
    %v1207 = vpack.c.b16 %v767, %v763
    %v1208 = vpack.c.b16 %v768, %v764
    %v1209 = vpack.c.b16 %v769, %v765
    %v1210 = vpack.c.b16 %v770, %v766
    %v1211 = vpack.c.b16 %v775, %v771
    %v1212 = vpack.c.b16 %v776, %v772
    %v1213 = vpack.c.b16 %v777, %v773
    %v1214 = vpack.c.b16 %v778, %v774
    %v1215 = vpack.c.b16 %v783, %v779
    %v1216 = vpack.c.b16 %v784, %v780
    %v1217 = vpack.c.b16 %v785, %v781
    %v1218 = vpack.c.b16 %v786, %v782
    %v1219 = vpack.c.b16 %v791, %v787
    %v1220 = vpack.c.b16 %v792, %v788
    %v1221 = vpack.c.b16 %v793, %v789
    %v1222 = vpack.c.b16 %v794, %v790
    %v1223 = vpack.c.b16 %v799, %v795
    %v1224 = vpack.c.b16 %v800, %v796
    %v1225 = vpack.c.b16 %v801, %v797
    %v1226 = vpack.c.b16 %v802, %v798
    %v1227 = vpack.c.b16 %v807, %v803
    %v1228 = vpack.c.b16 %v808, %v804
    %v1229 = vpack.c.b16 %v809, %v805
    %v1230 = vpack.c.b16 %v810, %v806
    %v1231 = vpack.c.b16 %v815, %v811
    %v1232 = vpack.c.b16 %v816, %v812
    %v1233 = vpack.c.b16 %v817, %v813
    %v1234 = vpack.c.b16 %v818, %v814
    %v1235 = vpack.c.b16 %v823, %v819
    %v1236 = vpack.c.b16 %v824, %v820
    %v1237 = vpack.c.b16 %v825, %v821
    %v1238 = vpack.c.b16 %v826, %v822
    %v1239 = vpack.c.b16 %v831, %v827
    %v1240 = vpack.c.b16 %v832, %v828
    %v1241 = vpack.c.b16 %v833, %v829
    %v1242 = vpack.c.b16 %v834, %v830
    %v1243 = vpack.c.b16 %v839, %v835
    %v1244 = vpack.c.b16 %v840, %v836
    %v1245 = vpack.c.b16 %v841, %v837
    %v1246 = vpack.c.b16 %v842, %v838
    %v1247 = vpack.c.b16 %v847, %v843
    %v1248 = vpack.c.b16 %v848, %v844
    %v1249 = vpack.c.b16 %v849, %v845
    %v1250 = vpack.c.b16 %v850, %v846
    %v1251 = vpack.c.b16 %v855, %v851
    %v1252 = vpack.c.b16 %v856, %v852
    %v1253 = vpack.c.b16 %v857, %v853
    %v1254 = vpack.c.b16 %v858, %v854
    %v1255 = vpack.c.b16 %v863, %v859
    %v1256 = vpack.c.b16 %v864, %v860
    %v1257 = vpack.c.b16 %v865, %v861
    %v1258 = vpack.c.b16 %v866, %v862
    %v1259 = vpack.c.b16 %v871, %v867
    %v1260 = vpack.c.b16 %v872, %v868
    %v1261 = vpack.c.b16 %v873, %v869
    %v1262 = vpack.c.b16 %v874, %v870
    %v1263 = vpack.c.b16 %v879, %v875
    %v1264 = vpack.c.b16 %v880, %v876
    %v1265 = vpack.c.b16 %v881, %v877
    %v1266 = vpack.c.b16 %v882, %v878
    %v1267 = vpack.c.b16 %v887, %v883
    %v1268 = vpack.c.b16 %v888, %v884
    %v1269 = vpack.c.b16 %v889, %v885
    %v1270 = vpack.c.b16 %v890, %v886
    %v1271 = vpack.c.b16 %v895, %v891
    %v1272 = vpack.c.b16 %v896, %v892
    %v1273 = vpack.c.b16 %v897, %v893
    %v1274 = vpack.c.b16 %v898, %v894
    %v1275 = vpack.c.b16 %v903, %v899
    %v1276 = vpack.c.b16 %v904, %v900
    %v1277 = vpack.c.b16 %v905, %v901
    %v1278 = vpack.c.b16 %v906, %v902
    %v1279 = vpack.c.b16 %v911, %v907
    %v1280 = vpack.c.b16 %v912, %v908
    %v1281 = vpack.c.b16 %v913, %v909
    %v1282 = vpack.c.b16 %v914, %v910
    %v1283 = vpack.c.b16 %v919, %v915
    %v1284 = vpack.c.b16 %v920, %v916
    %v1285 = vpack.c.b16 %v921, %v917
    %v1286 = vpack.c.b16 %v922, %v918
    %v1287 = vpack.c.b16 %v927, %v923
    %v1288 = vpack.c.b16 %v928, %v924
    %v1289 = vpack.c.b16 %v929, %v925
    %v1290 = vpack.c.b16 %v930, %v926
    %v1291 = vpack.c.b16 %v935, %v931
    %v1292 = vpack.c.b16 %v936, %v932
    %v1293 = vpack.c.b16 %v937, %v933
    %v1294 = vpack.c.b16 %v938, %v934
    %v1295 = vpack.c.b16 %v943, %v939
    %v1296 = vpack.c.b16 %v944, %v940
    %v1297 = vpack.c.b16 %v945, %v941
    %v1298 = vpack.c.b16 %v946, %v942
    %v1299 = vpack.c.b16 %v951, %v947
    %v1300 = vpack.c.b16 %v952, %v948
    %v1301 = vpack.c.b16 %v953, %v949
    %v1302 = vpack.c.b16 %v954, %v950
    %v1303 = vpack.c.b16 %v959, %v955
    %v1304 = vpack.c.b16 %v960, %v956
    %v1305 = vpack.c.b16 %v961, %v957
    %v1306 = vpack.c.b16 %v962, %v958
    %v1307 = vpack.c.b16 %v967, %v963
    %v1308 = vpack.c.b16 %v968, %v964
    %v1309 = vpack.c.b16 %v969, %v965
    %v1310 = vpack.c.b16 %v970, %v966
    %v1311 = vpack.c.b16 %v975, %v971
    %v1312 = vpack.c.b16 %v976, %v972
    %v1313 = vpack.c.b16 %v977, %v973
    %v1314 = vpack.c.b16 %v978, %v974
    %v1315 = vpack.c.b16 %v983, %v979
    %v1316 = vpack.c.b16 %v984, %v980
    %v1317 = vpack.c.b16 %v985, %v981
    %v1318 = vpack.c.b16 %v986, %v982
    %v1319 = vpack.c.b16 %v991, %v987
    %v1320 = vpack.c.b16 %v992, %v988
    %v1321 = vpack.c.b16 %v993, %v989
    %v1322 = vpack.c.b16 %v994, %v990
    %v1323 = vpack.c.b16 %v999, %v995
    %v1324 = vpack.c.b16 %v1000, %v996
    %v1325 = vpack.c.b16 %v1001, %v997
    %v1326 = vpack.c.b16 %v1002, %v998
    %v1327 = vpack.c.b16 %v1007, %v1003
    %v1328 = vpack.c.b16 %v1008, %v1004
    %v1329 = vpack.c.b16 %v1009, %v1005
    %v1330 = vpack.c.b16 %v1010, %v1006
    %v1331 = vpack.c.b16 %v1015, %v1011
    %v1332 = vpack.c.b16 %v1016, %v1012
    %v1333 = vpack.c.b16 %v1017, %v1013
    %v1334 = vpack.c.b16 %v1018, %v1014
    %v1335 = vpack.c.b16 %v1023, %v1019
    %v1336 = vpack.c.b16 %v1024, %v1020
    %v1337 = vpack.c.b16 %v1025, %v1021
    %v1338 = vpack.c.b16 %v1026, %v1022
    %v1339 = vpack.c.b16 %v1031, %v1027
    %v1340 = vpack.c.b16 %v1032, %v1028
    %v1341 = vpack.c.b16 %v1033, %v1029
    %v1342 = vpack.c.b16 %v1034, %v1030
    %v1343 = vpack.c.b16 %v1039, %v1035
    %v1344 = vpack.c.b16 %v1040, %v1036
    %v1345 = vpack.c.b16 %v1041, %v1037
    %v1346 = vpack.c.b16 %v1042, %v1038
    %v1347 = vpack.c.b16 %v1047, %v1043
    %v1348 = vpack.c.b16 %v1048, %v1044
    %v1349 = vpack.c.b16 %v1049, %v1045
    %v1350 = vpack.c.b16 %v1050, %v1046
    %v1351 = vpack.c.b16 %v1055, %v1051
    %v1352 = vpack.c.b16 %v1056, %v1052
    %v1353 = vpack.c.b16 %v1057, %v1053
    %v1354 = vpack.c.b16 %v1058, %v1054
    %v1355 = vpack.c.b16 %v1063, %v1059
    %v1356 = vpack.c.b16 %v1064, %v1060
    %v1357 = vpack.c.b16 %v1065, %v1061
    %v1358 = vpack.c.b16 %v1066, %v1062
    %v1359 = vpack.c.b16 %v1071, %v1067
    %v1360 = vpack.c.b16 %v1072, %v1068
    %v1361 = vpack.c.b16 %v1073, %v1069
    %v1362 = vpack.c.b16 %v1074, %v1070
    %v1363 = vpack.c.b16 %v1079, %v1075
    %v1364 = vpack.c.b16 %v1080, %v1076
    %v1365 = vpack.c.b16 %v1081, %v1077
    %v1366 = vpack.c.b16 %v1082, %v1078
    %v1367 = vpack.c.b16 %v1087, %v1083
    %v1368 = vpack.c.b16 %v1088, %v1084
    %v1369 = vpack.c.b16 %v1089, %v1085
    %v1370 = vpack.c.b16 %v1090, %v1086
    %v1371 = vpack.c.b16 %v1095, %v1091
    %v1372 = vpack.c.b16 %v1096, %v1092
    %v1373 = vpack.c.b16 %v1097, %v1093
    %v1374 = vpack.c.b16 %v1098, %v1094
    %v1375 = vpack.c.b16 %v1103, %v1099
    %v1376 = vpack.c.b16 %v1104, %v1100
    %v1377 = vpack.c.b16 %v1105, %v1101
    %v1378 = vpack.c.b16 %v1106, %v1102
    %v1379 = vpack.c.b16 %v1111, %v1107
    %v1380 = vpack.c.b16 %v1112, %v1108
    %v1381 = vpack.c.b16 %v1113, %v1109
    %v1382 = vpack.c.b16 %v1114, %v1110
    %v1383 = vpack.c.b16 %v1119, %v1115
    %v1384 = vpack.c.b16 %v1120, %v1116
    %v1385 = vpack.c.b16 %v1121, %v1117
    %v1386 = vpack.c.b16 %v1122, %v1118
    %v1387 = vpack.c.b16 %v1127, %v1123
    %v1388 = vpack.c.b16 %v1128, %v1124
    %v1389 = vpack.c.b16 %v1129, %v1125
    %v1390 = vpack.c.b16 %v1130, %v1126
    %v1391 = vpack.c.b16 %v1135, %v1131
    %v1392 = vpack.c.b16 %v1136, %v1132
    %v1393 = vpack.c.b16 %v1137, %v1133
    %v1394 = vpack.c.b16 %v1138, %v1134
    %1651 = vmatprep.subr.bf16.mxu0 %v1168
    %1652 = vmatpush1.bf16.msra.mxu0 %v1167
    %1653 = vmatprep.subr.bf16.mxu0 %v1164
    %1654 = vmatpush1.bf16.msra.mxu0 %v1163
    %1655 = vmatprep.subr.bf16.mxu0 %v1160
    %1656 = vmatpush1.bf16.msra.mxu0 %v1159
    %1657 = vmatprep.subr.bf16.mxu0 %v1156
    %1658 = vmatpush1.bf16.msra.mxu0 %v1155
    %1659 = vmatprep.subr.bf16.mxu0 %v1152
    %1660 = vmatpush1.bf16.msra.mxu0 %v1151
    %1661 = vmatprep.subr.bf16.mxu0 %v1148
    %1662 = vmatpush1.bf16.msra.mxu0 %v1147
    %1663 = vmatprep.subr.bf16.mxu0 %v1144
    %1664 = vmatpush1.bf16.msra.mxu0 %v1143
    %1665 = vmatprep.subr.bf16.mxu0 %v1140
    %1666 = vmatpush1.bf16.msra.mxu0 %v1139
    %1667 = vmatprep.subr.bf16.mxu0 %v1200
    %1668 = vmatpush2.bf16.msra.mxu0 %v1199
    %1669 = vmatprep.subr.bf16.mxu0 %v1196
    %1670 = vmatpush2.bf16.msra.mxu0 %v1195
    %1671 = vmatprep.subr.bf16.mxu0 %v1192
    %1672 = vmatpush2.bf16.msra.mxu0 %v1191
    %1673 = vmatprep.subr.bf16.mxu0 %v1188
    %1674 = vmatpush2.bf16.msra.mxu0 %v1187
    %1675 = vmatprep.subr.bf16.mxu0 %v1184
    %1676 = vmatpush2.bf16.msra.mxu0 %v1183
    %1677 = vmatprep.subr.bf16.mxu0 %v1180
    %1678 = vmatpush2.bf16.msra.mxu0 %v1179
    %1679 = vmatprep.subr.bf16.mxu0 %v1176
    %1680 = vmatpush2.bf16.msra.mxu0 %v1175
    %1681 = vmatprep.subr.bf16.mxu0 %v1172
    %1682 = vmatpush2.bf16.msra.mxu0 %v1171
    %1683 = vmatprep.mubr.bf16.mxu0 %v351
    %1684 = vmatmul.mubr.bf16.gmra.mxu0 %v337
    %v1685 = vpop.f32.mrf.mxu0
    %v1686 = vadd.f32 0.0, %v1685
    %v1687 = vpop.f32.mrf.mxu0
    %v1688 = vadd.f32 0.0, %v1687
    %v1689 = vpop.f32.mrf.mxu0
    %v1690 = vpop.f32.mrf.mxu0
    %1691 = vdwg.mxu0
    %1692 = vmatprep.subr.bf16.mxu0 %v1232
    %1693 = vmatpush1.bf16.msra.mxu0 %v1231
    %1694 = vmatprep.subr.bf16.mxu0 %v1228
    %1695 = vmatpush1.bf16.msra.mxu0 %v1227
    %1696 = vmatprep.subr.bf16.mxu0 %v1224
    %1697 = vmatpush1.bf16.msra.mxu0 %v1223
    %1698 = vmatprep.subr.bf16.mxu0 %v1220
    %1699 = vmatpush1.bf16.msra.mxu0 %v1219
    %1700 = vmatprep.subr.bf16.mxu0 %v1216
    %1701 = vmatpush1.bf16.msra.mxu0 %v1215
    %1702 = vmatprep.subr.bf16.mxu0 %v1212
    %1703 = vmatpush1.bf16.msra.mxu0 %v1211
    %1704 = vmatprep.subr.bf16.mxu0 %v1208
    %1705 = vmatpush1.bf16.msra.mxu0 %v1207
    %1706 = vmatprep.subr.bf16.mxu0 %v1204
    %1707 = vmatpush1.bf16.msra.mxu0 %v1203
    %1708 = vmatprep.subr.bf16.mxu0 %v1264
    %1709 = vmatpush2.bf16.msra.mxu0 %v1263
    %1710 = vmatprep.subr.bf16.mxu0 %v1260
    %1711 = vmatpush2.bf16.msra.mxu0 %v1259
    %1712 = vmatprep.subr.bf16.mxu0 %v1256
    %1713 = vmatpush2.bf16.msra.mxu0 %v1255
    %1714 = vmatprep.subr.bf16.mxu0 %v1252
    %1715 = vmatpush2.bf16.msra.mxu0 %v1251
    %1716 = vmatprep.subr.bf16.mxu0 %v1248
    %1717 = vmatpush2.bf16.msra.mxu0 %v1247
    %1718 = vmatprep.subr.bf16.mxu0 %v1244
    %1719 = vmatpush2.bf16.msra.mxu0 %v1243
    %1720 = vmatprep.subr.bf16.mxu0 %v1240
    %1721 = vmatpush2.bf16.msra.mxu0 %v1239
    %1722 = vmatprep.subr.bf16.mxu0 %v1236
    %1723 = vmatpush2.bf16.msra.mxu0 %v1235
    %1724 = vmatprep.mubr.bf16.mxu0 %v361
    %1725 = vmatmul.mubr.bf16.gmra.mxu0 %v359
    %v1726 = vpop.f32.mrf.mxu0
    %v1727 = vadd.f32 %v1686, %v1726
    %v1728 = vpop.f32.mrf.mxu0
    %v1729 = vadd.f32 %v1688, %v1728
    %v1730 = vpop.f32.mrf.mxu0
    %v1731 = vpop.f32.mrf.mxu0
    %1732 = vdwg.mxu0
    %1733 = vmatprep.subr.bf16.mxu0 %v1296
    %1734 = vmatpush1.bf16.msra.mxu0 %v1295
    %1735 = vmatprep.subr.bf16.mxu0 %v1292
    %1736 = vmatpush1.bf16.msra.mxu0 %v1291
    %1737 = vmatprep.subr.bf16.mxu0 %v1288
    %1738 = vmatpush1.bf16.msra.mxu0 %v1287
    %1739 = vmatprep.subr.bf16.mxu0 %v1284
    %1740 = vmatpush1.bf16.msra.mxu0 %v1283
    %1741 = vmatprep.subr.bf16.mxu0 %v1280
    %1742 = vmatpush1.bf16.msra.mxu0 %v1279
    %1743 = vmatprep.subr.bf16.mxu0 %v1276
    %1744 = vmatpush1.bf16.msra.mxu0 %v1275
    %1745 = vmatprep.subr.bf16.mxu0 %v1272
    %1746 = vmatpush1.bf16.msra.mxu0 %v1271
    %1747 = vmatprep.subr.bf16.mxu0 %v1268
    %1748 = vmatpush1.bf16.msra.mxu0 %v1267
    %1749 = vmatprep.subr.bf16.mxu0 %v1328
    %1750 = vmatpush2.bf16.msra.mxu0 %v1327
    %1751 = vmatprep.subr.bf16.mxu0 %v1324
    %1752 = vmatpush2.bf16.msra.mxu0 %v1323
    %1753 = vmatprep.subr.bf16.mxu0 %v1320
    %1754 = vmatpush2.bf16.msra.mxu0 %v1319
    %1755 = vmatprep.subr.bf16.mxu0 %v1316
    %1756 = vmatpush2.bf16.msra.mxu0 %v1315
    %1757 = vmatprep.subr.bf16.mxu0 %v1312
    %1758 = vmatpush2.bf16.msra.mxu0 %v1311
    %1759 = vmatprep.subr.bf16.mxu0 %v1308
    %1760 = vmatpush2.bf16.msra.mxu0 %v1307
    %1761 = vmatprep.subr.bf16.mxu0 %v1304
    %1762 = vmatpush2.bf16.msra.mxu0 %v1303
    %1763 = vmatprep.subr.bf16.mxu0 %v1300
    %1764 = vmatpush2.bf16.msra.mxu0 %v1299
    %1765 = vmatprep.mubr.bf16.mxu0 %v358
    %1766 = vmatmul.mubr.bf16.gmra.mxu0 %v344
    %v1767 = vpop.f32.mrf.mxu0
    %v1768 = vadd.f32 %v1727, %v1767
    %v1769 = vpop.f32.mrf.mxu0
    %v1770 = vadd.f32 %v1729, %v1769
    %v1771 = vpop.f32.mrf.mxu0
    %v1772 = vpop.f32.mrf.mxu0
    %1773 = vdwg.mxu0
    %1774 = vmatprep.subr.bf16.mxu0 %v1360
    %1775 = vmatpush1.bf16.msra.mxu0 %v1359
    %1776 = vmatprep.subr.bf16.mxu0 %v1356
    %1777 = vmatpush1.bf16.msra.mxu0 %v1355
    %1778 = vmatprep.subr.bf16.mxu0 %v1352
    %1779 = vmatpush1.bf16.msra.mxu0 %v1351
    %1780 = vmatprep.subr.bf16.mxu0 %v1348
    %1781 = vmatpush1.bf16.msra.mxu0 %v1347
    %1782 = vmatprep.subr.bf16.mxu0 %v1344
    %1783 = vmatpush1.bf16.msra.mxu0 %v1343
    %1784 = vmatprep.subr.bf16.mxu0 %v1340
    %1785 = vmatpush1.bf16.msra.mxu0 %v1339
    %1786 = vmatprep.subr.bf16.mxu0 %v1336
    %1787 = vmatpush1.bf16.msra.mxu0 %v1335
    %1788 = vmatprep.subr.bf16.mxu0 %v1332
    %1789 = vmatpush1.bf16.msra.mxu0 %v1331
    %1790 = vmatprep.subr.bf16.mxu0 %v1392
    %1791 = vmatpush2.bf16.msra.mxu0 %v1391
    %1792 = vmatprep.subr.bf16.mxu0 %v1388
    %1793 = vmatpush2.bf16.msra.mxu0 %v1387
    %1794 = vmatprep.subr.bf16.mxu0 %v1384
    %1795 = vmatpush2.bf16.msra.mxu0 %v1383
    %1796 = vmatprep.subr.bf16.mxu0 %v1380
    %1797 = vmatpush2.bf16.msra.mxu0 %v1379
    %1798 = vmatprep.subr.bf16.mxu0 %v1376
    %1799 = vmatpush2.bf16.msra.mxu0 %v1375
    %1800 = vmatprep.subr.bf16.mxu0 %v1372
    %1801 = vmatpush2.bf16.msra.mxu0 %v1371
    %1802 = vmatprep.subr.bf16.mxu0 %v1368
    %1803 = vmatpush2.bf16.msra.mxu0 %v1367
    %1804 = vmatprep.subr.bf16.mxu0 %v1364
    %1805 = vmatpush2.bf16.msra.mxu0 %v1363
    %1806 = vmatprep.mubr.bf16.mxu0 %v362
    %1807 = vmatmul.mubr.bf16.gmra.mxu0 %v360
    %v1808 = vpop.f32.mrf.mxu0
    %v1809 = vadd.f32 %v1768, %v1808
    %v1810 = vpop.f32.mrf.mxu0
    %v1811 = vadd.f32 %v1770, %v1810
    %v1812 = vpop.f32.mrf.mxu0
    %v1813 = vpop.f32.mrf.mxu0
    %1814 = vdwg.mxu0
    %1815 = vmatprep.subr.bf16.mxu0 %v1170
    %1816 = vmatpush1.bf16.msra.mxu0 %v1169
    %1817 = vmatprep.subr.bf16.mxu0 %v1166
    %1818 = vmatpush1.bf16.msra.mxu0 %v1165
    %1819 = vmatprep.subr.bf16.mxu0 %v1162
    %1820 = vmatpush1.bf16.msra.mxu0 %v1161
    %1821 = vmatprep.subr.bf16.mxu0 %v1158
    %1822 = vmatpush1.bf16.msra.mxu0 %v1157
    %1823 = vmatprep.subr.bf16.mxu0 %v1154
    %1824 = vmatpush1.bf16.msra.mxu0 %v1153
    %1825 = vmatprep.subr.bf16.mxu0 %v1150
    %1826 = vmatpush1.bf16.msra.mxu0 %v1149
    %1827 = vmatprep.subr.bf16.mxu0 %v1146
    %1828 = vmatpush1.bf16.msra.mxu0 %v1145
    %1829 = vmatprep.subr.bf16.mxu0 %v1142
    %1830 = vmatpush1.bf16.msra.mxu0 %v1141
    %1831 = vmatprep.subr.bf16.mxu0 %v1202
    %1832 = vmatpush2.bf16.msra.mxu0 %v1201
    %1833 = vmatprep.subr.bf16.mxu0 %v1198
    %1834 = vmatpush2.bf16.msra.mxu0 %v1197
    %1835 = vmatprep.subr.bf16.mxu0 %v1194
    %1836 = vmatpush2.bf16.msra.mxu0 %v1193
    %1837 = vmatprep.subr.bf16.mxu0 %v1190
    %1838 = vmatpush2.bf16.msra.mxu0 %v1189
    %1839 = vmatprep.subr.bf16.mxu0 %v1186
    %1840 = vmatpush2.bf16.msra.mxu0 %v1185
    %1841 = vmatprep.subr.bf16.mxu0 %v1182
    %1842 = vmatpush2.bf16.msra.mxu0 %v1181
    %1843 = vmatprep.subr.bf16.mxu0 %v1178
    %1844 = vmatpush2.bf16.msra.mxu0 %v1177
    %1845 = vmatprep.subr.bf16.mxu0 %v1174
    %1846 = vmatpush2.bf16.msra.mxu0 %v1173
    %1847 = vmatprep.mubr.bf16.mxu0 %v351
    %1848 = vmatmul.mubr.bf16.gmra.mxu0 %v337
    %v1849 = vpop.f32.mrf.mxu0
    %v1850 = vadd.f32 0.0, %v1849
    %v1851 = vpop.f32.mrf.mxu0
    %v1852 = vadd.f32 0.0, %v1851
    %v1853 = vpop.f32.mrf.mxu0
    %v1854 = vpop.f32.mrf.mxu0
    %1855 = vdwg.mxu0
    %1856 = vmatprep.subr.bf16.mxu0 %v1234
    %1857 = vmatpush1.bf16.msra.mxu0 %v1233
    %1858 = vmatprep.subr.bf16.mxu0 %v1230
    %1859 = vmatpush1.bf16.msra.mxu0 %v1229
    %1860 = vmatprep.subr.bf16.mxu0 %v1226
    %1861 = vmatpush1.bf16.msra.mxu0 %v1225
    %1862 = vmatprep.subr.bf16.mxu0 %v1222
    %1863 = vmatpush1.bf16.msra.mxu0 %v1221
    %1864 = vmatprep.subr.bf16.mxu0 %v1218
    %1865 = vmatpush1.bf16.msra.mxu0 %v1217
    %1866 = vmatprep.subr.bf16.mxu0 %v1214
    %1867 = vmatpush1.bf16.msra.mxu0 %v1213
    %1868 = vmatprep.subr.bf16.mxu0 %v1210
    %1869 = vmatpush1.bf16.msra.mxu0 %v1209
    %1870 = vmatprep.subr.bf16.mxu0 %v1206
    %1871 = vmatpush1.bf16.msra.mxu0 %v1205
    %1872 = vmatprep.subr.bf16.mxu0 %v1266
    %1873 = vmatpush2.bf16.msra.mxu0 %v1265
    %1874 = vmatprep.subr.bf16.mxu0 %v1262
    %1875 = vmatpush2.bf16.msra.mxu0 %v1261
    %1876 = vmatprep.subr.bf16.mxu0 %v1258
    %1877 = vmatpush2.bf16.msra.mxu0 %v1257
    %1878 = vmatprep.subr.bf16.mxu0 %v1254
    %1879 = vmatpush2.bf16.msra.mxu0 %v1253
    %1880 = vmatprep.subr.bf16.mxu0 %v1250
    %1881 = vmatpush2.bf16.msra.mxu0 %v1249
    %1882 = vmatprep.subr.bf16.mxu0 %v1246
    %1883 = vmatpush2.bf16.msra.mxu0 %v1245
    %1884 = vmatprep.subr.bf16.mxu0 %v1242
    %1885 = vmatpush2.bf16.msra.mxu0 %v1241
    %1886 = vmatprep.subr.bf16.mxu0 %v1238
    %1887 = vmatpush2.bf16.msra.mxu0 %v1237
    %1888 = vmatprep.mubr.bf16.mxu0 %v361
    %1889 = vmatmul.mubr.bf16.gmra.mxu0 %v359
    %v1890 = vpop.f32.mrf.mxu0
    %v1891 = vadd.f32 %v1850, %v1890
    %v1892 = vpop.f32.mrf.mxu0
    %v1893 = vadd.f32 %v1852, %v1892
    %v1894 = vpop.f32.mrf.mxu0
    %v1895 = vpop.f32.mrf.mxu0
    %1896 = vdwg.mxu0
    %1897 = vmatprep.subr.bf16.mxu0 %v1298
    %1898 = vmatpush1.bf16.msra.mxu0 %v1297
    %1899 = vmatprep.subr.bf16.mxu0 %v1294
    %1900 = vmatpush1.bf16.msra.mxu0 %v1293
    %1901 = vmatprep.subr.bf16.mxu0 %v1290
    %1902 = vmatpush1.bf16.msra.mxu0 %v1289
    %1903 = vmatprep.subr.bf16.mxu0 %v1286
    %1904 = vmatpush1.bf16.msra.mxu0 %v1285
    %1905 = vmatprep.subr.bf16.mxu0 %v1282
    %1906 = vmatpush1.bf16.msra.mxu0 %v1281
    %1907 = vmatprep.subr.bf16.mxu0 %v1278
    %1908 = vmatpush1.bf16.msra.mxu0 %v1277
    %1909 = vmatprep.subr.bf16.mxu0 %v1274
    %1910 = vmatpush1.bf16.msra.mxu0 %v1273
    %1911 = vmatprep.subr.bf16.mxu0 %v1270
    %1912 = vmatpush1.bf16.msra.mxu0 %v1269
    %1913 = vmatprep.subr.bf16.mxu0 %v1330
    %1914 = vmatpush2.bf16.msra.mxu0 %v1329
    %1915 = vmatprep.subr.bf16.mxu0 %v1326
    %1916 = vmatpush2.bf16.msra.mxu0 %v1325
    %1917 = vmatprep.subr.bf16.mxu0 %v1322
    %1918 = vmatpush2.bf16.msra.mxu0 %v1321
    %1919 = vmatprep.subr.bf16.mxu0 %v1318
    %1920 = vmatpush2.bf16.msra.mxu0 %v1317
    %1921 = vmatprep.subr.bf16.mxu0 %v1314
    %1922 = vmatpush2.bf16.msra.mxu0 %v1313
    %1923 = vmatprep.subr.bf16.mxu0 %v1310
    %1924 = vmatpush2.bf16.msra.mxu0 %v1309
    %1925 = vmatprep.subr.bf16.mxu0 %v1306
    %1926 = vmatpush2.bf16.msra.mxu0 %v1305
    %1927 = vmatprep.subr.bf16.mxu0 %v1302
    %1928 = vmatpush2.bf16.msra.mxu0 %v1301
    %1929 = vmatprep.mubr.bf16.mxu0 %v358
    %1930 = vmatmul.mubr.bf16.gmra.mxu0 %v344
    %v1931 = vpop.f32.mrf.mxu0
    %v1932 = vadd.f32 %v1891, %v1931
    %v1933 = vpop.f32.mrf.mxu0
    %v1934 = vadd.f32 %v1893, %v1933
    %v1935 = vpop.f32.mrf.mxu0
    %v1936 = vpop.f32.mrf.mxu0
    %1937 = vdwg.mxu0
    %1938 = vmatprep.subr.bf16.mxu0 %v1362
    %1939 = vmatpush1.bf16.msra.mxu0 %v1361
    %1940 = vmatprep.subr.bf16.mxu0 %v1358
    %1941 = vmatpush1.bf16.msra.mxu0 %v1357
    %1942 = vmatprep.subr.bf16.mxu0 %v1354
    %1943 = vmatpush1.bf16.msra.mxu0 %v1353
    %1944 = vmatprep.subr.bf16.mxu0 %v1350
    %1945 = vmatpush1.bf16.msra.mxu0 %v1349
    %1946 = vmatprep.subr.bf16.mxu0 %v1346
    %1947 = vmatpush1.bf16.msra.mxu0 %v1345
    %1948 = vmatprep.subr.bf16.mxu0 %v1342
    %1949 = vmatpush1.bf16.msra.mxu0 %v1341
    %1950 = vmatprep.subr.bf16.mxu0 %v1338
    %1951 = vmatpush1.bf16.msra.mxu0 %v1337
    %1952 = vmatprep.subr.bf16.mxu0 %v1334
    %1953 = vmatpush1.bf16.msra.mxu0 %v1333
    %1954 = vmatprep.subr.bf16.mxu0 %v1394
    %1955 = vmatpush2.bf16.msra.mxu0 %v1393
    %1956 = vmatprep.subr.bf16.mxu0 %v1390
    %1957 = vmatpush2.bf16.msra.mxu0 %v1389
    %1958 = vmatprep.subr.bf16.mxu0 %v1386
    %1959 = vmatpush2.bf16.msra.mxu0 %v1385
    %1960 = vmatprep.subr.bf16.mxu0 %v1382
    %1961 = vmatpush2.bf16.msra.mxu0 %v1381
    %1962 = vmatprep.subr.bf16.mxu0 %v1378
    %1963 = vmatpush2.bf16.msra.mxu0 %v1377
    %1964 = vmatprep.subr.bf16.mxu0 %v1374
    %1965 = vmatpush2.bf16.msra.mxu0 %v1373
    %1966 = vmatprep.subr.bf16.mxu0 %v1370
    %1967 = vmatpush2.bf16.msra.mxu0 %v1369
    %1968 = vmatprep.subr.bf16.mxu0 %v1366
    %1969 = vmatpush2.bf16.msra.mxu0 %v1365
    %1970 = vmatprep.mubr.bf16.mxu0 %v362
    %1971 = vmatmul.mubr.bf16.gmra.mxu0 %v360
    %v1972 = vpop.f32.mrf.mxu0
    %v1973 = vadd.f32 %v1932, %v1972
    %v1974 = vpop.f32.mrf.mxu0
    %v1975 = vadd.f32 %v1934, %v1974
    %v1976 = vpop.f32.mrf.mxu0
    %v1977 = vpop.f32.mrf.mxu0
    %1978 = vdwg.mxu0
    %v1979 = vld [vmem:[%s2] sm:$0xff]
    %v1980 = vld [vmem:[%s2 + $0x8] sm:$0xff]
    %v1981 = vld [vmem:[%s2 + $0x10] sm:$0xff]
    %v1982 = vld [vmem:[%s2 + $0x18] sm:$0xff]
    %v1983 = vld [vmem:[%s2 + $0x20] sm:$0xff]
    %v1984 = vld [vmem:[%s2 + $0x28] sm:$0xff]
    %v1985 = vld [vmem:[%s2 + $0x30] sm:$0xff]
    %v1986 = vld [vmem:[%s2 + $0x38] sm:$0xff]
    %v1987 = vld [vmem:[%s2 + $0x40] sm:$0xff]
    %v1988 = vld [vmem:[%s2 + $0x48] sm:$0xff]
    %v1989 = vld [vmem:[%s2 + $0x50] sm:$0xff]
    %v1990 = vld [vmem:[%s2 + $0x58] sm:$0xff]
    %v1991 = vld [vmem:[%s2 + $0x60] sm:$0xff]
    %v1992 = vld [vmem:[%s2 + $0x68] sm:$0xff]
    %v1993 = vld [vmem:[%s2 + $0x70] sm:$0xff]
    %v1994 = vld [vmem:[%s2 + $0x78] sm:$0xff]
    %v1995 = vld [vmem:[%s2 + $0x80] sm:$0xff]
    %v1996 = vld [vmem:[%s2 + $0x88] sm:$0xff]
    %v1997 = vld [vmem:[%s2 + $0x90] sm:$0xff]
    %v1998 = vld [vmem:[%s2 + $0x98] sm:$0xff]
    %v1999 = vld [vmem:[%s2 + $0xa0] sm:$0xff]
    %v2000 = vld [vmem:[%s2 + $0xa8] sm:$0xff]
    %v2001 = vld [vmem:[%s2 + $0xb0] sm:$0xff]
    %v2002 = vld [vmem:[%s2 + $0xb8] sm:$0xff]
    %v2003 = vld [vmem:[%s2 + $0xc0] sm:$0xff]
    %v2004 = vld [vmem:[%s2 + $0xc8] sm:$0xff]
    %v2005 = vld [vmem:[%s2 + $0xd0] sm:$0xff]
    %v2006 = vld [vmem:[%s2 + $0xd8] sm:$0xff]
    %v2007 = vld [vmem:[%s2 + $0xe0] sm:$0xff]
    %v2008 = vld [vmem:[%s2 + $0xe8] sm:$0xff]
    %v2009 = vld [vmem:[%s2 + $0xf0] sm:$0xff]
    %v2010 = vld [vmem:[%s2 + $0xf8] sm:$0xff]
    %v2011 = vld [vmem:[%s2 + $0x100] sm:$0xff]
    %v2012 = vld [vmem:[%s2 + $0x108] sm:$0xff]
    %v2013 = vld [vmem:[%s2 + $0x110] sm:$0xff]
    %v2014 = vld [vmem:[%s2 + $0x118] sm:$0xff]
    %v2015 = vld [vmem:[%s2 + $0x120] sm:$0xff]
    %v2016 = vld [vmem:[%s2 + $0x128] sm:$0xff]
    %v2017 = vld [vmem:[%s2 + $0x130] sm:$0xff]
    %v2018 = vld [vmem:[%s2 + $0x138] sm:$0xff]
    %v2019 = vld [vmem:[%s2 + $0x140] sm:$0xff]
    %v2020 = vld [vmem:[%s2 + $0x148] sm:$0xff]
    %v2021 = vld [vmem:[%s2 + $0x150] sm:$0xff]
    %v2022 = vld [vmem:[%s2 + $0x158] sm:$0xff]
    %v2023 = vld [vmem:[%s2 + $0x160] sm:$0xff]
    %v2024 = vld [vmem:[%s2 + $0x168] sm:$0xff]
    %v2025 = vld [vmem:[%s2 + $0x170] sm:$0xff]
    %v2026 = vld [vmem:[%s2 + $0x178] sm:$0xff]
    %v2027 = vld [vmem:[%s2 + $0x180] sm:$0xff]
    %v2028 = vld [vmem:[%s2 + $0x188] sm:$0xff]
    %v2029 = vld [vmem:[%s2 + $0x190] sm:$0xff]
    %v2030 = vld [vmem:[%s2 + $0x198] sm:$0xff]
    %v2031 = vld [vmem:[%s2 + $0x1a0] sm:$0xff]
    %v2032 = vld [vmem:[%s2 + $0x1a8] sm:$0xff]
    %v2033 = vld [vmem:[%s2 + $0x1b0] sm:$0xff]
    %v2034 = vld [vmem:[%s2 + $0x1b8] sm:$0xff]
    %v2035 = vld [vmem:[%s2 + $0x1c0] sm:$0xff]
    %v2036 = vld [vmem:[%s2 + $0x1c8] sm:$0xff]
    %v2037 = vld [vmem:[%s2 + $0x1d0] sm:$0xff]
    %v2038 = vld [vmem:[%s2 + $0x1d8] sm:$0xff]
    %v2039 = vld [vmem:[%s2 + $0x1e0] sm:$0xff]
    %v2040 = vld [vmem:[%s2 + $0x1e8] sm:$0xff]
    %v2041 = vld [vmem:[%s2 + $0x1f0] sm:$0xff]
    %v2042 = vld [vmem:[%s2 + $0x1f8] sm:$0xff]
    %v2043 = vld [vmem:[%s3] sm:$0xff]
    %v2044 = vld [vmem:[%s3 + $0x8] sm:$0xff]
    %v2045 = vld [vmem:[%s3 + $0x10] sm:$0xff]
    %v2046 = vld [vmem:[%s3 + $0x18] sm:$0xff]
    %vm2047 = vcmask 1041408
    %v2048 = vsel %vm2047, %v1809, 0.0
    %v2049 = vrot.slane %v2048, 4
    %v2050 = vadd.f32 %v2048, %v2049
    %v2051 = vrot.slane %v2050, 2
    %v2052 = vadd.f32 %v2050, %v2051
    %v2053 = vrot.slane %v2052, 1
    %v2054 = vadd.f32 %v2052, %v2053
    %v2055 = vsel %vm2047, %v1811, 0.0
    %v2056 = vrot.slane %v2055, 4
    %v2057 = vadd.f32 %v2055, %v2056
    %v2058 = vrot.slane %v2057, 2
    %v2059 = vadd.f32 %v2057, %v2058
    %v2060 = vrot.slane %v2059, 1
    %v2061 = vadd.f32 %v2059, %v2060
    %v2062 = vsel %vm2047, %v1973, 0.0
    %v2063 = vrot.slane %v2062, 4
    %v2064 = vadd.f32 %v2062, %v2063
    %v2065 = vrot.slane %v2064, 2
    %v2066 = vadd.f32 %v2064, %v2065
    %v2067 = vrot.slane %v2066, 1
    %v2068 = vadd.f32 %v2066, %v2067
    %v2069 = vsel %vm2047, %v1975, 0.0
    %v2070 = vrot.slane %v2069, 4
    %v2071 = vadd.f32 %v2069, %v2070
    %v2072 = vrot.slane %v2071, 2
    %v2073 = vadd.f32 %v2071, %v2072
    %v2074 = vrot.slane %v2073, 1
    %v2075 = vadd.f32 %v2073, %v2074
    %2076 = vmatprep.subr.mxu0 0.0
    %2077 = vmatpush1.msra.mxu0 %v1994
    %2078 = vmatprep.subr.mxu0 0.0
    %2079 = vmatpush1.msra.mxu0 %v1993
    %2080 = vmatprep.subr.mxu0 0.0
    %2081 = vmatpush1.msra.mxu0 %v1992
    %2082 = vmatprep.subr.mxu0 0.0
    %2083 = vmatpush1.msra.mxu0 %v1991
    %2084 = vmatprep.subr.mxu0 0.0
    %2085 = vmatpush1.msra.mxu0 %v1990
    %2086 = vmatprep.subr.mxu0 0.0
    %2087 = vmatpush1.msra.mxu0 %v1989
    %2088 = vmatprep.subr.mxu0 0.0
    %2089 = vmatpush1.msra.mxu0 %v1988
    %2090 = vmatprep.subr.mxu0 0.0
    %2091 = vmatpush1.msra.mxu0 %v1987
    %2092 = vmatprep.subr.mxu0 0.0
    %2093 = vmatpush1.msra.mxu0 %v1986
    %2094 = vmatprep.subr.mxu0 0.0
    %2095 = vmatpush1.msra.mxu0 %v1985
    %2096 = vmatprep.subr.mxu0 0.0
    %2097 = vmatpush1.msra.mxu0 %v1984
    %2098 = vmatprep.subr.mxu0 0.0
    %2099 = vmatpush1.msra.mxu0 %v1983
    %2100 = vmatprep.subr.mxu0 0.0
    %2101 = vmatpush1.msra.mxu0 %v1982
    %2102 = vmatprep.subr.mxu0 0.0
    %2103 = vmatpush1.msra.mxu0 %v1981
    %2104 = vmatprep.subr.mxu0 0.0
    %2105 = vmatpush1.msra.mxu0 %v1980
    %2106 = vmatprep.subr.mxu0 0.0
    %2107 = vmatpush1.msra.mxu0 %v1979
    %2108 = vmatprep.subr.mxu0 0.0
    %2109 = vmatpush2.msra.mxu0 %v2010
    %2110 = vmatprep.subr.mxu0 0.0
    %2111 = vmatpush2.msra.mxu0 %v2009
    %2112 = vmatprep.subr.mxu0 0.0
    %2113 = vmatpush2.msra.mxu0 %v2008
    %2114 = vmatprep.subr.mxu0 0.0
    %2115 = vmatpush2.msra.mxu0 %v2007
    %2116 = vmatprep.subr.mxu0 0.0
    %2117 = vmatpush2.msra.mxu0 %v2006
    %2118 = vmatprep.subr.mxu0 0.0
    %2119 = vmatpush2.msra.mxu0 %v2005
    %2120 = vmatprep.subr.mxu0 0.0
    %2121 = vmatpush2.msra.mxu0 %v2004
    %2122 = vmatprep.subr.mxu0 0.0
    %2123 = vmatpush2.msra.mxu0 %v2003
    %2124 = vmatprep.subr.mxu0 0.0
    %2125 = vmatpush2.msra.mxu0 %v2002
    %2126 = vmatprep.subr.mxu0 0.0
    %2127 = vmatpush2.msra.mxu0 %v2001
    %2128 = vmatprep.subr.mxu0 0.0
    %2129 = vmatpush2.msra.mxu0 %v2000
    %2130 = vmatprep.subr.mxu0 0.0
    %2131 = vmatpush2.msra.mxu0 %v1999
    %2132 = vmatprep.subr.mxu0 0.0
    %2133 = vmatpush2.msra.mxu0 %v1998
    %2134 = vmatprep.subr.mxu0 0.0
    %2135 = vmatpush2.msra.mxu0 %v1997
    %2136 = vmatprep.subr.mxu0 0.0
    %2137 = vmatpush2.msra.mxu0 %v1996
    %2138 = vmatprep.subr.mxu0 0.0
    %2139 = vmatpush2.msra.mxu0 %v1995
    %2140 = vmatprep.mubr.f32.mxu0 %v2061
    %2141 = vmatmul.mubr.f32.gmra.mxu0 %v2054
    %v2142 = vpop.f32.mrf.mxu0
    %v2143 = vadd.f32 0.0, %v2142
    %v2144 = vpop.f32.mrf.mxu0
    %2145 = vdwg.mxu0
    %2146 = vmatprep.subr.mxu0 0.0
    %2147 = vmatpush1.msra.mxu0 %v2026
    %2148 = vmatprep.subr.mxu0 0.0
    %2149 = vmatpush1.msra.mxu0 %v2025
    %2150 = vmatprep.subr.mxu0 0.0
    %2151 = vmatpush1.msra.mxu0 %v2024
    %2152 = vmatprep.subr.mxu0 0.0
    %2153 = vmatpush1.msra.mxu0 %v2023
    %2154 = vmatprep.subr.mxu0 0.0
    %2155 = vmatpush1.msra.mxu0 %v2022
    %2156 = vmatprep.subr.mxu0 0.0
    %2157 = vmatpush1.msra.mxu0 %v2021
    %2158 = vmatprep.subr.mxu0 0.0
    %2159 = vmatpush1.msra.mxu0 %v2020
    %2160 = vmatprep.subr.mxu0 0.0
    %2161 = vmatpush1.msra.mxu0 %v2019
    %2162 = vmatprep.subr.mxu0 0.0
    %2163 = vmatpush1.msra.mxu0 %v2018
    %2164 = vmatprep.subr.mxu0 0.0
    %2165 = vmatpush1.msra.mxu0 %v2017
    %2166 = vmatprep.subr.mxu0 0.0
    %2167 = vmatpush1.msra.mxu0 %v2016
    %2168 = vmatprep.subr.mxu0 0.0
    %2169 = vmatpush1.msra.mxu0 %v2015
    %2170 = vmatprep.subr.mxu0 0.0
    %2171 = vmatpush1.msra.mxu0 %v2014
    %2172 = vmatprep.subr.mxu0 0.0
    %2173 = vmatpush1.msra.mxu0 %v2013
    %2174 = vmatprep.subr.mxu0 0.0
    %2175 = vmatpush1.msra.mxu0 %v2012
    %2176 = vmatprep.subr.mxu0 0.0
    %2177 = vmatpush1.msra.mxu0 %v2011
    %2178 = vmatprep.subr.mxu0 0.0
    %2179 = vmatpush2.msra.mxu0 %v2042
    %2180 = vmatprep.subr.mxu0 0.0
    %2181 = vmatpush2.msra.mxu0 %v2041
    %2182 = vmatprep.subr.mxu0 0.0
    %2183 = vmatpush2.msra.mxu0 %v2040
    %2184 = vmatprep.subr.mxu0 0.0
    %2185 = vmatpush2.msra.mxu0 %v2039
    %2186 = vmatprep.subr.mxu0 0.0
    %2187 = vmatpush2.msra.mxu0 %v2038
    %2188 = vmatprep.subr.mxu0 0.0
    %2189 = vmatpush2.msra.mxu0 %v2037
    %2190 = vmatprep.subr.mxu0 0.0
    %2191 = vmatpush2.msra.mxu0 %v2036
    %2192 = vmatprep.subr.mxu0 0.0
    %2193 = vmatpush2.msra.mxu0 %v2035
    %2194 = vmatprep.subr.mxu0 0.0
    %2195 = vmatpush2.msra.mxu0 %v2034
    %2196 = vmatprep.subr.mxu0 0.0
    %2197 = vmatpush2.msra.mxu0 %v2033
    %2198 = vmatprep.subr.mxu0 0.0
    %2199 = vmatpush2.msra.mxu0 %v2032
    %2200 = vmatprep.subr.mxu0 0.0
    %2201 = vmatpush2.msra.mxu0 %v2031
    %2202 = vmatprep.subr.mxu0 0.0
    %2203 = vmatpush2.msra.mxu0 %v2030
    %2204 = vmatprep.subr.mxu0 0.0
    %2205 = vmatpush2.msra.mxu0 %v2029
    %2206 = vmatprep.subr.mxu0 0.0
    %2207 = vmatpush2.msra.mxu0 %v2028
    %2208 = vmatprep.subr.mxu0 0.0
    %2209 = vmatpush2.msra.mxu0 %v2027
    %2210 = vmatprep.mubr.f32.mxu0 %v2075
    %2211 = vmatmul.mubr.f32.gmra.mxu0 %v2068
    %v2212 = vpop.f32.mrf.mxu0
    %v2213 = vadd.f32 %v2143, %v2212
    %v2214 = vpop.f32.mrf.mxu0
    %2215 = vdwg.mxu0
    %v2216 = vmul.f32 %v2213, 0.0078125
    %vm2217 = vcmask 64512
    %v2219 = vsel %vm2217, %v2216, 0
    %2221 = vmatprep.subr.mxu0 0.0
    %2222 = vmatpush1.msra.mxu0 0.0
    %2223 = vmatprep.subr.mxu0 0.0
    %2224 = vmatpush1.msra.mxu0 0.0
    %2225 = vmatprep.subr.mxu0 0.0
    %2226 = vmatpush1.msra.mxu0 0.0
    %2227 = vmatprep.subr.mxu0 0.0
    %2228 = vmatpush1.msra.mxu0 0.0
    %2229 = vmatprep.subr.mxu0 0.0
    %2230 = vmatpush1.msra.mxu0 0.0
    %2231 = vmatprep.subr.mxu0 0.0
    %2232 = vmatpush1.msra.mxu0 0.0
    %2233 = vmatprep.subr.mxu0 0.0
    %2234 = vmatpush1.msra.mxu0 0.0
    %2235 = vmatprep.subr.mxu0 0.0
    %2236 = vmatpush1.msra.mxu0 0.0
    %2237 = vmatprep.subr.mxu0 0.0
    %2238 = vmatpush1.msra.mxu0 0.0
    %2239 = vmatprep.subr.mxu0 0.0
    %2240 = vmatpush1.msra.mxu0 0.0
    %2241 = vmatprep.subr.mxu0 0.0
    %2242 = vmatpush1.msra.mxu0 0.0
    %2243 = vmatprep.subr.mxu0 0.0
    %2244 = vmatpush1.msra.mxu0 0.0
    %2245 = vmatprep.subr.mxu0 0.0
    %2246 = vmatpush1.msra.mxu0 0.0
    %2247 = vmatprep.subr.mxu0 0.0
    %2248 = vmatpush1.msra.mxu0 0.0
    %2249 = vmatprep.subr.mxu0 0.0
    %2250 = vmatpush1.msra.mxu0 0.0
    %2251 = vmatprep.subr.mxu0 %v2044
    %2252 = vmatpush1.msra.mxu0 %v2043
    %2253 = vmatprep.subr.mxu0 0.0
    %2254 = vmatpush2.msra.mxu0 0.0
    %2255 = vmatprep.subr.mxu0 0.0
    %2256 = vmatpush2.msra.mxu0 0.0
    %2257 = vmatprep.subr.mxu0 0.0
    %2258 = vmatpush2.msra.mxu0 0.0
    %2259 = vmatprep.subr.mxu0 0.0
    %2260 = vmatpush2.msra.mxu0 0.0
    %2261 = vmatprep.subr.mxu0 0.0
    %2262 = vmatpush2.msra.mxu0 0.0
    %2263 = vmatprep.subr.mxu0 0.0
    %2264 = vmatpush2.msra.mxu0 0.0
    %2265 = vmatprep.subr.mxu0 0.0
    %2266 = vmatpush2.msra.mxu0 0.0
    %2267 = vmatprep.subr.mxu0 0.0
    %2268 = vmatpush2.msra.mxu0 0.0
    %2269 = vmatprep.subr.mxu0 0.0
    %2270 = vmatpush2.msra.mxu0 0.0
    %2271 = vmatprep.subr.mxu0 0.0
    %2272 = vmatpush2.msra.mxu0 0.0
    %2273 = vmatprep.subr.mxu0 0.0
    %2274 = vmatpush2.msra.mxu0 0.0
    %2275 = vmatprep.subr.mxu0 0.0
    %2276 = vmatpush2.msra.mxu0 0.0
    %2277 = vmatprep.subr.mxu0 0.0
    %2278 = vmatpush2.msra.mxu0 0.0
    %2279 = vmatprep.subr.mxu0 0.0
    %2280 = vmatpush2.msra.mxu0 0.0
    %2281 = vmatprep.subr.mxu0 0.0
    %2282 = vmatpush2.msra.mxu0 0.0
    %2283 = vmatprep.subr.mxu0 0.0
    %2284 = vmatpush2.msra.mxu0 0.0
    %2285 = vmatprep.mubr.f32.mxu0 0.0
    %2286 = vmatmul.mubr.f32.gmra.mxu0 %v2219
    %v2287 = vpop.f32.mrf.mxu0
    %v2288 = vadd.f32 0.0, %v2287
    %v2289 = vpop.f32.mrf.mxu0
    %v2290 = vadd.f32 0.0, %v2289
    %2291 = vdwg.mxu0
    %2292 = vmatprep.subr.mxu0 0.0
    %2293 = vmatpush1.msra.mxu0 0.0
    %2294 = vmatprep.subr.mxu0 0.0
    %2295 = vmatpush1.msra.mxu0 0.0
    %2296 = vmatprep.subr.mxu0 0.0
    %2297 = vmatpush1.msra.mxu0 0.0
    %2298 = vmatprep.subr.mxu0 0.0
    %2299 = vmatpush1.msra.mxu0 0.0
    %2300 = vmatprep.subr.mxu0 0.0
    %2301 = vmatpush1.msra.mxu0 0.0
    %2302 = vmatprep.subr.mxu0 0.0
    %2303 = vmatpush1.msra.mxu0 0.0
    %2304 = vmatprep.subr.mxu0 0.0
    %2305 = vmatpush1.msra.mxu0 0.0
    %2306 = vmatprep.subr.mxu0 0.0
    %2307 = vmatpush1.msra.mxu0 0.0
    %2308 = vmatprep.subr.mxu0 0.0
    %2309 = vmatpush1.msra.mxu0 0.0
    %2310 = vmatprep.subr.mxu0 0.0
    %2311 = vmatpush1.msra.mxu0 0.0
    %2312 = vmatprep.subr.mxu0 0.0
    %2313 = vmatpush1.msra.mxu0 0.0
    %2314 = vmatprep.subr.mxu0 0.0
    %2315 = vmatpush1.msra.mxu0 0.0
    %2316 = vmatprep.subr.mxu0 0.0
    %2317 = vmatpush1.msra.mxu0 0.0
    %2318 = vmatprep.subr.mxu0 0.0
    %2319 = vmatpush1.msra.mxu0 0.0
    %2320 = vmatprep.subr.mxu0 0.0
    %2321 = vmatpush1.msra.mxu0 0.0
    %2322 = vmatprep.subr.mxu0 %v2046
    %2323 = vmatpush1.msra.mxu0 %v2045
    %2324 = vmatprep.subr.mxu0 0.0
    %2325 = vmatpush2.msra.mxu0 0.0
    %2326 = vmatprep.subr.mxu0 0.0
    %2327 = vmatpush2.msra.mxu0 0.0
    %2328 = vmatprep.subr.mxu0 0.0
    %2329 = vmatpush2.msra.mxu0 0.0
    %2330 = vmatprep.subr.mxu0 0.0
    %2331 = vmatpush2.msra.mxu0 0.0
    %2332 = vmatprep.subr.mxu0 0.0
    %2333 = vmatpush2.msra.mxu0 0.0
    %2334 = vmatprep.subr.mxu0 0.0
    %2335 = vmatpush2.msra.mxu0 0.0
    %2336 = vmatprep.subr.mxu0 0.0
    %2337 = vmatpush2.msra.mxu0 0.0
    %2338 = vmatprep.subr.mxu0 0.0
    %2339 = vmatpush2.msra.mxu0 0.0
    %2340 = vmatprep.subr.mxu0 0.0
    %2341 = vmatpush2.msra.mxu0 0.0
    %2342 = vmatprep.subr.mxu0 0.0
    %2343 = vmatpush2.msra.mxu0 0.0
    %2344 = vmatprep.subr.mxu0 0.0
    %2345 = vmatpush2.msra.mxu0 0.0
    %2346 = vmatprep.subr.mxu0 0.0
    %2347 = vmatpush2.msra.mxu0 0.0
    %2348 = vmatprep.subr.mxu0 0.0
    %2349 = vmatpush2.msra.mxu0 0.0
    %2350 = vmatprep.subr.mxu0 0.0
    %2351 = vmatpush2.msra.mxu0 0.0
    %2352 = vmatprep.subr.mxu0 0.0
    %2353 = vmatpush2.msra.mxu0 0.0
    %2354 = vmatprep.subr.mxu0 0.0
    %2355 = vmatpush2.msra.mxu0 0.0
    %2356 = vmatprep.mubr.f32.mxu0 0.0
    %2357 = vmatmul.mubr.f32.gmra.mxu0 %v2219
    %v2358 = vpop.f32.mrf.mxu0
    %v2359 = vadd.f32 0.0, %v2358
    %v2360 = vpop.f32.mrf.mxu0
    %v2361 = vadd.f32 0.0, %v2360
    %2362 = vdwg.mxu0
    %v2363 = vlaneseq
    %v2364 = vshrl.u32 %v2363, 7
    %v2365 = vsub.s32 0, %v2364
    %v2366 = vrot.slane %v2288, %v2365
    %v2367 = vlaneseq
    %v2368 = vshrl.u32 %v2367, 7
    %v2369 = vsub.s32 0, %v2368
    %v2370 = vrot.slane %v2290, %v2369
    %v2371 = vlaneseq
    %v2372 = vshrl.u32 %v2371, 7
    %v2373 = vsub.s32 0, %v2372
    %v2374 = vrot.slane %v2359, %v2373
    %v2375 = vlaneseq
    %v2376 = vshrl.u32 %v2375, 7
    %v2377 = vsub.s32 0, %v2376
    %v2378 = vrot.slane %v2361, %v2377
    %v2379 = vsub.f32 %v1809, %v2366
    %v2380 = vsub.f32 %v1811, %v2370
    %v2381 = vsub.f32 %v1973, %v2374
    %v2382 = vsub.f32 %v1975, %v2378
    %v2383 = vmul.f32 %v2379, %v2379
    %v2384 = vmul.f32 %v2380, %v2380
    %v2385 = vmul.f32 %v2381, %v2381
    %v2386 = vmul.f32 %v2382, %v2382
    %v2387 = vsel %vm2047, %v2383, 0.0
    %v2388 = vrot.slane %v2387, 4
    %v2389 = vadd.f32 %v2387, %v2388
    %v2390 = vrot.slane %v2389, 2
    %v2391 = vadd.f32 %v2389, %v2390
    %v2392 = vrot.slane %v2391, 1
    %v2393 = vadd.f32 %v2391, %v2392
    %v2394 = vsel %vm2047, %v2384, 0.0
    %v2395 = vrot.slane %v2394, 4
    %v2396 = vadd.f32 %v2394, %v2395
    %v2397 = vrot.slane %v2396, 2
    %v2398 = vadd.f32 %v2396, %v2397
    %v2399 = vrot.slane %v2398, 1
    %v2400 = vadd.f32 %v2398, %v2399
    %v2401 = vsel %vm2047, %v2385, 0.0
    %v2402 = vrot.slane %v2401, 4
    %v2403 = vadd.f32 %v2401, %v2402
    %v2404 = vrot.slane %v2403, 2
    %v2405 = vadd.f32 %v2403, %v2404
    %v2406 = vrot.slane %v2405, 1
    %v2407 = vadd.f32 %v2405, %v2406
    %v2408 = vsel %vm2047, %v2386, 0.0
    %v2409 = vrot.slane %v2408, 4
    %v2410 = vadd.f32 %v2408, %v2409
    %v2411 = vrot.slane %v2410, 2
    %v2412 = vadd.f32 %v2410, %v2411
    %v2413 = vrot.slane %v2412, 1
    %v2414 = vadd.f32 %v2412, %v2413
    %2415 = vmatprep.subr.mxu0 0.0
    %2416 = vmatpush1.msra.mxu0 %v1994
    %2417 = vmatprep.subr.mxu0 0.0
    %2418 = vmatpush1.msra.mxu0 %v1993
    %2419 = vmatprep.subr.mxu0 0.0
    %2420 = vmatpush1.msra.mxu0 %v1992
    %2421 = vmatprep.subr.mxu0 0.0
    %2422 = vmatpush1.msra.mxu0 %v1991
    %2423 = vmatprep.subr.mxu0 0.0
    %2424 = vmatpush1.msra.mxu0 %v1990
    %2425 = vmatprep.subr.mxu0 0.0
    %2426 = vmatpush1.msra.mxu0 %v1989
    %2427 = vmatprep.subr.mxu0 0.0
    %2428 = vmatpush1.msra.mxu0 %v1988
    %2429 = vmatprep.subr.mxu0 0.0
    %2430 = vmatpush1.msra.mxu0 %v1987
    %2431 = vmatprep.subr.mxu0 0.0
    %2432 = vmatpush1.msra.mxu0 %v1986
    %2433 = vmatprep.subr.mxu0 0.0
    %2434 = vmatpush1.msra.mxu0 %v1985
    %2435 = vmatprep.subr.mxu0 0.0
    %2436 = vmatpush1.msra.mxu0 %v1984
    %2437 = vmatprep.subr.mxu0 0.0
    %2438 = vmatpush1.msra.mxu0 %v1983
    %2439 = vmatprep.subr.mxu0 0.0
    %2440 = vmatpush1.msra.mxu0 %v1982
    %2441 = vmatprep.subr.mxu0 0.0
    %2442 = vmatpush1.msra.mxu0 %v1981
    %2443 = vmatprep.subr.mxu0 0.0
    %2444 = vmatpush1.msra.mxu0 %v1980
    %2445 = vmatprep.subr.mxu0 0.0
    %2446 = vmatpush1.msra.mxu0 %v1979
    %2447 = vmatprep.subr.mxu0 0.0
    %2448 = vmatpush2.msra.mxu0 %v2010
    %2449 = vmatprep.subr.mxu0 0.0
    %2450 = vmatpush2.msra.mxu0 %v2009
    %2451 = vmatprep.subr.mxu0 0.0
    %2452 = vmatpush2.msra.mxu0 %v2008
    %2453 = vmatprep.subr.mxu0 0.0
    %2454 = vmatpush2.msra.mxu0 %v2007
    %2455 = vmatprep.subr.mxu0 0.0
    %2456 = vmatpush2.msra.mxu0 %v2006
    %2457 = vmatprep.subr.mxu0 0.0
    %2458 = vmatpush2.msra.mxu0 %v2005
    %2459 = vmatprep.subr.mxu0 0.0
    %2460 = vmatpush2.msra.mxu0 %v2004
    %2461 = vmatprep.subr.mxu0 0.0
    %2462 = vmatpush2.msra.mxu0 %v2003
    %2463 = vmatprep.subr.mxu0 0.0
    %2464 = vmatpush2.msra.mxu0 %v2002
    %2465 = vmatprep.subr.mxu0 0.0
    %2466 = vmatpush2.msra.mxu0 %v2001
    %2467 = vmatprep.subr.mxu0 0.0
    %2468 = vmatpush2.msra.mxu0 %v2000
    %2469 = vmatprep.subr.mxu0 0.0
    %2470 = vmatpush2.msra.mxu0 %v1999
    %2471 = vmatprep.subr.mxu0 0.0
    %2472 = vmatpush2.msra.mxu0 %v1998
    %2473 = vmatprep.subr.mxu0 0.0
    %2474 = vmatpush2.msra.mxu0 %v1997
    %2475 = vmatprep.subr.mxu0 0.0
    %2476 = vmatpush2.msra.mxu0 %v1996
    %2477 = vmatprep.subr.mxu0 0.0
    %2478 = vmatpush2.msra.mxu0 %v1995
    %2479 = vmatprep.mubr.f32.mxu0 %v2400
    %2480 = vmatmul.mubr.f32.gmra.mxu0 %v2393
    %v2481 = vpop.f32.mrf.mxu0
    %v2482 = vadd.f32 0.0, %v2481
    %v2483 = vpop.f32.mrf.mxu0
    %2484 = vdwg.mxu0
    %2485 = vmatprep.subr.mxu0 0.0
    %2486 = vmatpush1.msra.mxu0 %v2026
    %2487 = vmatprep.subr.mxu0 0.0
    %2488 = vmatpush1.msra.mxu0 %v2025
    %2489 = vmatprep.subr.mxu0 0.0
    %2490 = vmatpush1.msra.mxu0 %v2024
    %2491 = vmatprep.subr.mxu0 0.0
    %2492 = vmatpush1.msra.mxu0 %v2023
    %2493 = vmatprep.subr.mxu0 0.0
    %2494 = vmatpush1.msra.mxu0 %v2022
    %2495 = vmatprep.subr.mxu0 0.0
    %2496 = vmatpush1.msra.mxu0 %v2021
    %2497 = vmatprep.subr.mxu0 0.0
    %2498 = vmatpush1.msra.mxu0 %v2020
    %2499 = vmatprep.subr.mxu0 0.0
    %2500 = vmatpush1.msra.mxu0 %v2019
    %2501 = vmatprep.subr.mxu0 0.0
    %2502 = vmatpush1.msra.mxu0 %v2018
    %2503 = vmatprep.subr.mxu0 0.0
    %2504 = vmatpush1.msra.mxu0 %v2017
    %2505 = vmatprep.subr.mxu0 0.0
    %2506 = vmatpush1.msra.mxu0 %v2016
    %2507 = vmatprep.subr.mxu0 0.0
    %2508 = vmatpush1.msra.mxu0 %v2015
    %2509 = vmatprep.subr.mxu0 0.0
    %2510 = vmatpush1.msra.mxu0 %v2014
    %2511 = vmatprep.subr.mxu0 0.0
    %2512 = vmatpush1.msra.mxu0 %v2013
    %2513 = vmatprep.subr.mxu0 0.0
    %2514 = vmatpush1.msra.mxu0 %v2012
    %2515 = vmatprep.subr.mxu0 0.0
    %2516 = vmatpush1.msra.mxu0 %v2011
    %2517 = vmatprep.subr.mxu0 0.0
    %2518 = vmatpush2.msra.mxu0 %v2042
    %2519 = vmatprep.subr.mxu0 0.0
    %2520 = vmatpush2.msra.mxu0 %v2041
    %2521 = vmatprep.subr.mxu0 0.0
    %2522 = vmatpush2.msra.mxu0 %v2040
    %2523 = vmatprep.subr.mxu0 0.0
    %2524 = vmatpush2.msra.mxu0 %v2039
    %2525 = vmatprep.subr.mxu0 0.0
    %2526 = vmatpush2.msra.mxu0 %v2038
    %2527 = vmatprep.subr.mxu0 0.0
    %2528 = vmatpush2.msra.mxu0 %v2037
    %2529 = vmatprep.subr.mxu0 0.0
    %2530 = vmatpush2.msra.mxu0 %v2036
    %2531 = vmatprep.subr.mxu0 0.0
    %2532 = vmatpush2.msra.mxu0 %v2035
    %2533 = vmatprep.subr.mxu0 0.0
    %2534 = vmatpush2.msra.mxu0 %v2034
    %2535 = vmatprep.subr.mxu0 0.0
    %2536 = vmatpush2.msra.mxu0 %v2033
    %2537 = vmatprep.subr.mxu0 0.0
    %2538 = vmatpush2.msra.mxu0 %v2032
    %2539 = vmatprep.subr.mxu0 0.0
    %2540 = vmatpush2.msra.mxu0 %v2031
    %2541 = vmatprep.subr.mxu0 0.0
    %2542 = vmatpush2.msra.mxu0 %v2030
    %2543 = vmatprep.subr.mxu0 0.0
    %2544 = vmatpush2.msra.mxu0 %v2029
    %2545 = vmatprep.subr.mxu0 0.0
    %2546 = vmatpush2.msra.mxu0 %v2028
    %2547 = vmatprep.subr.mxu0 0.0
    %2548 = vmatpush2.msra.mxu0 %v2027
    %2549 = vmatprep.mubr.f32.mxu0 %v2414
    %2550 = vmatmul.mubr.f32.gmra.mxu0 %v2407
    %v2551 = vpop.f32.mrf.mxu0
    %v2552 = vadd.f32 %v2482, %v2551
    %v2553 = vpop.f32.mrf.mxu0
    %2554 = vdwg.mxu0
    %v2555 = vmul.f32 %v2552, 0.0078125
    %v2556 = vld [vmem:[%s4] sm:$0x1]
    %v2557 = vadd.f32 %v2555, 1e-05
    %v2558 = vrsqrt.pop %v2557
    %v2559 = vmul.f32 %v2556, %v2558
    %v2561 = vsel %vm2217, %v2559, 0
    %2563 = vmatprep.subr.mxu0 0.0
    %2564 = vmatpush1.msra.mxu0 0.0
    %2565 = vmatprep.subr.mxu0 0.0
    %2566 = vmatpush1.msra.mxu0 0.0
    %2567 = vmatprep.subr.mxu0 0.0
    %2568 = vmatpush1.msra.mxu0 0.0
    %2569 = vmatprep.subr.mxu0 0.0
    %2570 = vmatpush1.msra.mxu0 0.0
    %2571 = vmatprep.subr.mxu0 0.0
    %2572 = vmatpush1.msra.mxu0 0.0
    %2573 = vmatprep.subr.mxu0 0.0
    %2574 = vmatpush1.msra.mxu0 0.0
    %2575 = vmatprep.subr.mxu0 0.0
    %2576 = vmatpush1.msra.mxu0 0.0
    %2577 = vmatprep.subr.mxu0 0.0
    %2578 = vmatpush1.msra.mxu0 0.0
    %2579 = vmatprep.subr.mxu0 0.0
    %2580 = vmatpush1.msra.mxu0 0.0
    %2581 = vmatprep.subr.mxu0 0.0
    %2582 = vmatpush1.msra.mxu0 0.0
    %2583 = vmatprep.subr.mxu0 0.0
    %2584 = vmatpush1.msra.mxu0 0.0
    %2585 = vmatprep.subr.mxu0 0.0
    %2586 = vmatpush1.msra.mxu0 0.0
    %2587 = vmatprep.subr.mxu0 0.0
    %2588 = vmatpush1.msra.mxu0 0.0
    %2589 = vmatprep.subr.mxu0 0.0
    %2590 = vmatpush1.msra.mxu0 0.0
    %2591 = vmatprep.subr.mxu0 0.0
    %2592 = vmatpush1.msra.mxu0 0.0
    %2593 = vmatprep.subr.mxu0 %v2044
    %2594 = vmatpush1.msra.mxu0 %v2043
    %2595 = vmatprep.subr.mxu0 0.0
    %2596 = vmatpush2.msra.mxu0 0.0
    %2597 = vmatprep.subr.mxu0 0.0
    %2598 = vmatpush2.msra.mxu0 0.0
    %2599 = vmatprep.subr.mxu0 0.0
    %2600 = vmatpush2.msra.mxu0 0.0
    %2601 = vmatprep.subr.mxu0 0.0
    %2602 = vmatpush2.msra.mxu0 0.0
    %2603 = vmatprep.subr.mxu0 0.0
    %2604 = vmatpush2.msra.mxu0 0.0
    %2605 = vmatprep.subr.mxu0 0.0
    %2606 = vmatpush2.msra.mxu0 0.0
    %2607 = vmatprep.subr.mxu0 0.0
    %2608 = vmatpush2.msra.mxu0 0.0
    %2609 = vmatprep.subr.mxu0 0.0
    %2610 = vmatpush2.msra.mxu0 0.0
    %2611 = vmatprep.subr.mxu0 0.0
    %2612 = vmatpush2.msra.mxu0 0.0
    %2613 = vmatprep.subr.mxu0 0.0
    %2614 = vmatpush2.msra.mxu0 0.0
    %2615 = vmatprep.subr.mxu0 0.0
    %2616 = vmatpush2.msra.mxu0 0.0
    %2617 = vmatprep.subr.mxu0 0.0
    %2618 = vmatpush2.msra.mxu0 0.0
    %2619 = vmatprep.subr.mxu0 0.0
    %2620 = vmatpush2.msra.mxu0 0.0
    %2621 = vmatprep.subr.mxu0 0.0
    %2622 = vmatpush2.msra.mxu0 0.0
    %2623 = vmatprep.subr.mxu0 0.0
    %2624 = vmatpush2.msra.mxu0 0.0
    %2625 = vmatprep.subr.mxu0 0.0
    %2626 = vmatpush2.msra.mxu0 0.0
    %2627 = vmatprep.mubr.f32.mxu0 0.0
    %2628 = vmatmul.mubr.f32.gmra.mxu0 %v2561
    %v2629 = vpop.f32.mrf.mxu0
    %v2630 = vadd.f32 0.0, %v2629
    %v2631 = vpop.f32.mrf.mxu0
    %v2632 = vadd.f32 0.0, %v2631
    %2633 = vdwg.mxu0
    %2634 = vmatprep.subr.mxu0 0.0
    %2635 = vmatpush1.msra.mxu0 0.0
    %2636 = vmatprep.subr.mxu0 0.0
    %2637 = vmatpush1.msra.mxu0 0.0
    %2638 = vmatprep.subr.mxu0 0.0
    %2639 = vmatpush1.msra.mxu0 0.0
    %2640 = vmatprep.subr.mxu0 0.0
    %2641 = vmatpush1.msra.mxu0 0.0
    %2642 = vmatprep.subr.mxu0 0.0
    %2643 = vmatpush1.msra.mxu0 0.0
    %2644 = vmatprep.subr.mxu0 0.0
    %2645 = vmatpush1.msra.mxu0 0.0
    %2646 = vmatprep.subr.mxu0 0.0
    %2647 = vmatpush1.msra.mxu0 0.0
    %2648 = vmatprep.subr.mxu0 0.0
    %2649 = vmatpush1.msra.mxu0 0.0
    %2650 = vmatprep.subr.mxu0 0.0
    %2651 = vmatpush1.msra.mxu0 0.0
    %2652 = vmatprep.subr.mxu0 0.0
    %2653 = vmatpush1.msra.mxu0 0.0
    %2654 = vmatprep.subr.mxu0 0.0
    %2655 = vmatpush1.msra.mxu0 0.0
    %2656 = vmatprep.subr.mxu0 0.0
    %2657 = vmatpush1.msra.mxu0 0.0
    %2658 = vmatprep.subr.mxu0 0.0
    %2659 = vmatpush1.msra.mxu0 0.0
    %2660 = vmatprep.subr.mxu0 0.0
    %2661 = vmatpush1.msra.mxu0 0.0
    %2662 = vmatprep.subr.mxu0 0.0
    %2663 = vmatpush1.msra.mxu0 0.0
    %2664 = vmatprep.subr.mxu0 %v2046
    %2665 = vmatpush1.msra.mxu0 %v2045
    %2666 = vmatprep.subr.mxu0 0.0
    %2667 = vmatpush2.msra.mxu0 0.0
    %2668 = vmatprep.subr.mxu0 0.0
    %2669 = vmatpush2.msra.mxu0 0.0
    %2670 = vmatprep.subr.mxu0 0.0
    %2671 = vmatpush2.msra.mxu0 0.0
    %2672 = vmatprep.subr.mxu0 0.0
    %2673 = vmatpush2.msra.mxu0 0.0
    %2674 = vmatprep.subr.mxu0 0.0
    %2675 = vmatpush2.msra.mxu0 0.0
    %2676 = vmatprep.subr.mxu0 0.0
    %2677 = vmatpush2.msra.mxu0 0.0
    %2678 = vmatprep.subr.mxu0 0.0
    %2679 = vmatpush2.msra.mxu0 0.0
    %2680 = vmatprep.subr.mxu0 0.0
    %2681 = vmatpush2.msra.mxu0 0.0
    %2682 = vmatprep.subr.mxu0 0.0
    %2683 = vmatpush2.msra.mxu0 0.0
    %2684 = vmatprep.subr.mxu0 0.0
    %2685 = vmatpush2.msra.mxu0 0.0
    %2686 = vmatprep.subr.mxu0 0.0
    %2687 = vmatpush2.msra.mxu0 0.0
    %2688 = vmatprep.subr.mxu0 0.0
    %2689 = vmatpush2.msra.mxu0 0.0
    %2690 = vmatprep.subr.mxu0 0.0
    %2691 = vmatpush2.msra.mxu0 0.0
    %2692 = vmatprep.subr.mxu0 0.0
    %2693 = vmatpush2.msra.mxu0 0.0
    %2694 = vmatprep.subr.mxu0 0.0
    %2695 = vmatpush2.msra.mxu0 0.0
    %2696 = vmatprep.subr.mxu0 0.0
    %2697 = vmatpush2.msra.mxu0 0.0
    %2698 = vmatprep.mubr.f32.mxu0 0.0
    %2699 = vmatmul.mubr.f32.gmra.mxu0 %v2561
    %v2700 = vpop.f32.mrf.mxu0
    %v2701 = vadd.f32 0.0, %v2700
    %v2702 = vpop.f32.mrf.mxu0
    %v2703 = vadd.f32 0.0, %v2702
    %2704 = vdwg.mxu0
    %v2705 = vld [vmem:[%s5] sm:$0x1]
    %v2707 = vsel %vm2217, %v2705, 0
    %2709 = vmatprep.subr.mxu0 0.0
    %2710 = vmatpush1.msra.mxu0 0.0
    %2711 = vmatprep.subr.mxu0 0.0
    %2712 = vmatpush1.msra.mxu0 0.0
    %2713 = vmatprep.subr.mxu0 0.0
    %2714 = vmatpush1.msra.mxu0 0.0
    %2715 = vmatprep.subr.mxu0 0.0
    %2716 = vmatpush1.msra.mxu0 0.0
    %2717 = vmatprep.subr.mxu0 0.0
    %2718 = vmatpush1.msra.mxu0 0.0
    %2719 = vmatprep.subr.mxu0 0.0
    %2720 = vmatpush1.msra.mxu0 0.0
    %2721 = vmatprep.subr.mxu0 0.0
    %2722 = vmatpush1.msra.mxu0 0.0
    %2723 = vmatprep.subr.mxu0 0.0
    %2724 = vmatpush1.msra.mxu0 0.0
    %2725 = vmatprep.subr.mxu0 0.0
    %2726 = vmatpush1.msra.mxu0 0.0
    %2727 = vmatprep.subr.mxu0 0.0
    %2728 = vmatpush1.msra.mxu0 0.0
    %2729 = vmatprep.subr.mxu0 0.0
    %2730 = vmatpush1.msra.mxu0 0.0
    %2731 = vmatprep.subr.mxu0 0.0
    %2732 = vmatpush1.msra.mxu0 0.0
    %2733 = vmatprep.subr.mxu0 0.0
    %2734 = vmatpush1.msra.mxu0 0.0
    %2735 = vmatprep.subr.mxu0 0.0
    %2736 = vmatpush1.msra.mxu0 0.0
    %2737 = vmatprep.subr.mxu0 0.0
    %2738 = vmatpush1.msra.mxu0 0.0
    %2739 = vmatprep.subr.mxu0 %v2044
    %2740 = vmatpush1.msra.mxu0 %v2043
    %2741 = vmatprep.subr.mxu0 0.0
    %2742 = vmatpush2.msra.mxu0 0.0
    %2743 = vmatprep.subr.mxu0 0.0
    %2744 = vmatpush2.msra.mxu0 0.0
    %2745 = vmatprep.subr.mxu0 0.0
    %2746 = vmatpush2.msra.mxu0 0.0
    %2747 = vmatprep.subr.mxu0 0.0
    %2748 = vmatpush2.msra.mxu0 0.0
    %2749 = vmatprep.subr.mxu0 0.0
    %2750 = vmatpush2.msra.mxu0 0.0
    %2751 = vmatprep.subr.mxu0 0.0
    %2752 = vmatpush2.msra.mxu0 0.0
    %2753 = vmatprep.subr.mxu0 0.0
    %2754 = vmatpush2.msra.mxu0 0.0
    %2755 = vmatprep.subr.mxu0 0.0
    %2756 = vmatpush2.msra.mxu0 0.0
    %2757 = vmatprep.subr.mxu0 0.0
    %2758 = vmatpush2.msra.mxu0 0.0
    %2759 = vmatprep.subr.mxu0 0.0
    %2760 = vmatpush2.msra.mxu0 0.0
    %2761 = vmatprep.subr.mxu0 0.0
    %2762 = vmatpush2.msra.mxu0 0.0
    %2763 = vmatprep.subr.mxu0 0.0
    %2764 = vmatpush2.msra.mxu0 0.0
    %2765 = vmatprep.subr.mxu0 0.0
    %2766 = vmatpush2.msra.mxu0 0.0
    %2767 = vmatprep.subr.mxu0 0.0
    %2768 = vmatpush2.msra.mxu0 0.0
    %2769 = vmatprep.subr.mxu0 0.0
    %2770 = vmatpush2.msra.mxu0 0.0
    %2771 = vmatprep.subr.mxu0 0.0
    %2772 = vmatpush2.msra.mxu0 0.0
    %2773 = vmatprep.mubr.f32.mxu0 0.0
    %2774 = vmatmul.mubr.f32.gmra.mxu0 %v2707
    %v2775 = vpop.f32.mrf.mxu0
    %v2776 = vadd.f32 0.0, %v2775
    %v2777 = vpop.f32.mrf.mxu0
    %v2778 = vadd.f32 0.0, %v2777
    %2779 = vdwg.mxu0
    %2780 = vmatprep.subr.mxu0 0.0
    %2781 = vmatpush1.msra.mxu0 0.0
    %2782 = vmatprep.subr.mxu0 0.0
    %2783 = vmatpush1.msra.mxu0 0.0
    %2784 = vmatprep.subr.mxu0 0.0
    %2785 = vmatpush1.msra.mxu0 0.0
    %2786 = vmatprep.subr.mxu0 0.0
    %2787 = vmatpush1.msra.mxu0 0.0
    %2788 = vmatprep.subr.mxu0 0.0
    %2789 = vmatpush1.msra.mxu0 0.0
    %2790 = vmatprep.subr.mxu0 0.0
    %2791 = vmatpush1.msra.mxu0 0.0
    %2792 = vmatprep.subr.mxu0 0.0
    %2793 = vmatpush1.msra.mxu0 0.0
    %2794 = vmatprep.subr.mxu0 0.0
    %2795 = vmatpush1.msra.mxu0 0.0
    %2796 = vmatprep.subr.mxu0 0.0
    %2797 = vmatpush1.msra.mxu0 0.0
    %2798 = vmatprep.subr.mxu0 0.0
    %2799 = vmatpush1.msra.mxu0 0.0
    %2800 = vmatprep.subr.mxu0 0.0
    %2801 = vmatpush1.msra.mxu0 0.0
    %2802 = vmatprep.subr.mxu0 0.0
    %2803 = vmatpush1.msra.mxu0 0.0
    %2804 = vmatprep.subr.mxu0 0.0
    %2805 = vmatpush1.msra.mxu0 0.0
    %2806 = vmatprep.subr.mxu0 0.0
    %2807 = vmatpush1.msra.mxu0 0.0
    %2808 = vmatprep.subr.mxu0 0.0
    %2809 = vmatpush1.msra.mxu0 0.0
    %2810 = vmatprep.subr.mxu0 %v2046
    %2811 = vmatpush1.msra.mxu0 %v2045
    %2812 = vmatprep.subr.mxu0 0.0
    %2813 = vmatpush2.msra.mxu0 0.0
    %2814 = vmatprep.subr.mxu0 0.0
    %2815 = vmatpush2.msra.mxu0 0.0
    %2816 = vmatprep.subr.mxu0 0.0
    %2817 = vmatpush2.msra.mxu0 0.0
    %2818 = vmatprep.subr.mxu0 0.0
    %2819 = vmatpush2.msra.mxu0 0.0
    %2820 = vmatprep.subr.mxu0 0.0
    %2821 = vmatpush2.msra.mxu0 0.0
    %2822 = vmatprep.subr.mxu0 0.0
    %2823 = vmatpush2.msra.mxu0 0.0
    %2824 = vmatprep.subr.mxu0 0.0
    %2825 = vmatpush2.msra.mxu0 0.0
    %2826 = vmatprep.subr.mxu0 0.0
    %2827 = vmatpush2.msra.mxu0 0.0
    %2828 = vmatprep.subr.mxu0 0.0
    %2829 = vmatpush2.msra.mxu0 0.0
    %2830 = vmatprep.subr.mxu0 0.0
    %2831 = vmatpush2.msra.mxu0 0.0
    %2832 = vmatprep.subr.mxu0 0.0
    %2833 = vmatpush2.msra.mxu0 0.0
    %2834 = vmatprep.subr.mxu0 0.0
    %2835 = vmatpush2.msra.mxu0 0.0
    %2836 = vmatprep.subr.mxu0 0.0
    %2837 = vmatpush2.msra.mxu0 0.0
    %2838 = vmatprep.subr.mxu0 0.0
    %2839 = vmatpush2.msra.mxu0 0.0
    %2840 = vmatprep.subr.mxu0 0.0
    %2841 = vmatpush2.msra.mxu0 0.0
    %2842 = vmatprep.subr.mxu0 0.0
    %2843 = vmatpush2.msra.mxu0 0.0
    %2844 = vmatprep.mubr.f32.mxu0 0.0
    %2845 = vmatmul.mubr.f32.gmra.mxu0 %v2707
    %v2846 = vpop.f32.mrf.mxu0
    %v2847 = vadd.f32 0.0, %v2846
    %v2848 = vpop.f32.mrf.mxu0
    %v2849 = vadd.f32 0.0, %v2848
    %2850 = vdwg.mxu0
    %v2851 = vlaneseq
    %v2852 = vshrl.u32 %v2851, 7
    %v2853 = vsub.s32 0, %v2852
    %v2854 = vrot.slane %v2630, %v2853
    %v2855 = vlaneseq
    %v2856 = vshrl.u32 %v2855, 7
    %v2857 = vsub.s32 0, %v2856
    %v2858 = vrot.slane %v2632, %v2857
    %v2859 = vlaneseq
    %v2860 = vshrl.u32 %v2859, 7
    %v2861 = vsub.s32 0, %v2860
    %v2862 = vrot.slane %v2701, %v2861
    %v2863 = vlaneseq
    %v2864 = vshrl.u32 %v2863, 7
    %v2865 = vsub.s32 0, %v2864
    %v2866 = vrot.slane %v2703, %v2865
    %v2867 = vmul.f32 %v2379, %v2854
    %v2868 = vmul.f32 %v2380, %v2858
    %v2869 = vmul.f32 %v2381, %v2862
    %v2870 = vmul.f32 %v2382, %v2866
    %v2871 = vlaneseq
    %v2872 = vshrl.u32 %v2871, 7
    %v2873 = vsub.s32 0, %v2872
    %v2874 = vrot.slane %v2776, %v2873
    %v2875 = vlaneseq
    %v2876 = vshrl.u32 %v2875, 7
    %v2877 = vsub.s32 0, %v2876
    %v2878 = vrot.slane %v2778, %v2877
    %v2879 = vlaneseq
    %v2880 = vshrl.u32 %v2879, 7
    %v2881 = vsub.s32 0, %v2880
    %v2882 = vrot.slane %v2847, %v2881
    %v2883 = vlaneseq
    %v2884 = vshrl.u32 %v2883, 7
    %v2885 = vsub.s32 0, %v2884
    %v2886 = vrot.slane %v2849, %v2885
    %v2887 = vadd.f32 %v2867, %v2874
    %v2888 = vadd.f32 %v2868, %v2878
    %v2889 = vadd.f32 %v2869, %v2882
    %v2890 = vadd.f32 %v2870, %v2886
    %vm2891 = vcmp.gt.f32.partialorder %v2887, 0.0
    %vm2892 = vcmp.gt.f32.partialorder %v2888, 0.0
    %vm2893 = vcmp.gt.f32.partialorder %v2889, 0.0
    %vm2894 = vcmp.gt.f32.partialorder %v2890, 0.0
    %v2895 = vmul.f32 %v2887, 0.2
    %v2896 = vmul.f32 %v2888, 0.2
    %v2897 = vmul.f32 %v2889, 0.2
    %v2898 = vmul.f32 %v2890, 0.2
    %v2899 = vsel %vm2891, %v2887, %v2895
    %v2900 = vsel %vm2892, %v2888, %v2896
    %v2901 = vsel %vm2893, %v2889, %v2897
    %v2902 = vsel %vm2894, %v2890, %v2898
    %v2903 = vpack.c.bf16 %v2899, %v2899
    %v2904 = vpack.c.bf16 %v2900, %v2900
    %v2905 = vpack.c.bf16 %v2901, %v2901
    %v2906 = vpack.c.bf16 %v2902, %v2902
    %v2907 = vld [vmem:[%s6] sm:$0xff]
    %v2908 = vld [vmem:[%s6 + $0x8] sm:$0xff]
    %v2909 = vld [vmem:[%s6 + $0x10] sm:$0xff]
    %v2910 = vld [vmem:[%s6 + $0x18] sm:$0xff]
    %v2911 = vld [vmem:[%s6 + $0x20] sm:$0xff]
    %v2912 = vld [vmem:[%s6 + $0x28] sm:$0xff]
    %v2913 = vld [vmem:[%s6 + $0x30] sm:$0xff]
    %v2914 = vld [vmem:[%s6 + $0x38] sm:$0xff]
    %v2915 = vld [vmem:[%s6 + $0x40] sm:$0xff]
    %v2916 = vld [vmem:[%s6 + $0x48] sm:$0xff]
    %v2917 = vld [vmem:[%s6 + $0x50] sm:$0xff]
    %v2918 = vld [vmem:[%s6 + $0x58] sm:$0xff]
    %v2919 = vld [vmem:[%s6 + $0x60] sm:$0xff]
    %v2920 = vld [vmem:[%s6 + $0x68] sm:$0xff]
    %v2921 = vld [vmem:[%s6 + $0x70] sm:$0xff]
    %v2922 = vld [vmem:[%s6 + $0x78] sm:$0xff]
    %v2923 = vld [vmem:[%s6 + $0x80] sm:$0xff]
    %v2924 = vld [vmem:[%s6 + $0x88] sm:$0xff]
    %v2925 = vld [vmem:[%s6 + $0x90] sm:$0xff]
    %v2926 = vld [vmem:[%s6 + $0x98] sm:$0xff]
    %v2927 = vld [vmem:[%s6 + $0xa0] sm:$0xff]
    %v2928 = vld [vmem:[%s6 + $0xa8] sm:$0xff]
    %v2929 = vld [vmem:[%s6 + $0xb0] sm:$0xff]
    %v2930 = vld [vmem:[%s6 + $0xb8] sm:$0xff]
    %v2931 = vld [vmem:[%s6 + $0xc0] sm:$0xff]
    %v2932 = vld [vmem:[%s6 + $0xc8] sm:$0xff]
    %v2933 = vld [vmem:[%s6 + $0xd0] sm:$0xff]
    %v2934 = vld [vmem:[%s6 + $0xd8] sm:$0xff]
    %v2935 = vld [vmem:[%s6 + $0xe0] sm:$0xff]
    %v2936 = vld [vmem:[%s6 + $0xe8] sm:$0xff]
    %v2937 = vld [vmem:[%s6 + $0xf0] sm:$0xff]
    %v2938 = vld [vmem:[%s6 + $0xf8] sm:$0xff]
    %v2939 = vld [vmem:[%s6 + $0x100] sm:$0xff]
    %v2940 = vld [vmem:[%s6 + $0x108] sm:$0xff]
    %v2941 = vld [vmem:[%s6 + $0x110] sm:$0xff]
    %v2942 = vld [vmem:[%s6 + $0x118] sm:$0xff]
    %v2943 = vld [vmem:[%s6 + $0x120] sm:$0xff]
    %v2944 = vld [vmem:[%s6 + $0x128] sm:$0xff]
    %v2945 = vld [vmem:[%s6 + $0x130] sm:$0xff]
    %v2946 = vld [vmem:[%s6 + $0x138] sm:$0xff]
    %v2947 = vld [vmem:[%s6 + $0x140] sm:$0xff]
    %v2948 = vld [vmem:[%s6 + $0x148] sm:$0xff]
    %v2949 = vld [vmem:[%s6 + $0x150] sm:$0xff]
    %v2950 = vld [vmem:[%s6 + $0x158] sm:$0xff]
    %v2951 = vld [vmem:[%s6 + $0x160] sm:$0xff]
    %v2952 = vld [vmem:[%s6 + $0x168] sm:$0xff]
    %v2953 = vld [vmem:[%s6 + $0x170] sm:$0xff]
    %v2954 = vld [vmem:[%s6 + $0x178] sm:$0xff]
    %v2955 = vld [vmem:[%s6 + $0x180] sm:$0xff]
    %v2956 = vld [vmem:[%s6 + $0x188] sm:$0xff]
    %v2957 = vld [vmem:[%s6 + $0x190] sm:$0xff]
    %v2958 = vld [vmem:[%s6 + $0x198] sm:$0xff]
    %v2959 = vld [vmem:[%s6 + $0x1a0] sm:$0xff]
    %v2960 = vld [vmem:[%s6 + $0x1a8] sm:$0xff]
    %v2961 = vld [vmem:[%s6 + $0x1b0] sm:$0xff]
    %v2962 = vld [vmem:[%s6 + $0x1b8] sm:$0xff]
    %v2963 = vld [vmem:[%s6 + $0x1c0] sm:$0xff]
    %v2964 = vld [vmem:[%s6 + $0x1c8] sm:$0xff]
    %v2965 = vld [vmem:[%s6 + $0x1d0] sm:$0xff]
    %v2966 = vld [vmem:[%s6 + $0x1d8] sm:$0xff]
    %v2967 = vld [vmem:[%s6 + $0x1e0] sm:$0xff]
    %v2968 = vld [vmem:[%s6 + $0x1e8] sm:$0xff]
    %v2969 = vld [vmem:[%s6 + $0x1f0] sm:$0xff]
    %v2970 = vld [vmem:[%s6 + $0x1f8] sm:$0xff]
    %v3035 = vunpack.c.l.b16 %v2907
    %v3036 = vunpack.c.h.b16 %v2907
    %v3037 = vunpack.c.l.b16 %v2908
    %v3038 = vunpack.c.h.b16 %v2908
    %v3039 = vunpack.c.l.b16 %v2909
    %v3040 = vunpack.c.h.b16 %v2909
    %v3041 = vunpack.c.l.b16 %v2910
    %v3042 = vunpack.c.h.b16 %v2910
    %v3043 = vunpack.c.l.b16 %v2911
    %v3044 = vunpack.c.h.b16 %v2911
    %v3045 = vunpack.c.l.b16 %v2912
    %v3046 = vunpack.c.h.b16 %v2912
    %v3047 = vunpack.c.l.b16 %v2913
    %v3048 = vunpack.c.h.b16 %v2913
    %v3049 = vunpack.c.l.b16 %v2914
    %v3050 = vunpack.c.h.b16 %v2914
    %v3051 = vunpack.c.l.b16 %v2915
    %v3052 = vunpack.c.h.b16 %v2915
    %v3053 = vunpack.c.l.b16 %v2916
    %v3054 = vunpack.c.h.b16 %v2916
    %v3055 = vunpack.c.l.b16 %v2917
    %v3056 = vunpack.c.h.b16 %v2917
    %v3057 = vunpack.c.l.b16 %v2918
    %v3058 = vunpack.c.h.b16 %v2918
    %v3059 = vunpack.c.l.b16 %v2919
    %v3060 = vunpack.c.h.b16 %v2919
    %v3061 = vunpack.c.l.b16 %v2920
    %v3062 = vunpack.c.h.b16 %v2920
    %v3063 = vunpack.c.l.b16 %v2921
    %v3064 = vunpack.c.h.b16 %v2921
    %v3065 = vunpack.c.l.b16 %v2922
    %v3066 = vunpack.c.h.b16 %v2922
    %v3067 = vunpack.c.l.b16 %v2923
    %v3068 = vunpack.c.h.b16 %v2923
    %v3069 = vunpack.c.l.b16 %v2924
    %v3070 = vunpack.c.h.b16 %v2924
    %v3071 = vunpack.c.l.b16 %v2925
    %v3072 = vunpack.c.h.b16 %v2925
    %v3073 = vunpack.c.l.b16 %v2926
    %v3074 = vunpack.c.h.b16 %v2926
    %v3075 = vunpack.c.l.b16 %v2927
    %v3076 = vunpack.c.h.b16 %v2927
    %v3077 = vunpack.c.l.b16 %v2928
    %v3078 = vunpack.c.h.b16 %v2928
    %v3079 = vunpack.c.l.b16 %v2929
    %v3080 = vunpack.c.h.b16 %v2929
    %v3081 = vunpack.c.l.b16 %v2930
    %v3082 = vunpack.c.h.b16 %v2930
    %v3083 = vunpack.c.l.b16 %v2931
    %v3084 = vunpack.c.h.b16 %v2931
    %v3085 = vunpack.c.l.b16 %v2932
    %v3086 = vunpack.c.h.b16 %v2932
    %v3087 = vunpack.c.l.b16 %v2933
    %v3088 = vunpack.c.h.b16 %v2933
    %v3089 = vunpack.c.l.b16 %v2934
    %v3090 = vunpack.c.h.b16 %v2934
    %v3091 = vunpack.c.l.b16 %v2935
    %v3092 = vunpack.c.h.b16 %v2935
    %v3093 = vunpack.c.l.b16 %v2936
    %v3094 = vunpack.c.h.b16 %v2936
    %v3095 = vunpack.c.l.b16 %v2937
    %v3096 = vunpack.c.h.b16 %v2937
    %v3097 = vunpack.c.l.b16 %v2938
    %v3098 = vunpack.c.h.b16 %v2938
    %v3099 = vunpack.c.l.b16 %v2939
    %v3100 = vunpack.c.h.b16 %v2939
    %v3101 = vunpack.c.l.b16 %v2940
    %v3102 = vunpack.c.h.b16 %v2940
    %v3103 = vunpack.c.l.b16 %v2941
    %v3104 = vunpack.c.h.b16 %v2941
    %v3105 = vunpack.c.l.b16 %v2942
    %v3106 = vunpack.c.h.b16 %v2942
    %v3107 = vunpack.c.l.b16 %v2943
    %v3108 = vunpack.c.h.b16 %v2943
    %v3109 = vunpack.c.l.b16 %v2944
    %v3110 = vunpack.c.h.b16 %v2944
    %v3111 = vunpack.c.l.b16 %v2945
    %v3112 = vunpack.c.h.b16 %v2945
    %v3113 = vunpack.c.l.b16 %v2946
    %v3114 = vunpack.c.h.b16 %v2946
    %v3115 = vunpack.c.l.b16 %v2947
    %v3116 = vunpack.c.h.b16 %v2947
    %v3117 = vunpack.c.l.b16 %v2948
    %v3118 = vunpack.c.h.b16 %v2948
    %v3119 = vunpack.c.l.b16 %v2949
    %v3120 = vunpack.c.h.b16 %v2949
    %v3121 = vunpack.c.l.b16 %v2950
    %v3122 = vunpack.c.h.b16 %v2950
    %v3123 = vunpack.c.l.b16 %v2951
    %v3124 = vunpack.c.h.b16 %v2951
    %v3125 = vunpack.c.l.b16 %v2952
    %v3126 = vunpack.c.h.b16 %v2952
    %v3127 = vunpack.c.l.b16 %v2953
    %v3128 = vunpack.c.h.b16 %v2953
    %v3129 = vunpack.c.l.b16 %v2954
    %v3130 = vunpack.c.h.b16 %v2954
    %v3131 = vunpack.c.l.b16 %v2955
    %v3132 = vunpack.c.h.b16 %v2955
    %v3133 = vunpack.c.l.b16 %v2956
    %v3134 = vunpack.c.h.b16 %v2956
    %v3135 = vunpack.c.l.b16 %v2957
    %v3136 = vunpack.c.h.b16 %v2957
    %v3137 = vunpack.c.l.b16 %v2958
    %v3138 = vunpack.c.h.b16 %v2958
    %v3139 = vunpack.c.l.b16 %v2959
    %v3140 = vunpack.c.h.b16 %v2959
    %v3141 = vunpack.c.l.b16 %v2960
    %v3142 = vunpack.c.h.b16 %v2960
    %v3143 = vunpack.c.l.b16 %v2961
    %v3144 = vunpack.c.h.b16 %v2961
    %v3145 = vunpack.c.l.b16 %v2962
    %v3146 = vunpack.c.h.b16 %v2962
    %v3147 = vunpack.c.l.b16 %v2963
    %v3148 = vunpack.c.h.b16 %v2963
    %v3149 = vunpack.c.l.b16 %v2964
    %v3150 = vunpack.c.h.b16 %v2964
    %v3151 = vunpack.c.l.b16 %v2965
    %v3152 = vunpack.c.h.b16 %v2965
    %v3153 = vunpack.c.l.b16 %v2966
    %v3154 = vunpack.c.h.b16 %v2966
    %v3155 = vunpack.c.l.b16 %v2967
    %v3156 = vunpack.c.h.b16 %v2967
    %v3157 = vunpack.c.l.b16 %v2968
    %v3158 = vunpack.c.h.b16 %v2968
    %v3159 = vunpack.c.l.b16 %v2969
    %v3160 = vunpack.c.h.b16 %v2969
    %v3161 = vunpack.c.l.b16 %v2970
    %v3162 = vunpack.c.h.b16 %v2970
    %v3163 = vpack.c.b16 %v3037, %v3035
    %v3164 = vpack.c.b16 %v3038, %v3036
    %v3165 = vpack.c.b16 %v3041, %v3039
    %v3166 = vpack.c.b16 %v3042, %v3040
    %v3167 = vpack.c.b16 %v3045, %v3043
    %v3168 = vpack.c.b16 %v3046, %v3044
    %v3169 = vpack.c.b16 %v3049, %v3047
    %v3170 = vpack.c.b16 %v3050, %v3048
    %v3171 = vpack.c.b16 %v3053, %v3051
    %v3172 = vpack.c.b16 %v3054, %v3052
    %v3173 = vpack.c.b16 %v3057, %v3055
    %v3174 = vpack.c.b16 %v3058, %v3056
    %v3175 = vpack.c.b16 %v3061, %v3059
    %v3176 = vpack.c.b16 %v3062, %v3060
    %v3177 = vpack.c.b16 %v3065, %v3063
    %v3178 = vpack.c.b16 %v3066, %v3064
    %v3179 = vpack.c.b16 %v3069, %v3067
    %v3180 = vpack.c.b16 %v3070, %v3068
    %v3181 = vpack.c.b16 %v3073, %v3071
    %v3182 = vpack.c.b16 %v3074, %v3072
    %v3183 = vpack.c.b16 %v3077, %v3075
    %v3184 = vpack.c.b16 %v3078, %v3076
    %v3185 = vpack.c.b16 %v3081, %v3079
    %v3186 = vpack.c.b16 %v3082, %v3080
    %v3187 = vpack.c.b16 %v3085, %v3083
    %v3188 = vpack.c.b16 %v3086, %v3084
    %v3189 = vpack.c.b16 %v3089, %v3087
    %v3190 = vpack.c.b16 %v3090, %v3088
    %v3191 = vpack.c.b16 %v3093, %v3091
    %v3192 = vpack.c.b16 %v3094, %v3092
    %v3193 = vpack.c.b16 %v3097, %v3095
    %v3194 = vpack.c.b16 %v3098, %v3096
    %v3195 = vpack.c.b16 %v3101, %v3099
    %v3196 = vpack.c.b16 %v3102, %v3100
    %v3197 = vpack.c.b16 %v3105, %v3103
    %v3198 = vpack.c.b16 %v3106, %v3104
    %v3199 = vpack.c.b16 %v3109, %v3107
    %v3200 = vpack.c.b16 %v3110, %v3108
    %v3201 = vpack.c.b16 %v3113, %v3111
    %v3202 = vpack.c.b16 %v3114, %v3112
    %v3203 = vpack.c.b16 %v3117, %v3115
    %v3204 = vpack.c.b16 %v3118, %v3116
    %v3205 = vpack.c.b16 %v3121, %v3119
    %v3206 = vpack.c.b16 %v3122, %v3120
    %v3207 = vpack.c.b16 %v3125, %v3123
    %v3208 = vpack.c.b16 %v3126, %v3124
    %v3209 = vpack.c.b16 %v3129, %v3127
    %v3210 = vpack.c.b16 %v3130, %v3128
    %v3211 = vpack.c.b16 %v3133, %v3131
    %v3212 = vpack.c.b16 %v3134, %v3132
    %v3213 = vpack.c.b16 %v3137, %v3135
    %v3214 = vpack.c.b16 %v3138, %v3136
    %v3215 = vpack.c.b16 %v3141, %v3139
    %v3216 = vpack.c.b16 %v3142, %v3140
    %v3217 = vpack.c.b16 %v3145, %v3143
    %v3218 = vpack.c.b16 %v3146, %v3144
    %v3219 = vpack.c.b16 %v3149, %v3147
    %v3220 = vpack.c.b16 %v3150, %v3148
    %v3221 = vpack.c.b16 %v3153, %v3151
    %v3222 = vpack.c.b16 %v3154, %v3152
    %v3223 = vpack.c.b16 %v3157, %v3155
    %v3224 = vpack.c.b16 %v3158, %v3156
    %v3225 = vpack.c.b16 %v3161, %v3159
    %v3226 = vpack.c.b16 %v3162, %v3160
    %3291 = vmatprep.subr.bf16.mxu0 %v3178
    %3292 = vmatpush1.bf16.msra.mxu0 %v3177
    %3293 = vmatprep.subr.bf16.mxu0 %v3176
    %3294 = vmatpush1.bf16.msra.mxu0 %v3175
    %3295 = vmatprep.subr.bf16.mxu0 %v3174
    %3296 = vmatpush1.bf16.msra.mxu0 %v3173
    %3297 = vmatprep.subr.bf16.mxu0 %v3172
    %3298 = vmatpush1.bf16.msra.mxu0 %v3171
    %3299 = vmatprep.subr.bf16.mxu0 %v3170
    %3300 = vmatpush1.bf16.msra.mxu0 %v3169
    %3301 = vmatprep.subr.bf16.mxu0 %v3168
    %3302 = vmatpush1.bf16.msra.mxu0 %v3167
    %3303 = vmatprep.subr.bf16.mxu0 %v3166
    %3304 = vmatpush1.bf16.msra.mxu0 %v3165
    %3305 = vmatprep.subr.bf16.mxu0 %v3164
    %3306 = vmatpush1.bf16.msra.mxu0 %v3163
    %3307 = vmatprep.subr.bf16.mxu0 %v3194
    %3308 = vmatpush2.bf16.msra.mxu0 %v3193
    %3309 = vmatprep.subr.bf16.mxu0 %v3192
    %3310 = vmatpush2.bf16.msra.mxu0 %v3191
    %3311 = vmatprep.subr.bf16.mxu0 %v3190
    %3312 = vmatpush2.bf16.msra.mxu0 %v3189
    %3313 = vmatprep.subr.bf16.mxu0 %v3188
    %3314 = vmatpush2.bf16.msra.mxu0 %v3187
    %3315 = vmatprep.subr.bf16.mxu0 %v3186
    %3316 = vmatpush2.bf16.msra.mxu0 %v3185
    %3317 = vmatprep.subr.bf16.mxu0 %v3184
    %3318 = vmatpush2.bf16.msra.mxu0 %v3183
    %3319 = vmatprep.subr.bf16.mxu0 %v3182
    %3320 = vmatpush2.bf16.msra.mxu0 %v3181
    %3321 = vmatprep.subr.bf16.mxu0 %v3180
    %3322 = vmatpush2.bf16.msra.mxu0 %v3179
    %3323 = vmatprep.mubr.bf16.mxu0 %v2904
    %3324 = vmatmul.mubr.bf16.gmra.mxu0 %v2903
    %v3325 = vpop.f32.mrf.mxu0
    %v3326 = vadd.f32 0.0, %v3325
    %v3327 = vpop.f32.mrf.mxu0
    %v3328 = vadd.f32 0.0, %v3327
    %v3329 = vpop.f32.mrf.mxu0
    %v3330 = vpop.f32.mrf.mxu0
    %3331 = vdwg.mxu0
    %3332 = vmatprep.subr.bf16.mxu0 %v3210
    %3333 = vmatpush1.bf16.msra.mxu0 %v3209
    %3334 = vmatprep.subr.bf16.mxu0 %v3208
    %3335 = vmatpush1.bf16.msra.mxu0 %v3207
    %3336 = vmatprep.subr.bf16.mxu0 %v3206
    %3337 = vmatpush1.bf16.msra.mxu0 %v3205
    %3338 = vmatprep.subr.bf16.mxu0 %v3204
    %3339 = vmatpush1.bf16.msra.mxu0 %v3203
    %3340 = vmatprep.subr.bf16.mxu0 %v3202
    %3341 = vmatpush1.bf16.msra.mxu0 %v3201
    %3342 = vmatprep.subr.bf16.mxu0 %v3200
    %3343 = vmatpush1.bf16.msra.mxu0 %v3199
    %3344 = vmatprep.subr.bf16.mxu0 %v3198
    %3345 = vmatpush1.bf16.msra.mxu0 %v3197
    %3346 = vmatprep.subr.bf16.mxu0 %v3196
    %3347 = vmatpush1.bf16.msra.mxu0 %v3195
    %3348 = vmatprep.subr.bf16.mxu0 %v3226
    %3349 = vmatpush2.bf16.msra.mxu0 %v3225
    %3350 = vmatprep.subr.bf16.mxu0 %v3224
    %3351 = vmatpush2.bf16.msra.mxu0 %v3223
    %3352 = vmatprep.subr.bf16.mxu0 %v3222
    %3353 = vmatpush2.bf16.msra.mxu0 %v3221
    %3354 = vmatprep.subr.bf16.mxu0 %v3220
    %3355 = vmatpush2.bf16.msra.mxu0 %v3219
    %3356 = vmatprep.subr.bf16.mxu0 %v3218
    %3357 = vmatpush2.bf16.msra.mxu0 %v3217
    %3358 = vmatprep.subr.bf16.mxu0 %v3216
    %3359 = vmatpush2.bf16.msra.mxu0 %v3215
    %3360 = vmatprep.subr.bf16.mxu0 %v3214
    %3361 = vmatpush2.bf16.msra.mxu0 %v3213
    %3362 = vmatprep.subr.bf16.mxu0 %v3212
    %3363 = vmatpush2.bf16.msra.mxu0 %v3211
    %3364 = vmatprep.mubr.bf16.mxu0 %v2906
    %3365 = vmatmul.mubr.bf16.gmra.mxu0 %v2905
    %v3366 = vpop.f32.mrf.mxu0
    %v3367 = vadd.f32 %v3326, %v3366
    %v3368 = vpop.f32.mrf.mxu0
    %v3369 = vadd.f32 %v3328, %v3368
    %v3370 = vpop.f32.mrf.mxu0
    %v3371 = vpop.f32.mrf.mxu0
    %3372 = vdwg.mxu0
    %v3373 = vld [vmem:[%s7] sm:$0xff]
    %v3374 = vld [vmem:[%s7 + $0x8] sm:$0xff]
    %v3375 = vld [vmem:[%s7 + $0x10] sm:$0xff]
    %v3376 = vld [vmem:[%s7 + $0x18] sm:$0xff]
    %v3377 = vld [vmem:[%s7 + $0x20] sm:$0xff]
    %v3378 = vld [vmem:[%s7 + $0x28] sm:$0xff]
    %v3379 = vld [vmem:[%s7 + $0x30] sm:$0xff]
    %v3380 = vld [vmem:[%s7 + $0x38] sm:$0xff]
    %v3381 = vld [vmem:[%s7 + $0x40] sm:$0xff]
    %v3382 = vld [vmem:[%s7 + $0x48] sm:$0xff]
    %v3383 = vld [vmem:[%s7 + $0x50] sm:$0xff]
    %v3384 = vld [vmem:[%s7 + $0x58] sm:$0xff]
    %v3385 = vld [vmem:[%s7 + $0x60] sm:$0xff]
    %v3386 = vld [vmem:[%s7 + $0x68] sm:$0xff]
    %v3387 = vld [vmem:[%s7 + $0x70] sm:$0xff]
    %v3388 = vld [vmem:[%s7 + $0x78] sm:$0xff]
    %v3389 = vld [vmem:[%s7 + $0x80] sm:$0xff]
    %v3390 = vld [vmem:[%s7 + $0x88] sm:$0xff]
    %v3391 = vld [vmem:[%s7 + $0x90] sm:$0xff]
    %v3392 = vld [vmem:[%s7 + $0x98] sm:$0xff]
    %v3393 = vld [vmem:[%s7 + $0xa0] sm:$0xff]
    %v3394 = vld [vmem:[%s7 + $0xa8] sm:$0xff]
    %v3395 = vld [vmem:[%s7 + $0xb0] sm:$0xff]
    %v3396 = vld [vmem:[%s7 + $0xb8] sm:$0xff]
    %v3397 = vld [vmem:[%s7 + $0xc0] sm:$0xff]
    %v3398 = vld [vmem:[%s7 + $0xc8] sm:$0xff]
    %v3399 = vld [vmem:[%s7 + $0xd0] sm:$0xff]
    %v3400 = vld [vmem:[%s7 + $0xd8] sm:$0xff]
    %v3401 = vld [vmem:[%s7 + $0xe0] sm:$0xff]
    %v3402 = vld [vmem:[%s7 + $0xe8] sm:$0xff]
    %v3403 = vld [vmem:[%s7 + $0xf0] sm:$0xff]
    %v3404 = vld [vmem:[%s7 + $0xf8] sm:$0xff]
    %v3405 = vld [vmem:[%s8] sm:$0xff]
    %v3406 = vld [vmem:[%s8 + $0x8] sm:$0xff]
    %v3407 = vld [vmem:[%s8 + $0x10] sm:$0xff]
    %v3408 = vld [vmem:[%s8 + $0x18] sm:$0xff]
    %v3409 = vsel %vm2047, %v3367, 0.0
    %v3410 = vrot.slane %v3409, 4
    %v3411 = vadd.f32 %v3409, %v3410
    %v3412 = vrot.slane %v3411, 2
    %v3413 = vadd.f32 %v3411, %v3412
    %v3414 = vrot.slane %v3413, 1
    %v3415 = vadd.f32 %v3413, %v3414
    %v3416 = vsel %vm2047, %v3369, 0.0
    %v3417 = vrot.slane %v3416, 4
    %v3418 = vadd.f32 %v3416, %v3417
    %v3419 = vrot.slane %v3418, 2
    %v3420 = vadd.f32 %v3418, %v3419
    %v3421 = vrot.slane %v3420, 1
    %v3422 = vadd.f32 %v3420, %v3421
    %3423 = vmatprep.subr.mxu0 0.0
    %3424 = vmatpush1.msra.mxu0 %v3388
    %3425 = vmatprep.subr.mxu0 0.0
    %3426 = vmatpush1.msra.mxu0 %v3387
    %3427 = vmatprep.subr.mxu0 0.0
    %3428 = vmatpush1.msra.mxu0 %v3386
    %3429 = vmatprep.subr.mxu0 0.0
    %3430 = vmatpush1.msra.mxu0 %v3385
    %3431 = vmatprep.subr.mxu0 0.0
    %3432 = vmatpush1.msra.mxu0 %v3384
    %3433 = vmatprep.subr.mxu0 0.0
    %3434 = vmatpush1.msra.mxu0 %v3383
    %3435 = vmatprep.subr.mxu0 0.0
    %3436 = vmatpush1.msra.mxu0 %v3382
    %3437 = vmatprep.subr.mxu0 0.0
    %3438 = vmatpush1.msra.mxu0 %v3381
    %3439 = vmatprep.subr.mxu0 0.0
    %3440 = vmatpush1.msra.mxu0 %v3380
    %3441 = vmatprep.subr.mxu0 0.0
    %3442 = vmatpush1.msra.mxu0 %v3379
    %3443 = vmatprep.subr.mxu0 0.0
    %3444 = vmatpush1.msra.mxu0 %v3378
    %3445 = vmatprep.subr.mxu0 0.0
    %3446 = vmatpush1.msra.mxu0 %v3377
    %3447 = vmatprep.subr.mxu0 0.0
    %3448 = vmatpush1.msra.mxu0 %v3376
    %3449 = vmatprep.subr.mxu0 0.0
    %3450 = vmatpush1.msra.mxu0 %v3375
    %3451 = vmatprep.subr.mxu0 0.0
    %3452 = vmatpush1.msra.mxu0 %v3374
    %3453 = vmatprep.subr.mxu0 0.0
    %3454 = vmatpush1.msra.mxu0 %v3373
    %3455 = vmatprep.subr.mxu0 0.0
    %3456 = vmatpush2.msra.mxu0 %v3404
    %3457 = vmatprep.subr.mxu0 0.0
    %3458 = vmatpush2.msra.mxu0 %v3403
    %3459 = vmatprep.subr.mxu0 0.0
    %3460 = vmatpush2.msra.mxu0 %v3402
    %3461 = vmatprep.subr.mxu0 0.0
    %3462 = vmatpush2.msra.mxu0 %v3401
    %3463 = vmatprep.subr.mxu0 0.0
    %3464 = vmatpush2.msra.mxu0 %v3400
    %3465 = vmatprep.subr.mxu0 0.0
    %3466 = vmatpush2.msra.mxu0 %v3399
    %3467 = vmatprep.subr.mxu0 0.0
    %3468 = vmatpush2.msra.mxu0 %v3398
    %3469 = vmatprep.subr.mxu0 0.0
    %3470 = vmatpush2.msra.mxu0 %v3397
    %3471 = vmatprep.subr.mxu0 0.0
    %3472 = vmatpush2.msra.mxu0 %v3396
    %3473 = vmatprep.subr.mxu0 0.0
    %3474 = vmatpush2.msra.mxu0 %v3395
    %3475 = vmatprep.subr.mxu0 0.0
    %3476 = vmatpush2.msra.mxu0 %v3394
    %3477 = vmatprep.subr.mxu0 0.0
    %3478 = vmatpush2.msra.mxu0 %v3393
    %3479 = vmatprep.subr.mxu0 0.0
    %3480 = vmatpush2.msra.mxu0 %v3392
    %3481 = vmatprep.subr.mxu0 0.0
    %3482 = vmatpush2.msra.mxu0 %v3391
    %3483 = vmatprep.subr.mxu0 0.0
    %3484 = vmatpush2.msra.mxu0 %v3390
    %3485 = vmatprep.subr.mxu0 0.0
    %3486 = vmatpush2.msra.mxu0 %v3389
    %3487 = vmatprep.mubr.f32.mxu0 %v3422
    %3488 = vmatmul.mubr.f32.gmra.mxu0 %v3415
    %v3489 = vpop.f32.mrf.mxu0
    %v3490 = vadd.f32 0.0, %v3489
    %v3491 = vpop.f32.mrf.mxu0
    %3492 = vdwg.mxu0
    %v3493 = vmul.f32 %v3490, 0.03125
    %vm3494 = vcmask 130048
    %v3496 = vsel %vm3494, %v3493, 0
    %3498 = vmatprep.subr.mxu0 0.0
    %3499 = vmatpush1.msra.mxu0 0.0
    %3500 = vmatprep.subr.mxu0 0.0
    %3501 = vmatpush1.msra.mxu0 0.0
    %3502 = vmatprep.subr.mxu0 0.0
    %3503 = vmatpush1.msra.mxu0 0.0
    %3504 = vmatprep.subr.mxu0 0.0
    %3505 = vmatpush1.msra.mxu0 0.0
    %3506 = vmatprep.subr.mxu0 0.0
    %3507 = vmatpush1.msra.mxu0 0.0
    %3508 = vmatprep.subr.mxu0 0.0
    %3509 = vmatpush1.msra.mxu0 0.0
    %3510 = vmatprep.subr.mxu0 0.0
    %3511 = vmatpush1.msra.mxu0 0.0
    %3512 = vmatprep.subr.mxu0 0.0
    %3513 = vmatpush1.msra.mxu0 0.0
    %3514 = vmatprep.subr.mxu0 0.0
    %3515 = vmatpush1.msra.mxu0 0.0
    %3516 = vmatprep.subr.mxu0 0.0
    %3517 = vmatpush1.msra.mxu0 0.0
    %3518 = vmatprep.subr.mxu0 0.0
    %3519 = vmatpush1.msra.mxu0 0.0
    %3520 = vmatprep.subr.mxu0 0.0
    %3521 = vmatpush1.msra.mxu0 0.0
    %3522 = vmatprep.subr.mxu0 0.0
    %3523 = vmatpush1.msra.mxu0 0.0
    %3524 = vmatprep.subr.mxu0 0.0
    %3525 = vmatpush1.msra.mxu0 0.0
    %3526 = vmatprep.subr.mxu0 %v3408
    %3527 = vmatpush1.msra.mxu0 %v3407
    %3528 = vmatprep.subr.mxu0 %v3406
    %3529 = vmatpush1.msra.mxu0 %v3405
    %3530 = vmatprep.subr.mxu0 0.0
    %3531 = vmatpush2.msra.mxu0 0.0
    %3532 = vmatprep.subr.mxu0 0.0
    %3533 = vmatpush2.msra.mxu0 0.0
    %3534 = vmatprep.subr.mxu0 0.0
    %3535 = vmatpush2.msra.mxu0 0.0
    %3536 = vmatprep.subr.mxu0 0.0
    %3537 = vmatpush2.msra.mxu0 0.0
    %3538 = vmatprep.subr.mxu0 0.0
    %3539 = vmatpush2.msra.mxu0 0.0
    %3540 = vmatprep.subr.mxu0 0.0
    %3541 = vmatpush2.msra.mxu0 0.0
    %3542 = vmatprep.subr.mxu0 0.0
    %3543 = vmatpush2.msra.mxu0 0.0
    %3544 = vmatprep.subr.mxu0 0.0
    %3545 = vmatpush2.msra.mxu0 0.0
    %3546 = vmatprep.subr.mxu0 0.0
    %3547 = vmatpush2.msra.mxu0 0.0
    %3548 = vmatprep.subr.mxu0 0.0
    %3549 = vmatpush2.msra.mxu0 0.0
    %3550 = vmatprep.subr.mxu0 0.0
    %3551 = vmatpush2.msra.mxu0 0.0
    %3552 = vmatprep.subr.mxu0 0.0
    %3553 = vmatpush2.msra.mxu0 0.0
    %3554 = vmatprep.subr.mxu0 0.0
    %3555 = vmatpush2.msra.mxu0 0.0
    %3556 = vmatprep.subr.mxu0 0.0
    %3557 = vmatpush2.msra.mxu0 0.0
    %3558 = vmatprep.subr.mxu0 0.0
    %3559 = vmatpush2.msra.mxu0 0.0
    %3560 = vmatprep.subr.mxu0 0.0
    %3561 = vmatpush2.msra.mxu0 0.0
    %3562 = vmatprep.mubr.f32.mxu0 0.0
    %3563 = vmatmul.mubr.f32.gmra.mxu0 %v3496
    %v3564 = vpop.f32.mrf.mxu0
    %v3565 = vadd.f32 0.0, %v3564
    %v3566 = vpop.f32.mrf.mxu0
    %v3567 = vadd.f32 0.0, %v3566
    %3568 = vdwg.mxu0
    %v3569 = vlaneseq
    %v3570 = vshrl.u32 %v3569, 7
    %v3571 = vsub.s32 0, %v3570
    %v3572 = vrot.slane %v3565, %v3571
    %v3573 = vlaneseq
    %v3574 = vshrl.u32 %v3573, 7
    %v3575 = vsub.s32 0, %v3574
    %v3576 = vrot.slane %v3567, %v3575
    %v3577 = vsub.f32 %v3367, %v3572
    %v3578 = vsub.f32 %v3369, %v3576
    %v3579 = vmul.f32 %v3577, %v3577
    %v3580 = vmul.f32 %v3578, %v3578
    %v3581 = vsel %vm2047, %v3579, 0.0
    %v3582 = vrot.slane %v3581, 4
    %v3583 = vadd.f32 %v3581, %v3582
    %v3584 = vrot.slane %v3583, 2
    %v3585 = vadd.f32 %v3583, %v3584
    %v3586 = vrot.slane %v3585, 1
    %v3587 = vadd.f32 %v3585, %v3586
    %v3588 = vsel %vm2047, %v3580, 0.0
    %v3589 = vrot.slane %v3588, 4
    %v3590 = vadd.f32 %v3588, %v3589
    %v3591 = vrot.slane %v3590, 2
    %v3592 = vadd.f32 %v3590, %v3591
    %v3593 = vrot.slane %v3592, 1
    %v3594 = vadd.f32 %v3592, %v3593
    %3595 = vmatprep.subr.mxu0 0.0
    %3596 = vmatpush1.msra.mxu0 %v3388
    %3597 = vmatprep.subr.mxu0 0.0
    %3598 = vmatpush1.msra.mxu0 %v3387
    %3599 = vmatprep.subr.mxu0 0.0
    %3600 = vmatpush1.msra.mxu0 %v3386
    %3601 = vmatprep.subr.mxu0 0.0
    %3602 = vmatpush1.msra.mxu0 %v3385
    %3603 = vmatprep.subr.mxu0 0.0
    %3604 = vmatpush1.msra.mxu0 %v3384
    %3605 = vmatprep.subr.mxu0 0.0
    %3606 = vmatpush1.msra.mxu0 %v3383
    %3607 = vmatprep.subr.mxu0 0.0
    %3608 = vmatpush1.msra.mxu0 %v3382
    %3609 = vmatprep.subr.mxu0 0.0
    %3610 = vmatpush1.msra.mxu0 %v3381
    %3611 = vmatprep.subr.mxu0 0.0
    %3612 = vmatpush1.msra.mxu0 %v3380
    %3613 = vmatprep.subr.mxu0 0.0
    %3614 = vmatpush1.msra.mxu0 %v3379
    %3615 = vmatprep.subr.mxu0 0.0
    %3616 = vmatpush1.msra.mxu0 %v3378
    %3617 = vmatprep.subr.mxu0 0.0
    %3618 = vmatpush1.msra.mxu0 %v3377
    %3619 = vmatprep.subr.mxu0 0.0
    %3620 = vmatpush1.msra.mxu0 %v3376
    %3621 = vmatprep.subr.mxu0 0.0
    %3622 = vmatpush1.msra.mxu0 %v3375
    %3623 = vmatprep.subr.mxu0 0.0
    %3624 = vmatpush1.msra.mxu0 %v3374
    %3625 = vmatprep.subr.mxu0 0.0
    %3626 = vmatpush1.msra.mxu0 %v3373
    %3627 = vmatprep.subr.mxu0 0.0
    %3628 = vmatpush2.msra.mxu0 %v3404
    %3629 = vmatprep.subr.mxu0 0.0
    %3630 = vmatpush2.msra.mxu0 %v3403
    %3631 = vmatprep.subr.mxu0 0.0
    %3632 = vmatpush2.msra.mxu0 %v3402
    %3633 = vmatprep.subr.mxu0 0.0
    %3634 = vmatpush2.msra.mxu0 %v3401
    %3635 = vmatprep.subr.mxu0 0.0
    %3636 = vmatpush2.msra.mxu0 %v3400
    %3637 = vmatprep.subr.mxu0 0.0
    %3638 = vmatpush2.msra.mxu0 %v3399
    %3639 = vmatprep.subr.mxu0 0.0
    %3640 = vmatpush2.msra.mxu0 %v3398
    %3641 = vmatprep.subr.mxu0 0.0
    %3642 = vmatpush2.msra.mxu0 %v3397
    %3643 = vmatprep.subr.mxu0 0.0
    %3644 = vmatpush2.msra.mxu0 %v3396
    %3645 = vmatprep.subr.mxu0 0.0
    %3646 = vmatpush2.msra.mxu0 %v3395
    %3647 = vmatprep.subr.mxu0 0.0
    %3648 = vmatpush2.msra.mxu0 %v3394
    %3649 = vmatprep.subr.mxu0 0.0
    %3650 = vmatpush2.msra.mxu0 %v3393
    %3651 = vmatprep.subr.mxu0 0.0
    %3652 = vmatpush2.msra.mxu0 %v3392
    %3653 = vmatprep.subr.mxu0 0.0
    %3654 = vmatpush2.msra.mxu0 %v3391
    %3655 = vmatprep.subr.mxu0 0.0
    %3656 = vmatpush2.msra.mxu0 %v3390
    %3657 = vmatprep.subr.mxu0 0.0
    %3658 = vmatpush2.msra.mxu0 %v3389
    %3659 = vmatprep.mubr.f32.mxu0 %v3594
    %3660 = vmatmul.mubr.f32.gmra.mxu0 %v3587
    %v3661 = vpop.f32.mrf.mxu0
    %v3662 = vadd.f32 0.0, %v3661
    %v3663 = vpop.f32.mrf.mxu0
    %3664 = vdwg.mxu0
    %v3665 = vmul.f32 %v3662, 0.03125
    %v3666 = vld [vmem:[%s9] sm:$0x1]
    %v3667 = vadd.f32 %v3665, 1e-05
    %v3668 = vrsqrt.pop %v3667
    %v3669 = vmul.f32 %v3666, %v3668
    %v3671 = vsel %vm3494, %v3669, 0
    %3673 = vmatprep.subr.mxu0 0.0
    %3674 = vmatpush1.msra.mxu0 0.0
    %3675 = vmatprep.subr.mxu0 0.0
    %3676 = vmatpush1.msra.mxu0 0.0
    %3677 = vmatprep.subr.mxu0 0.0
    %3678 = vmatpush1.msra.mxu0 0.0
    %3679 = vmatprep.subr.mxu0 0.0
    %3680 = vmatpush1.msra.mxu0 0.0
    %3681 = vmatprep.subr.mxu0 0.0
    %3682 = vmatpush1.msra.mxu0 0.0
    %3683 = vmatprep.subr.mxu0 0.0
    %3684 = vmatpush1.msra.mxu0 0.0
    %3685 = vmatprep.subr.mxu0 0.0
    %3686 = vmatpush1.msra.mxu0 0.0
    %3687 = vmatprep.subr.mxu0 0.0
    %3688 = vmatpush1.msra.mxu0 0.0
    %3689 = vmatprep.subr.mxu0 0.0
    %3690 = vmatpush1.msra.mxu0 0.0
    %3691 = vmatprep.subr.mxu0 0.0
    %3692 = vmatpush1.msra.mxu0 0.0
    %3693 = vmatprep.subr.mxu0 0.0
    %3694 = vmatpush1.msra.mxu0 0.0
    %3695 = vmatprep.subr.mxu0 0.0
    %3696 = vmatpush1.msra.mxu0 0.0
    %3697 = vmatprep.subr.mxu0 0.0
    %3698 = vmatpush1.msra.mxu0 0.0
    %3699 = vmatprep.subr.mxu0 0.0
    %3700 = vmatpush1.msra.mxu0 0.0
    %3701 = vmatprep.subr.mxu0 %v3408
    %3702 = vmatpush1.msra.mxu0 %v3407
    %3703 = vmatprep.subr.mxu0 %v3406
    %3704 = vmatpush1.msra.mxu0 %v3405
    %3705 = vmatprep.subr.mxu0 0.0
    %3706 = vmatpush2.msra.mxu0 0.0
    %3707 = vmatprep.subr.mxu0 0.0
    %3708 = vmatpush2.msra.mxu0 0.0
    %3709 = vmatprep.subr.mxu0 0.0
    %3710 = vmatpush2.msra.mxu0 0.0
    %3711 = vmatprep.subr.mxu0 0.0
    %3712 = vmatpush2.msra.mxu0 0.0
    %3713 = vmatprep.subr.mxu0 0.0
    %3714 = vmatpush2.msra.mxu0 0.0
    %3715 = vmatprep.subr.mxu0 0.0
    %3716 = vmatpush2.msra.mxu0 0.0
    %3717 = vmatprep.subr.mxu0 0.0
    %3718 = vmatpush2.msra.mxu0 0.0
    %3719 = vmatprep.subr.mxu0 0.0
    %3720 = vmatpush2.msra.mxu0 0.0
    %3721 = vmatprep.subr.mxu0 0.0
    %3722 = vmatpush2.msra.mxu0 0.0
    %3723 = vmatprep.subr.mxu0 0.0
    %3724 = vmatpush2.msra.mxu0 0.0
    %3725 = vmatprep.subr.mxu0 0.0
    %3726 = vmatpush2.msra.mxu0 0.0
    %3727 = vmatprep.subr.mxu0 0.0
    %3728 = vmatpush2.msra.mxu0 0.0
    %3729 = vmatprep.subr.mxu0 0.0
    %3730 = vmatpush2.msra.mxu0 0.0
    %3731 = vmatprep.subr.mxu0 0.0
    %3732 = vmatpush2.msra.mxu0 0.0
    %3733 = vmatprep.subr.mxu0 0.0
    %3734 = vmatpush2.msra.mxu0 0.0
    %3735 = vmatprep.subr.mxu0 0.0
    %3736 = vmatpush2.msra.mxu0 0.0
    %3737 = vmatprep.mubr.f32.mxu0 0.0
    %3738 = vmatmul.mubr.f32.gmra.mxu0 %v3671
    %v3739 = vpop.f32.mrf.mxu0
    %v3740 = vadd.f32 0.0, %v3739
    %v3741 = vpop.f32.mrf.mxu0
    %v3742 = vadd.f32 0.0, %v3741
    %3743 = vdwg.mxu0
    %v3744 = vld [vmem:[%s10] sm:$0x1]
    %v3746 = vsel %vm3494, %v3744, 0
    %3748 = vmatprep.subr.mxu0 0.0
    %3749 = vmatpush1.msra.mxu0 0.0
    %3750 = vmatprep.subr.mxu0 0.0
    %3751 = vmatpush1.msra.mxu0 0.0
    %3752 = vmatprep.subr.mxu0 0.0
    %3753 = vmatpush1.msra.mxu0 0.0
    %3754 = vmatprep.subr.mxu0 0.0
    %3755 = vmatpush1.msra.mxu0 0.0
    %3756 = vmatprep.subr.mxu0 0.0
    %3757 = vmatpush1.msra.mxu0 0.0
    %3758 = vmatprep.subr.mxu0 0.0
    %3759 = vmatpush1.msra.mxu0 0.0
    %3760 = vmatprep.subr.mxu0 0.0
    %3761 = vmatpush1.msra.mxu0 0.0
    %3762 = vmatprep.subr.mxu0 0.0
    %3763 = vmatpush1.msra.mxu0 0.0
    %3764 = vmatprep.subr.mxu0 0.0
    %3765 = vmatpush1.msra.mxu0 0.0
    %3766 = vmatprep.subr.mxu0 0.0
    %3767 = vmatpush1.msra.mxu0 0.0
    %3768 = vmatprep.subr.mxu0 0.0
    %3769 = vmatpush1.msra.mxu0 0.0
    %3770 = vmatprep.subr.mxu0 0.0
    %3771 = vmatpush1.msra.mxu0 0.0
    %3772 = vmatprep.subr.mxu0 0.0
    %3773 = vmatpush1.msra.mxu0 0.0
    %3774 = vmatprep.subr.mxu0 0.0
    %3775 = vmatpush1.msra.mxu0 0.0
    %3776 = vmatprep.subr.mxu0 %v3408
    %3777 = vmatpush1.msra.mxu0 %v3407
    %3778 = vmatprep.subr.mxu0 %v3406
    %3779 = vmatpush1.msra.mxu0 %v3405
    %3780 = vmatprep.subr.mxu0 0.0
    %3781 = vmatpush2.msra.mxu0 0.0
    %3782 = vmatprep.subr.mxu0 0.0
    %3783 = vmatpush2.msra.mxu0 0.0
    %3784 = vmatprep.subr.mxu0 0.0
    %3785 = vmatpush2.msra.mxu0 0.0
    %3786 = vmatprep.subr.mxu0 0.0
    %3787 = vmatpush2.msra.mxu0 0.0
    %3788 = vmatprep.subr.mxu0 0.0
    %3789 = vmatpush2.msra.mxu0 0.0
    %3790 = vmatprep.subr.mxu0 0.0
    %3791 = vmatpush2.msra.mxu0 0.0
    %3792 = vmatprep.subr.mxu0 0.0
    %3793 = vmatpush2.msra.mxu0 0.0
    %3794 = vmatprep.subr.mxu0 0.0
    %3795 = vmatpush2.msra.mxu0 0.0
    %3796 = vmatprep.subr.mxu0 0.0
    %3797 = vmatpush2.msra.mxu0 0.0
    %3798 = vmatprep.subr.mxu0 0.0
    %3799 = vmatpush2.msra.mxu0 0.0
    %3800 = vmatprep.subr.mxu0 0.0
    %3801 = vmatpush2.msra.mxu0 0.0
    %3802 = vmatprep.subr.mxu0 0.0
    %3803 = vmatpush2.msra.mxu0 0.0
    %3804 = vmatprep.subr.mxu0 0.0
    %3805 = vmatpush2.msra.mxu0 0.0
    %3806 = vmatprep.subr.mxu0 0.0
    %3807 = vmatpush2.msra.mxu0 0.0
    %3808 = vmatprep.subr.mxu0 0.0
    %3809 = vmatpush2.msra.mxu0 0.0
    %3810 = vmatprep.subr.mxu0 0.0
    %3811 = vmatpush2.msra.mxu0 0.0
    %3812 = vmatprep.mubr.f32.mxu0 0.0
    %3813 = vmatmul.mubr.f32.gmra.mxu0 %v3746
    %v3814 = vpop.f32.mrf.mxu0
    %v3815 = vadd.f32 0.0, %v3814
    %v3816 = vpop.f32.mrf.mxu0
    %v3817 = vadd.f32 0.0, %v3816
    %3818 = vdwg.mxu0
    %v3819 = vlaneseq
    %v3820 = vshrl.u32 %v3819, 7
    %v3821 = vsub.s32 0, %v3820
    %v3822 = vrot.slane %v3740, %v3821
    %v3823 = vlaneseq
    %v3824 = vshrl.u32 %v3823, 7
    %v3825 = vsub.s32 0, %v3824
    %v3826 = vrot.slane %v3742, %v3825
    %v3827 = vmul.f32 %v3577, %v3822
    %v3828 = vmul.f32 %v3578, %v3826
    %v3829 = vlaneseq
    %v3830 = vshrl.u32 %v3829, 7
    %v3831 = vsub.s32 0, %v3830
    %v3832 = vrot.slane %v3815, %v3831
    %v3833 = vlaneseq
    %v3834 = vshrl.u32 %v3833, 7
    %v3835 = vsub.s32 0, %v3834
    %v3836 = vrot.slane %v3817, %v3835
    %v3837 = vadd.f32 %v3827, %v3832
    %v3838 = vadd.f32 %v3828, %v3836
    %vm3839 = vcmp.gt.f32.partialorder %v3837, 0.0
    %vm3840 = vcmp.gt.f32.partialorder %v3838, 0.0
    %v3841 = vmul.f32 %v3837, 0.2
    %v3842 = vmul.f32 %v3838, 0.2
    %v3843 = vsel %vm3839, %v3837, %v3841
    %v3844 = vsel %vm3840, %v3838, %v3842
    %v3845 = vpack.c.bf16 %v3843, %v3843
    %v3846 = vpack.c.bf16 %v3844, %v3844
    %v3847 = vld [vmem:[%s11] sm:$0xf]
    %v3848 = vld [vmem:[%s11 + $0x4] sm:$0xf]
    %v3849 = vld [vmem:[%s11 + $0x8] sm:$0xf]
    %v3850 = vld [vmem:[%s11 + $0xc] sm:$0xf]
    %v3851 = vld [vmem:[%s11 + $0x10] sm:$0xf]
    %v3852 = vld [vmem:[%s11 + $0x14] sm:$0xf]
    %v3853 = vld [vmem:[%s11 + $0x18] sm:$0xf]
    %v3854 = vld [vmem:[%s11 + $0x1c] sm:$0xf]
    %v3855 = vld [vmem:[%s11 + $0x20] sm:$0xf]
    %v3856 = vld [vmem:[%s11 + $0x24] sm:$0xf]
    %v3857 = vld [vmem:[%s11 + $0x28] sm:$0xf]
    %v3858 = vld [vmem:[%s11 + $0x2c] sm:$0xf]
    %v3859 = vld [vmem:[%s11 + $0x30] sm:$0xf]
    %v3860 = vld [vmem:[%s11 + $0x34] sm:$0xf]
    %v3861 = vld [vmem:[%s11 + $0x38] sm:$0xf]
    %v3862 = vld [vmem:[%s11 + $0x3c] sm:$0xf]
    %v3863 = vld [vmem:[%s11 + $0x40] sm:$0xf]
    %v3864 = vld [vmem:[%s11 + $0x44] sm:$0xf]
    %v3865 = vld [vmem:[%s11 + $0x48] sm:$0xf]
    %v3866 = vld [vmem:[%s11 + $0x4c] sm:$0xf]
    %v3867 = vld [vmem:[%s11 + $0x50] sm:$0xf]
    %v3868 = vld [vmem:[%s11 + $0x54] sm:$0xf]
    %v3869 = vld [vmem:[%s11 + $0x58] sm:$0xf]
    %v3870 = vld [vmem:[%s11 + $0x5c] sm:$0xf]
    %v3871 = vld [vmem:[%s11 + $0x60] sm:$0xf]
    %v3872 = vld [vmem:[%s11 + $0x64] sm:$0xf]
    %v3873 = vld [vmem:[%s11 + $0x68] sm:$0xf]
    %v3874 = vld [vmem:[%s11 + $0x6c] sm:$0xf]
    %v3875 = vld [vmem:[%s11 + $0x70] sm:$0xf]
    %v3876 = vld [vmem:[%s11 + $0x74] sm:$0xf]
    %v3877 = vld [vmem:[%s11 + $0x78] sm:$0xf]
    %v3878 = vld [vmem:[%s11 + $0x7c] sm:$0xf]
    %v3911 = vunpack.c.l.b16 %v3847
    %v3912 = vunpack.c.l.b16 %v3848
    %v3913 = vunpack.c.l.b16 %v3849
    %v3914 = vunpack.c.l.b16 %v3850
    %v3915 = vunpack.c.l.b16 %v3851
    %v3916 = vunpack.c.l.b16 %v3852
    %v3917 = vunpack.c.l.b16 %v3853
    %v3918 = vunpack.c.l.b16 %v3854
    %v3919 = vunpack.c.l.b16 %v3855
    %v3920 = vunpack.c.l.b16 %v3856
    %v3921 = vunpack.c.l.b16 %v3857
    %v3922 = vunpack.c.l.b16 %v3858
    %v3923 = vunpack.c.l.b16 %v3859
    %v3924 = vunpack.c.l.b16 %v3860
    %v3925 = vunpack.c.l.b16 %v3861
    %v3926 = vunpack.c.l.b16 %v3862
    %v3927 = vunpack.c.l.b16 %v3863
    %v3928 = vunpack.c.l.b16 %v3864
    %v3929 = vunpack.c.l.b16 %v3865
    %v3930 = vunpack.c.l.b16 %v3866
    %v3931 = vunpack.c.l.b16 %v3867
    %v3932 = vunpack.c.l.b16 %v3868
    %v3933 = vunpack.c.l.b16 %v3869
    %v3934 = vunpack.c.l.b16 %v3870
    %v3935 = vunpack.c.l.b16 %v3871
    %v3936 = vunpack.c.l.b16 %v3872
    %v3937 = vunpack.c.l.b16 %v3873
    %v3938 = vunpack.c.l.b16 %v3874
    %v3939 = vunpack.c.l.b16 %v3875
    %v3940 = vunpack.c.l.b16 %v3876
    %v3941 = vunpack.c.l.b16 %v3877
    %v3942 = vunpack.c.l.b16 %v3878
    %v3943 = vpack.c.b16 %v3912, %v3911
    %v3944 = vpack.c.b16 %v3914, %v3913
    %v3945 = vpack.c.b16 %v3916, %v3915
    %v3946 = vpack.c.b16 %v3918, %v3917
    %v3947 = vpack.c.b16 %v3920, %v3919
    %v3948 = vpack.c.b16 %v3922, %v3921
    %v3949 = vpack.c.b16 %v3924, %v3923
    %v3950 = vpack.c.b16 %v3926, %v3925
    %v3951 = vpack.c.b16 %v3928, %v3927
    %v3952 = vpack.c.b16 %v3930, %v3929
    %v3953 = vpack.c.b16 %v3932, %v3931
    %v3954 = vpack.c.b16 %v3934, %v3933
    %v3955 = vpack.c.b16 %v3936, %v3935
    %v3956 = vpack.c.b16 %v3938, %v3937
    %v3957 = vpack.c.b16 %v3940, %v3939
    %v3958 = vpack.c.b16 %v3942, %v3941
    %3975 = vmatprep.subr.bf16.mxu0 0
    %3976 = vmatpush1.bf16.msra.mxu0 %v3950
    %3977 = vmatprep.subr.bf16.mxu0 0
    %3978 = vmatpush1.bf16.msra.mxu0 %v3949
    %3979 = vmatprep.subr.bf16.mxu0 0
    %3980 = vmatpush1.bf16.msra.mxu0 %v3948
    %3981 = vmatprep.subr.bf16.mxu0 0
    %3982 = vmatpush1.bf16.msra.mxu0 %v3947
    %3983 = vmatprep.subr.bf16.mxu0 0
    %3984 = vmatpush1.bf16.msra.mxu0 %v3946
    %3985 = vmatprep.subr.bf16.mxu0 0
    %3986 = vmatpush1.bf16.msra.mxu0 %v3945
    %3987 = vmatprep.subr.bf16.mxu0 0
    %3988 = vmatpush1.bf16.msra.mxu0 %v3944
    %3989 = vmatprep.subr.bf16.mxu0 0
    %3990 = vmatpush1.bf16.msra.mxu0 %v3943
    %3991 = vmatprep.subr.bf16.mxu0 0
    %3992 = vmatpush2.bf16.msra.mxu0 %v3958
    %3993 = vmatprep.subr.bf16.mxu0 0
    %3994 = vmatpush2.bf16.msra.mxu0 %v3957
    %3995 = vmatprep.subr.bf16.mxu0 0
    %3996 = vmatpush2.bf16.msra.mxu0 %v3956
    %3997 = vmatprep.subr.bf16.mxu0 0
    %3998 = vmatpush2.bf16.msra.mxu0 %v3955
    %3999 = vmatprep.subr.bf16.mxu0 0
    %4000 = vmatpush2.bf16.msra.mxu0 %v3954
    %4001 = vmatprep.subr.bf16.mxu0 0
    %4002 = vmatpush2.bf16.msra.mxu0 %v3953
    %4003 = vmatprep.subr.bf16.mxu0 0
    %4004 = vmatpush2.bf16.msra.mxu0 %v3952
    %4005 = vmatprep.subr.bf16.mxu0 0
    %4006 = vmatpush2.bf16.msra.mxu0 %v3951
    %4007 = vmatprep.mubr.bf16.mxu0 %v3846
    %4008 = vmatmul.mubr.bf16.gmra.mxu0 %v3845
    %v4009 = vpop.f32.mrf.mxu0
    %v4010 = vadd.f32 0.0, %v4009
    %v4011 = vpop.f32.mrf.mxu0
    %v4012 = vpop.f32.mrf.mxu0
    %v4013 = vpop.f32.mrf.mxu0
    %4014 = vdwg.mxu0
    %v4015 = vxor.u32 %v4010, 2147483648
    %v4016 = vmul.f32 %v4015, 1.442695
    %v4017 = vpow.pop %v4016
    %v4018 = vadd.f32 %v4017, 1.0
    %v4019 = vrcp.pop %v4018
    %v4020 = vmul.f32 1.0, %v4019
    %vm4021 = vcmask 1024
    %4022 = vst.msk [vmem:[%s12] sm:$0x3] %vm4021, %v4020
    // Predicated region
    $region54: #{tpu_custom_call.1} parent=1 // pred_check
      _
    $region55: #{tpu_custom_call.1} parent=1 // pred_check_branch
      %4024 = sbr.rel (0) target = $region57
    $region56: #{tpu_custom_call.1} parent=1 // pred_region
      _
    $region57: #{tpu_custom_call.1} parent=1 // pred_fallthru
      _
    // Predicated region
    $region58: #{tpu_custom_call.1} parent=1 // pred_check
      _
    $region59: #{tpu_custom_call.1} parent=1 // pred_check_branch
      %4026 = sbr.rel (0) target = $region61
    $region60: #{tpu_custom_call.1} parent=1 // pred_region
      _
    $region61: #{tpu_custom_call.1} parent=1 // pred_fallthru
      _
    %4027 = vsyncpa [#allocation3], 1

</llo_original>
